<compile_context>
chip_gen: v5e
topology: v5e:2x2
jax: 0.10.0
libtpu: 0.0.40
codegen_flags: <defaults>
</compile_context>

<pallas_src>
import functools

import jax
import jax.numpy as jnp
from jax import lax
from jax.experimental import pallas as pl
from jax.experimental.pallas import tpu as pltpu


# ---------------- model hyper-parameters (synthetic, scaled-down wav2vec2) ---
C = 32        # conv feature channels
D = 32        # transformer hidden size
H = 4         # attention heads
DH = D // H
FFN = 64
N_LAYERS = 2
K1, S1 = 10, 5    # conv layer 1 (kernel, stride)
K2, S2 = 3, 2     # conv layer 2 (kernel, stride)


def _gelu(x):
    # TODO(synk): torch nn.GELU / HF "gelu" is the exact erf GELU; using the
    # tanh approximation so the transcendental lowers cleanly to the TPU EUP.
    return jax.nn.gelu(x, approximate=True)


def _layernorm(x, g, b, eps=1e-5):
    mu = jnp.mean(x, axis=-1, keepdims=True)
    var = jnp.mean((x - mu) ** 2, axis=-1, keepdims=True)
    return (x - mu) * lax.rsqrt(var + eps) * g + b


# ----------------------------------------------------------------------------
# the single fused kernel: one batch element per grid step
# ----------------------------------------------------------------------------
def _audio_encoder_kernel(
    x_ref,                      # (1, TR, 2*S1)  raw audio folded into 10-sample rows
    c1w_ref,                    # (K1, C)
    gng_ref, gnb_ref,           # (1, C)
    c2w_ref,                    # (K2, C, C)
    fplng_ref, fplnb_ref,       # (1, C)
    fpw_ref, fpb_ref,           # (C, D), (1, D)
    elng_ref, elnb_ref,         # (1, D)
    qkvw_ref, qkvb_ref,         # (L, D, 3D), (L, 1, 3D)
    ow_ref, ob_ref,             # (L, D, D), (L, 1, D)
    ln1g_ref, ln1b_ref,         # (L, 1, D)
    f1w_ref, f1b_ref,           # (L, D, FFN), (L, 1, FFN)
    f2w_ref, f2b_ref,           # (L, FFN, D), (L, 1, D)
    ln2g_ref, ln2b_ref,         # (L, 1, D)
    o_ref,                      # (1, 1, D)
    *, n_samples, l1, l2,
):
    f32 = jnp.float32

    # ---- Wav2Vec2Processor: per-utterance zero-mean / unit-variance ---------
    x = x_ref[0].astype(f32)                              # (TR, 2*S1)
    n = float(n_samples)
    mu = jnp.sum(x, keepdims=True) / n                    # (1, 1)
    var = jnp.sum(x * x, keepdims=True) / n - mu * mu
    xn = (x - mu) * lax.rsqrt(var + 1e-7)                 # padded tail unused

    # ---- conv1 (C_in=1, K=10, stride=5): VPU FMAs, even/odd output phases ---
    # even output m (time 2m)  : samples 10m + k     -> xn[m, k]
    # odd  output m (time 2m+1): samples 10m + 5 + k -> xn[m, 5+k] / xn[m+1, k-5]
    w1 = c1w_ref[...]                                     # (K1, C)
    ne = (l1 + 1) // 2
    no = l1 // 2
    acc_e = jnp.zeros((ne, C), f32)
    acc_o = jnp.zeros((no, C), f32)
    for k in range(K1):
        wk = w1[k:k + 1, :]                               # (1, C)
        acc_e = acc_e + xn[:ne, k:k + 1] * wk
        if k < S1:
            acc_o = acc_o + xn[:no, S1 + k:S1 + k + 1] * wk
        else:
            acc_o = acc_o + xn[1:no + 1, k - S1:k - S1 + 1] * wk

    # ---- GroupNorm(num_groups=C) over time + GELU ----------------------------
    tot = float(l1)
    mu_t = (jnp.sum(acc_e, axis=0, keepdims=True)
            + jnp.sum(acc_o, axis=0, keepdims=True)) / tot          # (1, C)
    var_t = (jnp.sum((acc_e - mu_t) ** 2, axis=0, keepdims=True)
             + jnp.sum((acc_o - mu_t) ** 2, axis=0, keepdims=True)) / tot
    inv_t = lax.rsqrt(var_t + 1e-5)
    gn_g, gn_b = gng_ref[...], gnb_ref[...]
    h_e = _gelu((acc_e - mu_t) * inv_t * gn_g + gn_b)     # (ne, C)
    h_o = _gelu((acc_o - mu_t) * inv_t * gn_g + gn_b)     # (no, C)

    # ---- conv2 (K=3, stride=2) + GELU: taps land on the even/odd phases ------
    # out[l] uses h1[2l], h1[2l+1], h1[2l+2] = h_e[l], h_o[l], h_e[l+1]
    w2 = c2w_ref[...]                                     # (K2, C, C)
    h2 = (jnp.dot(h_e[:l2], w2[0], preferred_element_type=f32)
          + jnp.dot(h_o[:l2], w2[1], preferred_element_type=f32)
          + jnp.dot(h_e[1:l2 + 1], w2[2], preferred_element_type=f32))
    h2 = _gelu(h2)                                        # (l2, C)

    # ---- feature projection: LayerNorm(C) + Linear(C -> D) -------------------
    h2 = _layernorm(h2, fplng_ref[...], fplnb_ref[...])
    hx = jnp.dot(h2, fpw_ref[...], preferred_element_type=f32) + fpb_ref[...]

    # ---- encoder input LayerNorm ---------------------------------------------
    # TODO(synk): Wav2Vec2 positional conv embedding (grouped conv, k=128) omitted.
    hx = _layernorm(hx, elng_ref[...], elnb_ref[...])     # (l2, D)

    # ---- transformer layers (post-norm), fully in VMEM -----------------------
    scale = 1.0 / float(DH) ** 0.5
    for layer in range(N_LAYERS):
        qkv = (jnp.dot(hx, qkvw_ref[layer], preferred_element_type=f32)
               + qkvb_ref[layer])                          # (S, 3D)
        q, k_, v = qkv[:, :D], qkv[:, D:2 * D], qkv[:, 2 * D:]
        heads = []
        for h in range(H):
            lo, hi = h * DH, (h + 1) * DH
            qh = q[:, lo:hi] * scale
            s = lax.dot_general(qh, k_[:, lo:hi],
                                (((1,), (1,)), ((), ())),
                                preferred_element_type=f32)        # (S, S)
            s = s - jnp.max(s, axis=-1, keepdims=True)
            p = jnp.exp(s)
            p = p * pl.reciprocal(jnp.sum(p, axis=-1, keepdims=True),
                                  approx=True)
            heads.append(jnp.dot(p, v[:, lo:hi], preferred_element_type=f32))
        attn = jnp.concatenate(heads, axis=-1)                     # (S, D)
        attn = (jnp.dot(attn, ow_ref[layer], preferred_element_type=f32)
                + ob_ref[layer])
        hx = _layernorm(hx + attn, ln1g_ref[layer], ln1b_ref[layer])
        ff = _gelu(jnp.dot(hx, f1w_ref[layer], preferred_element_type=f32)
                   + f1b_ref[layer])
        ff = jnp.dot(ff, f2w_ref[layer], preferred_element_type=f32) + f2b_ref[layer]
        hx = _layernorm(hx + ff, ln2g_ref[layer], ln2b_ref[layer])

    # ---- last_hidden_state.mean(dim=1) ---------------------------------------
    o_ref[0] = jnp.mean(hx, axis=0, keepdims=True)        # (1, D)


# ----------------------------------------------------------------------------
# wrapper
# ----------------------------------------------------------------------------
def _const_spec(arr):
    zeros = (0,) * arr.ndim
    return pl.BlockSpec(arr.shape, lambda b: zeros)


def audio_encoder_forward(params, audio):
    b_sz, t = audio.shape
    fold = 2 * S1                                   # 10 raw samples per folded row
    t_pad = ((t + fold - 1) // fold) * fold
    if t_pad != t:
        audio = jnp.pad(audio, ((0, 0), (0, t_pad - t)))
    tr = t_pad // fold
    l1 = (t - K1) // S1 + 1
    l2 = (l1 - K2) // S2 + 1
    ne, no = (l1 + 1) // 2, l1 // 2
    assert ne <= tr and no + 1 <= tr and l2 + 1 <= ne and l2 <= no, \
        "unsupported audio length for the folded conv implementation"

    x = audio.reshape(b_sz, tr, fold)

    weight_args = (
        params["conv1_w"], params["gn_g"], params["gn_b"], params["conv2_w"],
        params["fp_ln_g"], params["fp_ln_b"], params["fp_w"], params["fp_b"],
        params["enc_ln_g"], params["enc_ln_b"],
        params["qkv_w"], params["qkv_b"], params["o_w"], params["o_b"],
        params["ln1_g"], params["ln1_b"], params["ff1_w"], params["ff1_b"],
        params["ff2_w"], params["ff2_b"], params["ln2_g"], params["ln2_b"],
    )

    in_specs = [pl.BlockSpec((1, tr, fold), lambda b: (b, 0, 0))]
    in_specs += [_const_spec(w) for w in weight_args]

    out = pl.pallas_call(
        functools.partial(_audio_encoder_kernel, n_samples=t, l1=l1, l2=l2),
        grid=(b_sz,),
        in_specs=in_specs,
        out_specs=pl.BlockSpec((1, 1, D), lambda b: (b, 0, 0)),
        out_shape=jax.ShapeDtypeStruct((b_sz, 1, D), jnp.float32),
        compiler_params=pltpu.CompilerParams(
            dimension_semantics=("parallel",)),
    )(x, *weight_args)
    return out.reshape(b_sz, D)


# ----------------------------------------------------------------------------
# parameters (deterministic synthetic init; no checkpoint loading)
# ----------------------------------------------------------------------------
def init_params(key):
    keys = iter(jax.random.split(key, 32))

    def nrm(shape, scale=0.05):
        return scale * jax.random.normal(next(keys), shape, dtype=jnp.float32)

    p = {}
    # conv1: torch weight (C_out, C_in=1, K1); conv_bias=False in wav2vec2-base
    w = nrm((C, 1, K1), 0.3)
    p["conv1_w"] = jnp.transpose(w, (2, 1, 0)).reshape(K1, C)     # (K1, C)
    p["gn_g"] = jnp.ones((1, C), jnp.float32)
    p["gn_b"] = jnp.zeros((1, C), jnp.float32)
    # conv2: torch weight (C_out, C_in, K2) -> (K2, C_in, C_out)
    w = nrm((C, C, K2), 0.1)
    p["conv2_w"] = jnp.transpose(w, (2, 1, 0))                    # (K2, C, C)
    # feature projection: LayerNorm(C) + Linear(C -> D)
    p["fp_ln_g"] = jnp.ones((1, C), jnp.float32)
    p["fp_ln_b"] = jnp.zeros((1, C), jnp.float32)
    p["fp_w"] = nrm((C, D))
    p["fp_b"] = jnp.zeros((1, D), jnp.float32)
    # encoder input LayerNorm
    p["enc_ln_g"] = jnp.ones((1, D), jnp.float32)
    p["enc_ln_b"] = jnp.zeros((1, D), jnp.float32)
    # transformer layers: fused QKV weights, stacked along a layer axis
    qkv_w, qkv_b, o_w, o_b = [], [], [], []
    ln1_g, ln1_b, ff1_w, ff1_b = [], [], [], []
    ff2_w, ff2_b, ln2_g, ln2_b = [], [], [], []
    for _ in range(N_LAYERS):
        qkv_w.append(jnp.concatenate([nrm((D, D)), nrm((D, D)), nrm((D, D))],
                                     axis=1))                     # (D, 3D)
        qkv_b.append(jnp.zeros((1, 3 * D), jnp.float32))
        o_w.append(nrm((D, D)))
        o_b.append(jnp.zeros((1, D), jnp.float32))
        ln1_g.append(jnp.ones((1, D), jnp.float32))
        ln1_b.append(jnp.zeros((1, D), jnp.float32))
        ff1_w.append(nrm((D, FFN)))
        ff1_b.append(jnp.zeros((1, FFN), jnp.float32))
        ff2_w.append(nrm((FFN, D)))
        ff2_b.append(jnp.zeros((1, D), jnp.float32))
        ln2_g.append(jnp.ones((1, D), jnp.float32))
        ln2_b.append(jnp.zeros((1, D), jnp.float32))
    stack = lambda xs: jnp.stack(xs, axis=0)
    p["qkv_w"], p["qkv_b"] = stack(qkv_w), stack(qkv_b)
    p["o_w"], p["o_b"] = stack(o_w), stack(o_b)
    p["ln1_g"], p["ln1_b"] = stack(ln1_g), stack(ln1_b)
    p["ff1_w"], p["ff1_b"] = stack(ff1_w), stack(ff1_b)
    p["ff2_w"], p["ff2_b"] = stack(ff2_w), stack(ff2_b)
    p["ln2_g"], p["ln2_b"] = stack(ln2_g), stack(ln2_b)
    return p


# ----------------------------------------------------------------------------
if __name__ == "__main__":
    key = jax.random.PRNGKey(0)
    k_audio, k_params = jax.random.split(key)

    B, T_RAW = 2, 170          # -> L1 = 33, L2 = S = 16
    audio = jax.random.normal(k_audio, (B, T_RAW), dtype=jnp.float32)
    params = init_params(k_params)

    out = audio_encoder_forward(params, audio)
    out = jax.block_until_ready(out)

    assert out.shape == (B, D), out.shape
    assert out.dtype == jnp.float32
    assert bool(jnp.all(jnp.isfinite(out)))
    print("KERNEL_OK")
</pallas_src>

<mosaic_0001>
module attributes {stable_mosaic.version = 11 : i64} {
  func.func @_audio_encoder_kernel(%arg0: i32, %arg1: memref<1x17x10xf32, #tpu.memory_space<vmem>>, %arg2: memref<10x32xf32, #tpu.memory_space<vmem>>, %arg3: memref<1x32xf32, #tpu.memory_space<vmem>>, %arg4: memref<1x32xf32, #tpu.memory_space<vmem>>, %arg5: memref<3x32x32xf32, #tpu.memory_space<vmem>>, %arg6: memref<1x32xf32, #tpu.memory_space<vmem>>, %arg7: memref<1x32xf32, #tpu.memory_space<vmem>>, %arg8: memref<32x32xf32, #tpu.memory_space<vmem>>, %arg9: memref<1x32xf32, #tpu.memory_space<vmem>>, %arg10: memref<1x32xf32, #tpu.memory_space<vmem>>, %arg11: memref<1x32xf32, #tpu.memory_space<vmem>>, %arg12: memref<2x32x96xf32, #tpu.memory_space<vmem>>, %arg13: memref<2x1x96xf32, #tpu.memory_space<vmem>>, %arg14: memref<2x32x32xf32, #tpu.memory_space<vmem>>, %arg15: memref<2x1x32xf32, #tpu.memory_space<vmem>>, %arg16: memref<2x1x32xf32, #tpu.memory_space<vmem>>, %arg17: memref<2x1x32xf32, #tpu.memory_space<vmem>>, %arg18: memref<2x32x64xf32, #tpu.memory_space<vmem>>, %arg19: memref<2x1x64xf32, #tpu.memory_space<vmem>>, %arg20: memref<2x64x32xf32, #tpu.memory_space<vmem>>, %arg21: memref<2x1x32xf32, #tpu.memory_space<vmem>>, %arg22: memref<2x1x32xf32, #tpu.memory_space<vmem>>, %arg23: memref<2x1x32xf32, #tpu.memory_space<vmem>>, %arg24: memref<1x1x32xf32, #tpu.memory_space<vmem>>) attributes {dimension_semantics = [#tpu.dimension_semantics<parallel>], iteration_bounds = array<i64: 2>, scalar_prefetch = 0 : i64, scratch_operands = 0 : i64, tpu.core_type = #tpu.core_type<tc>, window_params = [{transform_indices = @transform_0, window_bounds = array<i64: 1, 17, 10>}, {pipeline_mode = #tpu.pipeline_mode<synchronous>, transform_indices = @transform_1, window_bounds = array<i64: 10, 32>}, {pipeline_mode = #tpu.pipeline_mode<synchronous>, transform_indices = @transform_2, window_bounds = array<i64: 1, 32>}, {pipeline_mode = #tpu.pipeline_mode<synchronous>, transform_indices = @transform_3, window_bounds = array<i64: 1, 32>}, {pipeline_mode = #tpu.pipeline_mode<synchronous>, transform_indices = @transform_4, window_bounds = array<i64: 3, 32, 32>}, {pipeline_mode = #tpu.pipeline_mode<synchronous>, transform_indices = @transform_5, window_bounds = array<i64: 1, 32>}, {pipeline_mode = #tpu.pipeline_mode<synchronous>, transform_indices = @transform_6, window_bounds = array<i64: 1, 32>}, {pipeline_mode = #tpu.pipeline_mode<synchronous>, transform_indices = @transform_7, window_bounds = array<i64: 32, 32>}, {pipeline_mode = #tpu.pipeline_mode<synchronous>, transform_indices = @transform_8, window_bounds = array<i64: 1, 32>}, {pipeline_mode = #tpu.pipeline_mode<synchronous>, transform_indices = @transform_9, window_bounds = array<i64: 1, 32>}, {pipeline_mode = #tpu.pipeline_mode<synchronous>, transform_indices = @transform_10, window_bounds = array<i64: 1, 32>}, {pipeline_mode = #tpu.pipeline_mode<synchronous>, transform_indices = @transform_11, window_bounds = array<i64: 2, 32, 96>}, {pipeline_mode = #tpu.pipeline_mode<synchronous>, transform_indices = @transform_12, window_bounds = array<i64: 2, 1, 96>}, {pipeline_mode = #tpu.pipeline_mode<synchronous>, transform_indices = @transform_13, window_bounds = array<i64: 2, 32, 32>}, {pipeline_mode = #tpu.pipeline_mode<synchronous>, transform_indices = @transform_14, window_bounds = array<i64: 2, 1, 32>}, {pipeline_mode = #tpu.pipeline_mode<synchronous>, transform_indices = @transform_15, window_bounds = array<i64: 2, 1, 32>}, {pipeline_mode = #tpu.pipeline_mode<synchronous>, transform_indices = @transform_16, window_bounds = array<i64: 2, 1, 32>}, {pipeline_mode = #tpu.pipeline_mode<synchronous>, transform_indices = @transform_17, window_bounds = array<i64: 2, 32, 64>}, {pipeline_mode = #tpu.pipeline_mode<synchronous>, transform_indices = @transform_18, window_bounds = array<i64: 2, 1, 64>}, {pipeline_mode = #tpu.pipeline_mode<synchronous>, transform_indices = @transform_19, window_bounds = array<i64: 2, 64, 32>}, {pipeline_mode = #tpu.pipeline_mode<synchronous>, transform_indices = @transform_20, window_bounds = array<i64: 2, 1, 32>}, {pipeline_mode = #tpu.pipeline_mode<synchronous>, transform_indices = @transform_21, window_bounds = array<i64: 2, 1, 32>}, {pipeline_mode = #tpu.pipeline_mode<synchronous>, transform_indices = @transform_22, window_bounds = array<i64: 2, 1, 32>}, {transform_indices = @transform_23, window_bounds = array<i64: 1, 1, 32>}]} {
    %c0 = arith.constant 0 : index
    %c0_0 = arith.constant 0 : index
    %c0_1 = arith.constant 0 : index
    %0 = vector.load %arg1[%c0, %c0_0, %c0_1] : memref<1x17x10xf32, #tpu.memory_space<vmem>>, vector<1x17x10xf32>
    %1 = vector.shape_cast %0 : vector<1x17x10xf32> to vector<17x10xf32>
    %2 = vector.shape_cast %1 : vector<17x10xf32> to vector<1x17x10xf32>
    %cst = arith.constant dense<0.000000e+00> : vector<1xf32>
    %3 = vector.multi_reduction <add>, %2, %cst [1, 2] : vector<1x17x10xf32> to vector<1xf32>
    %4 = vector.shape_cast %3 : vector<1xf32> to vector<1x1x1xf32>
    %5 = vector.extract %4[0, 0, 0] : f32 from vector<1x1x1xf32>
    %6 = vector.broadcast %5 : f32 to vector<1x1xf32>
    %cst_2 = arith.constant 1.700000e+02 : f32
    %7 = vector.broadcast %cst_2 : f32 to vector<1x1xf32>
    %8 = arith.divf %6, %7 : vector<1x1xf32>
    %9 = arith.mulf %1, %1 : vector<17x10xf32>
    %10 = vector.shape_cast %9 : vector<17x10xf32> to vector<1x17x10xf32>
    %cst_3 = arith.constant dense<0.000000e+00> : vector<1xf32>
    %11 = vector.multi_reduction <add>, %10, %cst_3 [1, 2] : vector<1x17x10xf32> to vector<1xf32>
    %12 = vector.shape_cast %11 : vector<1xf32> to vector<1x1x1xf32>
    %13 = vector.extract %12[0, 0, 0] : f32 from vector<1x1x1xf32>
    %14 = vector.broadcast %13 : f32 to vector<1x1xf32>
    %cst_4 = arith.constant 1.700000e+02 : f32
    %15 = vector.broadcast %cst_4 : f32 to vector<1x1xf32>
    %16 = arith.divf %14, %15 : vector<1x1xf32>
    %17 = arith.mulf %8, %8 : vector<1x1xf32>
    %18 = arith.subf %16, %17 : vector<1x1xf32>
    %19 = vector.broadcast %8 : vector<1x1xf32> to vector<17x10xf32>
    %20 = arith.subf %1, %19 : vector<17x10xf32>
    %cst_5 = arith.constant 1.000000e-07 : f32
    %21 = vector.broadcast %cst_5 : f32 to vector<1x1xf32>
    %22 = arith.addf %18, %21 : vector<1x1xf32>
    %23 = math.rsqrt %22 : vector<1x1xf32>
    %24 = vector.broadcast %23 : vector<1x1xf32> to vector<17x10xf32>
    %25 = arith.mulf %20, %24 : vector<17x10xf32>
    %c0_6 = arith.constant 0 : index
    %c0_7 = arith.constant 0 : index
    %26 = vector.load %arg2[%c0_6, %c0_7] : memref<10x32xf32, #tpu.memory_space<vmem>>, vector<10x32xf32>
    %cst_8 = arith.constant 0.000000e+00 : f32
    %27 = vector.broadcast %cst_8 : f32 to vector<17x32xf32>
    %cst_9 = arith.constant 0.000000e+00 : f32
    %28 = vector.broadcast %cst_9 : f32 to vector<16x32xf32>
    %29 = vector.extract_strided_slice %26 {offsets = [0, 0], sizes = [1, 32], strides = [1, 1]} : vector<10x32xf32> to vector<1x32xf32>
    %30 = vector.extract_strided_slice %25 {offsets = [0, 0], sizes = [17, 1], strides = [1, 1]} : vector<17x10xf32> to vector<17x1xf32>
    %31 = vector.broadcast %30 : vector<17x1xf32> to vector<17x32xf32>
    %32 = vector.broadcast %29 : vector<1x32xf32> to vector<17x32xf32>
    %33 = arith.mulf %31, %32 : vector<17x32xf32>
    %34 = arith.addf %27, %33 : vector<17x32xf32>
    %35 = vector.extract_strided_slice %25 {offsets = [0, 5], sizes = [16, 1], strides = [1, 1]} : vector<17x10xf32> to vector<16x1xf32>
    %36 = vector.broadcast %35 : vector<16x1xf32> to vector<16x32xf32>
    %37 = vector.broadcast %29 : vector<1x32xf32> to vector<16x32xf32>
    %38 = arith.mulf %36, %37 : vector<16x32xf32>
    %39 = arith.addf %28, %38 : vector<16x32xf32>
    %40 = vector.extract_strided_slice %26 {offsets = [1, 0], sizes = [1, 32], strides = [1, 1]} : vector<10x32xf32> to vector<1x32xf32>
    %41 = vector.extract_strided_slice %25 {offsets = [0, 1], sizes = [17, 1], strides = [1, 1]} : vector<17x10xf32> to vector<17x1xf32>
    %42 = vector.broadcast %41 : vector<17x1xf32> to vector<17x32xf32>
    %43 = vector.broadcast %40 : vector<1x32xf32> to vector<17x32xf32>
    %44 = arith.mulf %42, %43 : vector<17x32xf32>
    %45 = arith.addf %34, %44 : vector<17x32xf32>
    %46 = vector.extract_strided_slice %25 {offsets = [0, 6], sizes = [16, 1], strides = [1, 1]} : vector<17x10xf32> to vector<16x1xf32>
    %47 = vector.broadcast %46 : vector<16x1xf32> to vector<16x32xf32>
    %48 = vector.broadcast %40 : vector<1x32xf32> to vector<16x32xf32>
    %49 = arith.mulf %47, %48 : vector<16x32xf32>
    %50 = arith.addf %39, %49 : vector<16x32xf32>
    %51 = vector.extract_strided_slice %26 {offsets = [2, 0], sizes = [1, 32], strides = [1, 1]} : vector<10x32xf32> to vector<1x32xf32>
    %52 = vector.extract_strided_slice %25 {offsets = [0, 2], sizes = [17, 1], strides = [1, 1]} : vector<17x10xf32> to vector<17x1xf32>
    %53 = vector.broadcast %52 : vector<17x1xf32> to vector<17x32xf32>
    %54 = vector.broadcast %51 : vector<1x32xf32> to vector<17x32xf32>
    %55 = arith.mulf %53, %54 : vector<17x32xf32>
    %56 = arith.addf %45, %55 : vector<17x32xf32>
    %57 = vector.extract_strided_slice %25 {offsets = [0, 7], sizes = [16, 1], strides = [1, 1]} : vector<17x10xf32> to vector<16x1xf32>
    %58 = vector.broadcast %57 : vector<16x1xf32> to vector<16x32xf32>
    %59 = vector.broadcast %51 : vector<1x32xf32> to vector<16x32xf32>
    %60 = arith.mulf %58, %59 : vector<16x32xf32>
    %61 = arith.addf %50, %60 : vector<16x32xf32>
    %62 = vector.extract_strided_slice %26 {offsets = [3, 0], sizes = [1, 32], strides = [1, 1]} : vector<10x32xf32> to vector<1x32xf32>
    %63 = vector.extract_strided_slice %25 {offsets = [0, 3], sizes = [17, 1], strides = [1, 1]} : vector<17x10xf32> to vector<17x1xf32>
    %64 = vector.broadcast %63 : vector<17x1xf32> to vector<17x32xf32>
    %65 = vector.broadcast %62 : vector<1x32xf32> to vector<17x32xf32>
    %66 = arith.mulf %64, %65 : vector<17x32xf32>
    %67 = arith.addf %56, %66 : vector<17x32xf32>
    %68 = vector.extract_strided_slice %25 {offsets = [0, 8], sizes = [16, 1], strides = [1, 1]} : vector<17x10xf32> to vector<16x1xf32>
    %69 = vector.broadcast %68 : vector<16x1xf32> to vector<16x32xf32>
    %70 = vector.broadcast %62 : vector<1x32xf32> to vector<16x32xf32>
    %71 = arith.mulf %69, %70 : vector<16x32xf32>
    %72 = arith.addf %61, %71 : vector<16x32xf32>
    %73 = vector.extract_strided_slice %26 {offsets = [4, 0], sizes = [1, 32], strides = [1, 1]} : vector<10x32xf32> to vector<1x32xf32>
    %74 = vector.extract_strided_slice %25 {offsets = [0, 4], sizes = [17, 1], strides = [1, 1]} : vector<17x10xf32> to vector<17x1xf32>
    %75 = vector.broadcast %74 : vector<17x1xf32> to vector<17x32xf32>
    %76 = vector.broadcast %73 : vector<1x32xf32> to vector<17x32xf32>
    %77 = arith.mulf %75, %76 : vector<17x32xf32>
    %78 = arith.addf %67, %77 : vector<17x32xf32>
    %79 = vector.extract_strided_slice %25 {offsets = [0, 9], sizes = [16, 1], strides = [1, 1]} : vector<17x10xf32> to vector<16x1xf32>
    %80 = vector.broadcast %79 : vector<16x1xf32> to vector<16x32xf32>
    %81 = vector.broadcast %73 : vector<1x32xf32> to vector<16x32xf32>
    %82 = arith.mulf %80, %81 : vector<16x32xf32>
    %83 = arith.addf %72, %82 : vector<16x32xf32>
    %84 = vector.extract_strided_slice %26 {offsets = [5, 0], sizes = [1, 32], strides = [1, 1]} : vector<10x32xf32> to vector<1x32xf32>
    %85 = vector.extract_strided_slice %25 {offsets = [0, 5], sizes = [17, 1], strides = [1, 1]} : vector<17x10xf32> to vector<17x1xf32>
    %86 = vector.broadcast %85 : vector<17x1xf32> to vector<17x32xf32>
    %87 = vector.broadcast %84 : vector<1x32xf32> to vector<17x32xf32>
    %88 = arith.mulf %86, %87 : vector<17x32xf32>
    %89 = arith.addf %78, %88 : vector<17x32xf32>
    %90 = vector.extract_strided_slice %25 {offsets = [1, 0], sizes = [16, 1], strides = [1, 1]} : vector<17x10xf32> to vector<16x1xf32>
    %91 = vector.broadcast %90 : vector<16x1xf32> to vector<16x32xf32>
    %92 = vector.broadcast %84 : vector<1x32xf32> to vector<16x32xf32>
    %93 = arith.mulf %91, %92 : vector<16x32xf32>
    %94 = arith.addf %83, %93 : vector<16x32xf32>
    %95 = vector.extract_strided_slice %26 {offsets = [6, 0], sizes = [1, 32], strides = [1, 1]} : vector<10x32xf32> to vector<1x32xf32>
    %96 = vector.extract_strided_slice %25 {offsets = [0, 6], sizes = [17, 1], strides = [1, 1]} : vector<17x10xf32> to vector<17x1xf32>
    %97 = vector.broadcast %96 : vector<17x1xf32> to vector<17x32xf32>
    %98 = vector.broadcast %95 : vector<1x32xf32> to vector<17x32xf32>
    %99 = arith.mulf %97, %98 : vector<17x32xf32>
    %100 = arith.addf %89, %99 : vector<17x32xf32>
    %101 = vector.extract_strided_slice %25 {offsets = [1, 1], sizes = [16, 1], strides = [1, 1]} : vector<17x10xf32> to vector<16x1xf32>
    %102 = vector.broadcast %101 : vector<16x1xf32> to vector<16x32xf32>
    %103 = vector.broadcast %95 : vector<1x32xf32> to vector<16x32xf32>
    %104 = arith.mulf %102, %103 : vector<16x32xf32>
    %105 = arith.addf %94, %104 : vector<16x32xf32>
    %106 = vector.extract_strided_slice %26 {offsets = [7, 0], sizes = [1, 32], strides = [1, 1]} : vector<10x32xf32> to vector<1x32xf32>
    %107 = vector.extract_strided_slice %25 {offsets = [0, 7], sizes = [17, 1], strides = [1, 1]} : vector<17x10xf32> to vector<17x1xf32>
    %108 = vector.broadcast %107 : vector<17x1xf32> to vector<17x32xf32>
    %109 = vector.broadcast %106 : vector<1x32xf32> to vector<17x32xf32>
    %110 = arith.mulf %108, %109 : vector<17x32xf32>
    %111 = arith.addf %100, %110 : vector<17x32xf32>
    %112 = vector.extract_strided_slice %25 {offsets = [1, 2], sizes = [16, 1], strides = [1, 1]} : vector<17x10xf32> to vector<16x1xf32>
    %113 = vector.broadcast %112 : vector<16x1xf32> to vector<16x32xf32>
    %114 = vector.broadcast %106 : vector<1x32xf32> to vector<16x32xf32>
    %115 = arith.mulf %113, %114 : vector<16x32xf32>
    %116 = arith.addf %105, %115 : vector<16x32xf32>
    %117 = vector.extract_strided_slice %26 {offsets = [8, 0], sizes = [1, 32], strides = [1, 1]} : vector<10x32xf32> to vector<1x32xf32>
    %118 = vector.extract_strided_slice %25 {offsets = [0, 8], sizes = [17, 1], strides = [1, 1]} : vector<17x10xf32> to vector<17x1xf32>
    %119 = vector.broadcast %118 : vector<17x1xf32> to vector<17x32xf32>
    %120 = vector.broadcast %117 : vector<1x32xf32> to vector<17x32xf32>
    %121 = arith.mulf %119, %120 : vector<17x32xf32>
    %122 = arith.addf %111, %121 : vector<17x32xf32>
    %123 = vector.extract_strided_slice %25 {offsets = [1, 3], sizes = [16, 1], strides = [1, 1]} : vector<17x10xf32> to vector<16x1xf32>
    %124 = vector.broadcast %123 : vector<16x1xf32> to vector<16x32xf32>
    %125 = vector.broadcast %117 : vector<1x32xf32> to vector<16x32xf32>
    %126 = arith.mulf %124, %125 : vector<16x32xf32>
    %127 = arith.addf %116, %126 : vector<16x32xf32>
    %128 = vector.extract_strided_slice %26 {offsets = [9, 0], sizes = [1, 32], strides = [1, 1]} : vector<10x32xf32> to vector<1x32xf32>
    %129 = vector.extract_strided_slice %25 {offsets = [0, 9], sizes = [17, 1], strides = [1, 1]} : vector<17x10xf32> to vector<17x1xf32>
    %130 = vector.broadcast %129 : vector<17x1xf32> to vector<17x32xf32>
    %131 = vector.broadcast %128 : vector<1x32xf32> to vector<17x32xf32>
    %132 = arith.mulf %130, %131 : vector<17x32xf32>
    %133 = arith.addf %122, %132 : vector<17x32xf32>
    %134 = vector.extract_strided_slice %25 {offsets = [1, 4], sizes = [16, 1], strides = [1, 1]} : vector<17x10xf32> to vector<16x1xf32>
    %135 = vector.broadcast %134 : vector<16x1xf32> to vector<16x32xf32>
    %136 = vector.broadcast %128 : vector<1x32xf32> to vector<16x32xf32>
    %137 = arith.mulf %135, %136 : vector<16x32xf32>
    %138 = arith.addf %127, %137 : vector<16x32xf32>
    %cst_10 = arith.constant dense<0.000000e+00> : vector<32xf32>
    %139 = vector.multi_reduction <add>, %133, %cst_10 [0] : vector<17x32xf32> to vector<32xf32>
    %140 = vector.shape_cast %139 : vector<32xf32> to vector<1x32xf32>
    %cst_11 = arith.constant dense<0.000000e+00> : vector<32xf32>
    %141 = vector.multi_reduction <add>, %138, %cst_11 [0] : vector<16x32xf32> to vector<32xf32>
    %142 = vector.shape_cast %141 : vector<32xf32> to vector<1x32xf32>
    %143 = arith.addf %140, %142 : vector<1x32xf32>
    %cst_12 = arith.constant 3.300000e+01 : f32
    %144 = vector.broadcast %cst_12 : f32 to vector<1x32xf32>
    %145 = arith.divf %143, %144 : vector<1x32xf32>
    %146 = vector.broadcast %145 : vector<1x32xf32> to vector<17x32xf32>
    %147 = arith.subf %133, %146 : vector<17x32xf32>
    %148 = arith.mulf %147, %147 : vector<17x32xf32>
    %cst_13 = arith.constant dense<0.000000e+00> : vector<32xf32>
    %149 = vector.multi_reduction <add>, %148, %cst_13 [0] : vector<17x32xf32> to vector<32xf32>
    %150 = vector.shape_cast %149 : vector<32xf32> to vector<1x32xf32>
    %151 = vector.broadcast %145 : vector<1x32xf32> to vector<16x32xf32>
    %152 = arith.subf %138, %151 : vector<16x32xf32>
    %153 = arith.mulf %152, %152 : vector<16x32xf32>
    %cst_14 = arith.constant dense<0.000000e+00> : vector<32xf32>
    %154 = vector.multi_reduction <add>, %153, %cst_14 [0] : vector<16x32xf32> to vector<32xf32>
    %155 = vector.shape_cast %154 : vector<32xf32> to vector<1x32xf32>
    %156 = arith.addf %150, %155 : vector<1x32xf32>
    %cst_15 = arith.constant 3.300000e+01 : f32
    %157 = vector.broadcast %cst_15 : f32 to vector<1x32xf32>
    %158 = arith.divf %156, %157 : vector<1x32xf32>
    %cst_16 = arith.constant 9.99999974E-6 : f32
    %159 = vector.broadcast %cst_16 : f32 to vector<1x32xf32>
    %160 = arith.addf %158, %159 : vector<1x32xf32>
    %161 = math.rsqrt %160 : vector<1x32xf32>
    %c0_17 = arith.constant 0 : index
    %c0_18 = arith.constant 0 : index
    %162 = vector.load %arg3[%c0_17, %c0_18] : memref<1x32xf32, #tpu.memory_space<vmem>>, vector<1x32xf32>
    %c0_19 = arith.constant 0 : index
    %c0_20 = arith.constant 0 : index
    %163 = vector.load %arg4[%c0_19, %c0_20] : memref<1x32xf32, #tpu.memory_space<vmem>>, vector<1x32xf32>
    %164 = vector.broadcast %145 : vector<1x32xf32> to vector<17x32xf32>
    %165 = arith.subf %133, %164 : vector<17x32xf32>
    %166 = vector.broadcast %161 : vector<1x32xf32> to vector<17x32xf32>
    %167 = arith.mulf %165, %166 : vector<17x32xf32>
    %168 = vector.broadcast %162 : vector<1x32xf32> to vector<17x32xf32>
    %169 = arith.mulf %167, %168 : vector<17x32xf32>
    %170 = vector.broadcast %163 : vector<1x32xf32> to vector<17x32xf32>
    %171 = arith.addf %169, %170 : vector<17x32xf32>
    %172 = arith.mulf %171, %171 : vector<17x32xf32>
    %173 = arith.mulf %171, %172 : vector<17x32xf32>
    %cst_21 = arith.constant 4.471500e-02 : f32
    %174 = vector.broadcast %cst_21 : f32 to vector<17x32xf32>
    %175 = arith.mulf %174, %173 : vector<17x32xf32>
    %176 = arith.addf %171, %175 : vector<17x32xf32>
    %cst_22 = arith.constant 0.797884583 : f32
    %177 = vector.broadcast %cst_22 : f32 to vector<17x32xf32>
    %178 = arith.mulf %177, %176 : vector<17x32xf32>
    %179 = math.tanh %178 : vector<17x32xf32>
    %cst_23 = arith.constant 1.000000e+00 : f32
    %180 = vector.broadcast %cst_23 : f32 to vector<17x32xf32>
    %181 = arith.addf %180, %179 : vector<17x32xf32>
    %cst_24 = arith.constant 5.000000e-01 : f32
    %182 = vector.broadcast %cst_24 : f32 to vector<17x32xf32>
    %183 = arith.mulf %182, %181 : vector<17x32xf32>
    %184 = arith.mulf %171, %183 : vector<17x32xf32>
    %185 = vector.broadcast %145 : vector<1x32xf32> to vector<16x32xf32>
    %186 = arith.subf %138, %185 : vector<16x32xf32>
    %187 = vector.broadcast %161 : vector<1x32xf32> to vector<16x32xf32>
    %188 = arith.mulf %186, %187 : vector<16x32xf32>
    %189 = vector.broadcast %162 : vector<1x32xf32> to vector<16x32xf32>
    %190 = arith.mulf %188, %189 : vector<16x32xf32>
    %191 = vector.broadcast %163 : vector<1x32xf32> to vector<16x32xf32>
    %192 = arith.addf %190, %191 : vector<16x32xf32>
    %193 = arith.mulf %192, %192 : vector<16x32xf32>
    %194 = arith.mulf %192, %193 : vector<16x32xf32>
    %cst_25 = arith.constant 4.471500e-02 : f32
    %195 = vector.broadcast %cst_25 : f32 to vector<16x32xf32>
    %196 = arith.mulf %195, %194 : vector<16x32xf32>
    %197 = arith.addf %192, %196 : vector<16x32xf32>
    %cst_26 = arith.constant 0.797884583 : f32
    %198 = vector.broadcast %cst_26 : f32 to vector<16x32xf32>
    %199 = arith.mulf %198, %197 : vector<16x32xf32>
    %200 = math.tanh %199 : vector<16x32xf32>
    %cst_27 = arith.constant 1.000000e+00 : f32
    %201 = vector.broadcast %cst_27 : f32 to vector<16x32xf32>
    %202 = arith.addf %201, %200 : vector<16x32xf32>
    %cst_28 = arith.constant 5.000000e-01 : f32
    %203 = vector.broadcast %cst_28 : f32 to vector<16x32xf32>
    %204 = arith.mulf %203, %202 : vector<16x32xf32>
    %205 = arith.mulf %192, %204 : vector<16x32xf32>
    %c0_29 = arith.constant 0 : index
    %c0_30 = arith.constant 0 : index
    %c0_31 = arith.constant 0 : index
    %206 = vector.load %arg5[%c0_29, %c0_30, %c0_31] : memref<3x32x32xf32, #tpu.memory_space<vmem>>, vector<3x32x32xf32>
    %207 = vector.extract_strided_slice %184 {offsets = [0, 0], sizes = [16, 32], strides = [1, 1]} : vector<17x32xf32> to vector<16x32xf32>
    %208 = vector.extract_strided_slice %206 {offsets = [0, 0, 0], sizes = [1, 32, 32], strides = [1, 1, 1]} : vector<3x32x32xf32> to vector<1x32x32xf32>
    %209 = vector.shape_cast %208 : vector<1x32x32xf32> to vector<32x32xf32>
    %cst_32 = arith.constant dense<0.000000e+00> : vector<16x32xf32>
    %210 = tpu.matmul %207, %209, %cst_32 {dimension_numbers = #tpu.dot_dimension_numbers<[1], [0], [0], [1], [0, 0, 1, 1], [], []>} : vector<16x32xf32>, vector<32x32xf32>, vector<16x32xf32> -> vector<16x32xf32>
    %211 = vector.extract_strided_slice %206 {offsets = [1, 0, 0], sizes = [1, 32, 32], strides = [1, 1, 1]} : vector<3x32x32xf32> to vector<1x32x32xf32>
    %212 = vector.shape_cast %211 : vector<1x32x32xf32> to vector<32x32xf32>
    %cst_33 = arith.constant dense<0.000000e+00> : vector<16x32xf32>
    %213 = tpu.matmul %205, %212, %cst_33 {dimension_numbers = #tpu.dot_dimension_numbers<[1], [0], [0], [1], [0, 0, 1, 1], [], []>} : vector<16x32xf32>, vector<32x32xf32>, vector<16x32xf32> -> vector<16x32xf32>
    %214 = arith.addf %210, %213 : vector<16x32xf32>
    %215 = vector.extract_strided_slice %184 {offsets = [1, 0], sizes = [16, 32], strides = [1, 1]} : vector<17x32xf32> to vector<16x32xf32>
    %216 = vector.extract_strided_slice %206 {offsets = [2, 0, 0], sizes = [1, 32, 32], strides = [1, 1, 1]} : vector<3x32x32xf32> to vector<1x32x32xf32>
    %217 = vector.shape_cast %216 : vector<1x32x32xf32> to vector<32x32xf32>
    %cst_34 = arith.constant dense<0.000000e+00> : vector<16x32xf32>
    %218 = tpu.matmul %215, %217, %cst_34 {dimension_numbers = #tpu.dot_dimension_numbers<[1], [0], [0], [1], [0, 0, 1, 1], [], []>} : vector<16x32xf32>, vector<32x32xf32>, vector<16x32xf32> -> vector<16x32xf32>
    %219 = arith.addf %214, %218 : vector<16x32xf32>
    %220 = arith.mulf %219, %219 : vector<16x32xf32>
    %221 = arith.mulf %219, %220 : vector<16x32xf32>
    %cst_35 = arith.constant 4.471500e-02 : f32
    %222 = vector.broadcast %cst_35 : f32 to vector<16x32xf32>
    %223 = arith.mulf %222, %221 : vector<16x32xf32>
    %224 = arith.addf %219, %223 : vector<16x32xf32>
    %cst_36 = arith.constant 0.797884583 : f32
    %225 = vector.broadcast %cst_36 : f32 to vector<16x32xf32>
    %226 = arith.mulf %225, %224 : vector<16x32xf32>
    %227 = math.tanh %226 : vector<16x32xf32>
    %cst_37 = arith.constant 1.000000e+00 : f32
    %228 = vector.broadcast %cst_37 : f32 to vector<16x32xf32>
    %229 = arith.addf %228, %227 : vector<16x32xf32>
    %cst_38 = arith.constant 5.000000e-01 : f32
    %230 = vector.broadcast %cst_38 : f32 to vector<16x32xf32>
    %231 = arith.mulf %230, %229 : vector<16x32xf32>
    %232 = arith.mulf %219, %231 : vector<16x32xf32>
    %c0_39 = arith.constant 0 : index
    %c0_40 = arith.constant 0 : index
    %233 = vector.load %arg6[%c0_39, %c0_40] : memref<1x32xf32, #tpu.memory_space<vmem>>, vector<1x32xf32>
    %c0_41 = arith.constant 0 : index
    %c0_42 = arith.constant 0 : index
    %234 = vector.load %arg7[%c0_41, %c0_42] : memref<1x32xf32, #tpu.memory_space<vmem>>, vector<1x32xf32>
    %cst_43 = arith.constant dense<0.000000e+00> : vector<16xf32>
    %235 = vector.multi_reduction <add>, %232, %cst_43 [1] : vector<16x32xf32> to vector<16xf32>
    %236 = vector.shape_cast %235 : vector<16xf32> to vector<16x1xf32>
    %cst_44 = arith.constant 3.200000e+01 : f32
    %237 = vector.broadcast %cst_44 : f32 to vector<16x1xf32>
    %238 = arith.divf %236, %237 : vector<16x1xf32>
    %239 = vector.broadcast %238 : vector<16x1xf32> to vector<16x32xf32>
    %240 = arith.subf %232, %239 : vector<16x32xf32>
    %241 = arith.mulf %240, %240 : vector<16x32xf32>
    %cst_45 = arith.constant dense<0.000000e+00> : vector<16xf32>
    %242 = vector.multi_reduction <add>, %241, %cst_45 [1] : vector<16x32xf32> to vector<16xf32>
    %243 = vector.shape_cast %242 : vector<16xf32> to vector<16x1xf32>
    %cst_46 = arith.constant 3.200000e+01 : f32
    %244 = vector.broadcast %cst_46 : f32 to vector<16x1xf32>
    %245 = arith.divf %243, %244 : vector<16x1xf32>
    %246 = vector.broadcast %238 : vector<16x1xf32> to vector<16x32xf32>
    %247 = arith.subf %232, %246 : vector<16x32xf32>
    %cst_47 = arith.constant 9.99999974E-6 : f32
    %248 = vector.broadcast %cst_47 : f32 to vector<16x1xf32>
    %249 = arith.addf %245, %248 : vector<16x1xf32>
    %250 = math.rsqrt %249 : vector<16x1xf32>
    %251 = vector.broadcast %250 : vector<16x1xf32> to vector<16x32xf32>
    %252 = arith.mulf %247, %251 : vector<16x32xf32>
    %253 = vector.broadcast %233 : vector<1x32xf32> to vector<16x32xf32>
    %254 = arith.mulf %252, %253 : vector<16x32xf32>
    %255 = vector.broadcast %234 : vector<1x32xf32> to vector<16x32xf32>
    %256 = arith.addf %254, %255 : vector<16x32xf32>
    %c0_48 = arith.constant 0 : index
    %c0_49 = arith.constant 0 : index
    %257 = vector.load %arg8[%c0_48, %c0_49] : memref<32x32xf32, #tpu.memory_space<vmem>>, vector<32x32xf32>
    %cst_50 = arith.constant dense<0.000000e+00> : vector<16x32xf32>
    %258 = tpu.matmul %256, %257, %cst_50 {dimension_numbers = #tpu.dot_dimension_numbers<[1], [0], [0], [1], [0, 0, 1, 1], [], []>} : vector<16x32xf32>, vector<32x32xf32>, vector<16x32xf32> -> vector<16x32xf32>
    %c0_51 = arith.constant 0 : index
    %c0_52 = arith.constant 0 : index
    %259 = vector.load %arg9[%c0_51, %c0_52] : memref<1x32xf32, #tpu.memory_space<vmem>>, vector<1x32xf32>
    %260 = vector.broadcast %259 : vector<1x32xf32> to vector<16x32xf32>
    %261 = arith.addf %258, %260 : vector<16x32xf32>
    %c0_53 = arith.constant 0 : index
    %c0_54 = arith.constant 0 : index
    %262 = vector.load %arg10[%c0_53, %c0_54] : memref<1x32xf32, #tpu.memory_space<vmem>>, vector<1x32xf32>
    %c0_55 = arith.constant 0 : index
    %c0_56 = arith.constant 0 : index
    %263 = vector.load %arg11[%c0_55, %c0_56] : memref<1x32xf32, #tpu.memory_space<vmem>>, vector<1x32xf32>
    %cst_57 = arith.constant dense<0.000000e+00> : vector<16xf32>
    %264 = vector.multi_reduction <add>, %261, %cst_57 [1] : vector<16x32xf32> to vector<16xf32>
    %265 = vector.shape_cast %264 : vector<16xf32> to vector<16x1xf32>
    %cst_58 = arith.constant 3.200000e+01 : f32
    %266 = vector.broadcast %cst_58 : f32 to vector<16x1xf32>
    %267 = arith.divf %265, %266 : vector<16x1xf32>
    %268 = vector.broadcast %267 : vector<16x1xf32> to vector<16x32xf32>
    %269 = arith.subf %261, %268 : vector<16x32xf32>
    %270 = arith.mulf %269, %269 : vector<16x32xf32>
    %cst_59 = arith.constant dense<0.000000e+00> : vector<16xf32>
    %271 = vector.multi_reduction <add>, %270, %cst_59 [1] : vector<16x32xf32> to vector<16xf32>
    %272 = vector.shape_cast %271 : vector<16xf32> to vector<16x1xf32>
    %cst_60 = arith.constant 3.200000e+01 : f32
    %273 = vector.broadcast %cst_60 : f32 to vector<16x1xf32>
    %274 = arith.divf %272, %273 : vector<16x1xf32>
    %275 = vector.broadcast %267 : vector<16x1xf32> to vector<16x32xf32>
    %276 = arith.subf %261, %275 : vector<16x32xf32>
    %cst_61 = arith.constant 9.99999974E-6 : f32
    %277 = vector.broadcast %cst_61 : f32 to vector<16x1xf32>
    %278 = arith.addf %274, %277 : vector<16x1xf32>
    %279 = math.rsqrt %278 : vector<16x1xf32>
    %280 = vector.broadcast %279 : vector<16x1xf32> to vector<16x32xf32>
    %281 = arith.mulf %276, %280 : vector<16x32xf32>
    %282 = vector.broadcast %262 : vector<1x32xf32> to vector<16x32xf32>
    %283 = arith.mulf %281, %282 : vector<16x32xf32>
    %284 = vector.broadcast %263 : vector<1x32xf32> to vector<16x32xf32>
    %285 = arith.addf %283, %284 : vector<16x32xf32>
    %c0_62 = arith.constant 0 : index
    %c0_63 = arith.constant 0 : index
    %c0_64 = arith.constant 0 : index
    %286 = vector.load %arg12[%c0_62, %c0_63, %c0_64] : memref<2x32x96xf32, #tpu.memory_space<vmem>>, vector<1x32x96xf32>
    %287 = vector.shape_cast %286 : vector<1x32x96xf32> to vector<32x96xf32>
    %cst_65 = arith.constant dense<0.000000e+00> : vector<16x96xf32>
    %288 = tpu.matmul %285, %287, %cst_65 {dimension_numbers = #tpu.dot_dimension_numbers<[1], [0], [0], [1], [0, 0, 1, 1], [], []>} : vector<16x32xf32>, vector<32x96xf32>, vector<16x96xf32> -> vector<16x96xf32>
    %c0_66 = arith.constant 0 : index
    %c0_67 = arith.constant 0 : index
    %c0_68 = arith.constant 0 : index
    %289 = vector.load %arg13[%c0_66, %c0_67, %c0_68] : memref<2x1x96xf32, #tpu.memory_space<vmem>>, vector<1x1x96xf32>
    %290 = vector.shape_cast %289 : vector<1x1x96xf32> to vector<1x96xf32>
    %291 = vector.broadcast %290 : vector<1x96xf32> to vector<16x96xf32>
    %292 = arith.addf %288, %291 : vector<16x96xf32>
    %293 = vector.extract_strided_slice %292 {offsets = [0, 0], sizes = [16, 32], strides = [1, 1]} : vector<16x96xf32> to vector<16x32xf32>
    %294 = vector.extract_strided_slice %292 {offsets = [0, 32], sizes = [16, 32], strides = [1, 1]} : vector<16x96xf32> to vector<16x32xf32>
    %295 = vector.extract_strided_slice %292 {offsets = [0, 64], sizes = [16, 32], strides = [1, 1]} : vector<16x96xf32> to vector<16x32xf32>
    %296 = vector.extract_strided_slice %293 {offsets = [0, 0], sizes = [16, 8], strides = [1, 1]} : vector<16x32xf32> to vector<16x8xf32>
    %cst_69 = arith.constant 0.353553385 : f32
    %297 = vector.broadcast %cst_69 : f32 to vector<16x8xf32>
    %298 = arith.mulf %296, %297 : vector<16x8xf32>
    %299 = vector.extract_strided_slice %294 {offsets = [0, 0], sizes = [16, 8], strides = [1, 1]} : vector<16x32xf32> to vector<16x8xf32>
    %cst_70 = arith.constant dense<0.000000e+00> : vector<16x16xf32>
    %300 = tpu.matmul %298, %299, %cst_70 {dimension_numbers = #tpu.dot_dimension_numbers<[1], [1], [0], [0], [0, 0, 1, 0], [], []>} : vector<16x8xf32>, vector<16x8xf32>, vector<16x16xf32> -> vector<16x16xf32>
    %cst_71 = arith.constant dense<0xFF800000> : vector<16xf32>
    %301 = vector.multi_reduction <maximumf>, %300, %cst_71 [1] : vector<16x16xf32> to vector<16xf32>
    %302 = vector.shape_cast %301 : vector<16xf32> to vector<16x1xf32>
    %303 = vector.broadcast %302 : vector<16x1xf32> to vector<16x16xf32>
    %304 = arith.subf %300, %303 : vector<16x16xf32>
    %305 = math.exp %304 : vector<16x16xf32>
    %cst_72 = arith.constant dense<0.000000e+00> : vector<16xf32>
    %306 = vector.multi_reduction <add>, %305, %cst_72 [1] : vector<16x16xf32> to vector<16xf32>
    %307 = vector.shape_cast %306 : vector<16xf32> to vector<16x1xf32>
    %308 = tpu.reciprocal %307 {approx = true} : vector<16x1xf32> -> vector<16x1xf32>
    %309 = vector.broadcast %308 : vector<16x1xf32> to vector<16x16xf32>
    %310 = arith.mulf %305, %309 : vector<16x16xf32>
    %311 = vector.extract_strided_slice %295 {offsets = [0, 0], sizes = [16, 8], strides = [1, 1]} : vector<16x32xf32> to vector<16x8xf32>
    %cst_73 = arith.constant dense<0.000000e+00> : vector<16x8xf32>
    %312 = tpu.matmul %310, %311, %cst_73 {dimension_numbers = #tpu.dot_dimension_numbers<[1], [0], [0], [1], [0, 0, 1, 1], [], []>} : vector<16x16xf32>, vector<16x8xf32>, vector<16x8xf32> -> vector<16x8xf32>
    %313 = vector.extract_strided_slice %293 {offsets = [0, 8], sizes = [16, 8], strides = [1, 1]} : vector<16x32xf32> to vector<16x8xf32>
    %cst_74 = arith.constant 0.353553385 : f32
    %314 = vector.broadcast %cst_74 : f32 to vector<16x8xf32>
    %315 = arith.mulf %313, %314 : vector<16x8xf32>
    %316 = vector.extract_strided_slice %294 {offsets = [0, 8], sizes = [16, 8], strides = [1, 1]} : vector<16x32xf32> to vector<16x8xf32>
    %cst_75 = arith.constant dense<0.000000e+00> : vector<16x16xf32>
    %317 = tpu.matmul %315, %316, %cst_75 {dimension_numbers = #tpu.dot_dimension_numbers<[1], [1], [0], [0], [0, 0, 1, 0], [], []>} : vector<16x8xf32>, vector<16x8xf32>, vector<16x16xf32> -> vector<16x16xf32>
    %cst_76 = arith.constant dense<0xFF800000> : vector<16xf32>
    %318 = vector.multi_reduction <maximumf>, %317, %cst_76 [1] : vector<16x16xf32> to vector<16xf32>
    %319 = vector.shape_cast %318 : vector<16xf32> to vector<16x1xf32>
    %320 = vector.broadcast %319 : vector<16x1xf32> to vector<16x16xf32>
    %321 = arith.subf %317, %320 : vector<16x16xf32>
    %322 = math.exp %321 : vector<16x16xf32>
    %cst_77 = arith.constant dense<0.000000e+00> : vector<16xf32>
    %323 = vector.multi_reduction <add>, %322, %cst_77 [1] : vector<16x16xf32> to vector<16xf32>
    %324 = vector.shape_cast %323 : vector<16xf32> to vector<16x1xf32>
    %325 = tpu.reciprocal %324 {approx = true} : vector<16x1xf32> -> vector<16x1xf32>
    %326 = vector.broadcast %325 : vector<16x1xf32> to vector<16x16xf32>
    %327 = arith.mulf %322, %326 : vector<16x16xf32>
    %328 = vector.extract_strided_slice %295 {offsets = [0, 8], sizes = [16, 8], strides = [1, 1]} : vector<16x32xf32> to vector<16x8xf32>
    %cst_78 = arith.constant dense<0.000000e+00> : vector<16x8xf32>
    %329 = tpu.matmul %327, %328, %cst_78 {dimension_numbers = #tpu.dot_dimension_numbers<[1], [0], [0], [1], [0, 0, 1, 1], [], []>} : vector<16x16xf32>, vector<16x8xf32>, vector<16x8xf32> -> vector<16x8xf32>
    %330 = vector.extract_strided_slice %293 {offsets = [0, 16], sizes = [16, 8], strides = [1, 1]} : vector<16x32xf32> to vector<16x8xf32>
    %cst_79 = arith.constant 0.353553385 : f32
    %331 = vector.broadcast %cst_79 : f32 to vector<16x8xf32>
    %332 = arith.mulf %330, %331 : vector<16x8xf32>
    %333 = vector.extract_strided_slice %294 {offsets = [0, 16], sizes = [16, 8], strides = [1, 1]} : vector<16x32xf32> to vector<16x8xf32>
    %cst_80 = arith.constant dense<0.000000e+00> : vector<16x16xf32>
    %334 = tpu.matmul %332, %333, %cst_80 {dimension_numbers = #tpu.dot_dimension_numbers<[1], [1], [0], [0], [0, 0, 1, 0], [], []>} : vector<16x8xf32>, vector<16x8xf32>, vector<16x16xf32> -> vector<16x16xf32>
    %cst_81 = arith.constant dense<0xFF800000> : vector<16xf32>
    %335 = vector.multi_reduction <maximumf>, %334, %cst_81 [1] : vector<16x16xf32> to vector<16xf32>
    %336 = vector.shape_cast %335 : vector<16xf32> to vector<16x1xf32>
    %337 = vector.broadcast %336 : vector<16x1xf32> to vector<16x16xf32>
    %338 = arith.subf %334, %337 : vector<16x16xf32>
    %339 = math.exp %338 : vector<16x16xf32>
    %cst_82 = arith.constant dense<0.000000e+00> : vector<16xf32>
    %340 = vector.multi_reduction <add>, %339, %cst_82 [1] : vector<16x16xf32> to vector<16xf32>
    %341 = vector.shape_cast %340 : vector<16xf32> to vector<16x1xf32>
    %342 = tpu.reciprocal %341 {approx = true} : vector<16x1xf32> -> vector<16x1xf32>
    %343 = vector.broadcast %342 : vector<16x1xf32> to vector<16x16xf32>
    %344 = arith.mulf %339, %343 : vector<16x16xf32>
    %345 = vector.extract_strided_slice %295 {offsets = [0, 16], sizes = [16, 8], strides = [1, 1]} : vector<16x32xf32> to vector<16x8xf32>
    %cst_83 = arith.constant dense<0.000000e+00> : vector<16x8xf32>
    %346 = tpu.matmul %344, %345, %cst_83 {dimension_numbers = #tpu.dot_dimension_numbers<[1], [0], [0], [1], [0, 0, 1, 1], [], []>} : vector<16x16xf32>, vector<16x8xf32>, vector<16x8xf32> -> vector<16x8xf32>
    %347 = vector.extract_strided_slice %293 {offsets = [0, 24], sizes = [16, 8], strides = [1, 1]} : vector<16x32xf32> to vector<16x8xf32>
    %cst_84 = arith.constant 0.353553385 : f32
    %348 = vector.broadcast %cst_84 : f32 to vector<16x8xf32>
    %349 = arith.mulf %347, %348 : vector<16x8xf32>
    %350 = vector.extract_strided_slice %294 {offsets = [0, 24], sizes = [16, 8], strides = [1, 1]} : vector<16x32xf32> to vector<16x8xf32>
    %cst_85 = arith.constant dense<0.000000e+00> : vector<16x16xf32>
    %351 = tpu.matmul %349, %350, %cst_85 {dimension_numbers = #tpu.dot_dimension_numbers<[1], [1], [0], [0], [0, 0, 1, 0], [], []>} : vector<16x8xf32>, vector<16x8xf32>, vector<16x16xf32> -> vector<16x16xf32>
    %cst_86 = arith.constant dense<0xFF800000> : vector<16xf32>
    %352 = vector.multi_reduction <maximumf>, %351, %cst_86 [1] : vector<16x16xf32> to vector<16xf32>
    %353 = vector.shape_cast %352 : vector<16xf32> to vector<16x1xf32>
    %354 = vector.broadcast %353 : vector<16x1xf32> to vector<16x16xf32>
    %355 = arith.subf %351, %354 : vector<16x16xf32>
    %356 = math.exp %355 : vector<16x16xf32>
    %cst_87 = arith.constant dense<0.000000e+00> : vector<16xf32>
    %357 = vector.multi_reduction <add>, %356, %cst_87 [1] : vector<16x16xf32> to vector<16xf32>
    %358 = vector.shape_cast %357 : vector<16xf32> to vector<16x1xf32>
    %359 = tpu.reciprocal %358 {approx = true} : vector<16x1xf32> -> vector<16x1xf32>
    %360 = vector.broadcast %359 : vector<16x1xf32> to vector<16x16xf32>
    %361 = arith.mulf %356, %360 : vector<16x16xf32>
    %362 = vector.extract_strided_slice %295 {offsets = [0, 24], sizes = [16, 8], strides = [1, 1]} : vector<16x32xf32> to vector<16x8xf32>
    %cst_88 = arith.constant dense<0.000000e+00> : vector<16x8xf32>
    %363 = tpu.matmul %361, %362, %cst_88 {dimension_numbers = #tpu.dot_dimension_numbers<[1], [0], [0], [1], [0, 0, 1, 1], [], []>} : vector<16x16xf32>, vector<16x8xf32>, vector<16x8xf32> -> vector<16x8xf32>
    %364 = tpu.concatenate %312, %329, %346, %363 in 1 : vector<16x8xf32>, vector<16x8xf32>, vector<16x8xf32>, vector<16x8xf32> -> vector<16x32xf32>
    %c0_89 = arith.constant 0 : index
    %c0_90 = arith.constant 0 : index
    %c0_91 = arith.constant 0 : index
    %365 = vector.load %arg14[%c0_89, %c0_90, %c0_91] : memref<2x32x32xf32, #tpu.memory_space<vmem>>, vector<1x32x32xf32>
    %366 = vector.shape_cast %365 : vector<1x32x32xf32> to vector<32x32xf32>
    %cst_92 = arith.constant dense<0.000000e+00> : vector<16x32xf32>
    %367 = tpu.matmul %364, %366, %cst_92 {dimension_numbers = #tpu.dot_dimension_numbers<[1], [0], [0], [1], [0, 0, 1, 1], [], []>} : vector<16x32xf32>, vector<32x32xf32>, vector<16x32xf32> -> vector<16x32xf32>
    %c0_93 = arith.constant 0 : index
    %c0_94 = arith.constant 0 : index
    %c0_95 = arith.constant 0 : index
    %368 = vector.load %arg15[%c0_93, %c0_94, %c0_95] : memref<2x1x32xf32, #tpu.memory_space<vmem>>, vector<1x1x32xf32>
    %369 = vector.shape_cast %368 : vector<1x1x32xf32> to vector<1x32xf32>
    %370 = vector.broadcast %369 : vector<1x32xf32> to vector<16x32xf32>
    %371 = arith.addf %367, %370 : vector<16x32xf32>
    %372 = arith.addf %285, %371 : vector<16x32xf32>
    %c0_96 = arith.constant 0 : index
    %c0_97 = arith.constant 0 : index
    %c0_98 = arith.constant 0 : index
    %373 = vector.load %arg16[%c0_96, %c0_97, %c0_98] : memref<2x1x32xf32, #tpu.memory_space<vmem>>, vector<1x1x32xf32>
    %374 = vector.shape_cast %373 : vector<1x1x32xf32> to vector<1x32xf32>
    %c0_99 = arith.constant 0 : index
    %c0_100 = arith.constant 0 : index
    %c0_101 = arith.constant 0 : index
    %375 = vector.load %arg17[%c0_99, %c0_100, %c0_101] : memref<2x1x32xf32, #tpu.memory_space<vmem>>, vector<1x1x32xf32>
    %376 = vector.shape_cast %375 : vector<1x1x32xf32> to vector<1x32xf32>
    %cst_102 = arith.constant dense<0.000000e+00> : vector<16xf32>
    %377 = vector.multi_reduction <add>, %372, %cst_102 [1] : vector<16x32xf32> to vector<16xf32>
    %378 = vector.shape_cast %377 : vector<16xf32> to vector<16x1xf32>
    %cst_103 = arith.constant 3.200000e+01 : f32
    %379 = vector.broadcast %cst_103 : f32 to vector<16x1xf32>
    %380 = arith.divf %378, %379 : vector<16x1xf32>
    %381 = vector.broadcast %380 : vector<16x1xf32> to vector<16x32xf32>
    %382 = arith.subf %372, %381 : vector<16x32xf32>
    %383 = arith.mulf %382, %382 : vector<16x32xf32>
    %cst_104 = arith.constant dense<0.000000e+00> : vector<16xf32>
    %384 = vector.multi_reduction <add>, %383, %cst_104 [1] : vector<16x32xf32> to vector<16xf32>
    %385 = vector.shape_cast %384 : vector<16xf32> to vector<16x1xf32>
    %cst_105 = arith.constant 3.200000e+01 : f32
    %386 = vector.broadcast %cst_105 : f32 to vector<16x1xf32>
    %387 = arith.divf %385, %386 : vector<16x1xf32>
    %388 = vector.broadcast %380 : vector<16x1xf32> to vector<16x32xf32>
    %389 = arith.subf %372, %388 : vector<16x32xf32>
    %cst_106 = arith.constant 9.99999974E-6 : f32
    %390 = vector.broadcast %cst_106 : f32 to vector<16x1xf32>
    %391 = arith.addf %387, %390 : vector<16x1xf32>
    %392 = math.rsqrt %391 : vector<16x1xf32>
    %393 = vector.broadcast %392 : vector<16x1xf32> to vector<16x32xf32>
    %394 = arith.mulf %389, %393 : vector<16x32xf32>
    %395 = vector.broadcast %374 : vector<1x32xf32> to vector<16x32xf32>
    %396 = arith.mulf %394, %395 : vector<16x32xf32>
    %397 = vector.broadcast %376 : vector<1x32xf32> to vector<16x32xf32>
    %398 = arith.addf %396, %397 : vector<16x32xf32>
    %c0_107 = arith.constant 0 : index
    %c0_108 = arith.constant 0 : index
    %c0_109 = arith.constant 0 : index
    %399 = vector.load %arg18[%c0_107, %c0_108, %c0_109] : memref<2x32x64xf32, #tpu.memory_space<vmem>>, vector<1x32x64xf32>
    %400 = vector.shape_cast %399 : vector<1x32x64xf32> to vector<32x64xf32>
    %cst_110 = arith.constant dense<0.000000e+00> : vector<16x64xf32>
    %401 = tpu.matmul %398, %400, %cst_110 {dimension_numbers = #tpu.dot_dimension_numbers<[1], [0], [0], [1], [0, 0, 1, 1], [], []>} : vector<16x32xf32>, vector<32x64xf32>, vector<16x64xf32> -> vector<16x64xf32>
    %c0_111 = arith.constant 0 : index
    %c0_112 = arith.constant 0 : index
    %c0_113 = arith.constant 0 : index
    %402 = vector.load %arg19[%c0_111, %c0_112, %c0_113] : memref<2x1x64xf32, #tpu.memory_space<vmem>>, vector<1x1x64xf32>
    %403 = vector.shape_cast %402 : vector<1x1x64xf32> to vector<1x64xf32>
    %404 = vector.broadcast %403 : vector<1x64xf32> to vector<16x64xf32>
    %405 = arith.addf %401, %404 : vector<16x64xf32>
    %406 = arith.mulf %405, %405 : vector<16x64xf32>
    %407 = arith.mulf %405, %406 : vector<16x64xf32>
    %cst_114 = arith.constant 4.471500e-02 : f32
    %408 = vector.broadcast %cst_114 : f32 to vector<16x64xf32>
    %409 = arith.mulf %408, %407 : vector<16x64xf32>
    %410 = arith.addf %405, %409 : vector<16x64xf32>
    %cst_115 = arith.constant 0.797884583 : f32
    %411 = vector.broadcast %cst_115 : f32 to vector<16x64xf32>
    %412 = arith.mulf %411, %410 : vector<16x64xf32>
    %413 = math.tanh %412 : vector<16x64xf32>
    %cst_116 = arith.constant 1.000000e+00 : f32
    %414 = vector.broadcast %cst_116 : f32 to vector<16x64xf32>
    %415 = arith.addf %414, %413 : vector<16x64xf32>
    %cst_117 = arith.constant 5.000000e-01 : f32
    %416 = vector.broadcast %cst_117 : f32 to vector<16x64xf32>
    %417 = arith.mulf %416, %415 : vector<16x64xf32>
    %418 = arith.mulf %405, %417 : vector<16x64xf32>
    %c0_118 = arith.constant 0 : index
    %c0_119 = arith.constant 0 : index
    %c0_120 = arith.constant 0 : index
    %419 = vector.load %arg20[%c0_118, %c0_119, %c0_120] : memref<2x64x32xf32, #tpu.memory_space<vmem>>, vector<1x64x32xf32>
    %420 = vector.shape_cast %419 : vector<1x64x32xf32> to vector<64x32xf32>
    %cst_121 = arith.constant dense<0.000000e+00> : vector<16x32xf32>
    %421 = tpu.matmul %418, %420, %cst_121 {dimension_numbers = #tpu.dot_dimension_numbers<[1], [0], [0], [1], [0, 0, 1, 1], [], []>} : vector<16x64xf32>, vector<64x32xf32>, vector<16x32xf32> -> vector<16x32xf32>
    %c0_122 = arith.constant 0 : index
    %c0_123 = arith.constant 0 : index
    %c0_124 = arith.constant 0 : index
    %422 = vector.load %arg21[%c0_122, %c0_123, %c0_124] : memref<2x1x32xf32, #tpu.memory_space<vmem>>, vector<1x1x32xf32>
    %423 = vector.shape_cast %422 : vector<1x1x32xf32> to vector<1x32xf32>
    %424 = vector.broadcast %423 : vector<1x32xf32> to vector<16x32xf32>
    %425 = arith.addf %421, %424 : vector<16x32xf32>
    %426 = arith.addf %398, %425 : vector<16x32xf32>
    %c0_125 = arith.constant 0 : index
    %c0_126 = arith.constant 0 : index
    %c0_127 = arith.constant 0 : index
    %427 = vector.load %arg22[%c0_125, %c0_126, %c0_127] : memref<2x1x32xf32, #tpu.memory_space<vmem>>, vector<1x1x32xf32>
    %428 = vector.shape_cast %427 : vector<1x1x32xf32> to vector<1x32xf32>
    %c0_128 = arith.constant 0 : index
    %c0_129 = arith.constant 0 : index
    %c0_130 = arith.constant 0 : index
    %429 = vector.load %arg23[%c0_128, %c0_129, %c0_130] : memref<2x1x32xf32, #tpu.memory_space<vmem>>, vector<1x1x32xf32>
    %430 = vector.shape_cast %429 : vector<1x1x32xf32> to vector<1x32xf32>
    %cst_131 = arith.constant dense<0.000000e+00> : vector<16xf32>
    %431 = vector.multi_reduction <add>, %426, %cst_131 [1] : vector<16x32xf32> to vector<16xf32>
    %432 = vector.shape_cast %431 : vector<16xf32> to vector<16x1xf32>
    %cst_132 = arith.constant 3.200000e+01 : f32
    %433 = vector.broadcast %cst_132 : f32 to vector<16x1xf32>
    %434 = arith.divf %432, %433 : vector<16x1xf32>
    %435 = vector.broadcast %434 : vector<16x1xf32> to vector<16x32xf32>
    %436 = arith.subf %426, %435 : vector<16x32xf32>
    %437 = arith.mulf %436, %436 : vector<16x32xf32>
    %cst_133 = arith.constant dense<0.000000e+00> : vector<16xf32>
    %438 = vector.multi_reduction <add>, %437, %cst_133 [1] : vector<16x32xf32> to vector<16xf32>
    %439 = vector.shape_cast %438 : vector<16xf32> to vector<16x1xf32>
    %cst_134 = arith.constant 3.200000e+01 : f32
    %440 = vector.broadcast %cst_134 : f32 to vector<16x1xf32>
    %441 = arith.divf %439, %440 : vector<16x1xf32>
    %442 = vector.broadcast %434 : vector<16x1xf32> to vector<16x32xf32>
    %443 = arith.subf %426, %442 : vector<16x32xf32>
    %cst_135 = arith.constant 9.99999974E-6 : f32
    %444 = vector.broadcast %cst_135 : f32 to vector<16x1xf32>
    %445 = arith.addf %441, %444 : vector<16x1xf32>
    %446 = math.rsqrt %445 : vector<16x1xf32>
    %447 = vector.broadcast %446 : vector<16x1xf32> to vector<16x32xf32>
    %448 = arith.mulf %443, %447 : vector<16x32xf32>
    %449 = vector.broadcast %428 : vector<1x32xf32> to vector<16x32xf32>
    %450 = arith.mulf %448, %449 : vector<16x32xf32>
    %451 = vector.broadcast %430 : vector<1x32xf32> to vector<16x32xf32>
    %452 = arith.addf %450, %451 : vector<16x32xf32>
    %c1 = arith.constant 1 : index
    %c0_136 = arith.constant 0 : index
    %c0_137 = arith.constant 0 : index
    %453 = vector.load %arg12[%c1, %c0_136, %c0_137] : memref<2x32x96xf32, #tpu.memory_space<vmem>>, vector<1x32x96xf32>
    %454 = vector.shape_cast %453 : vector<1x32x96xf32> to vector<32x96xf32>
    %cst_138 = arith.constant dense<0.000000e+00> : vector<16x96xf32>
    %455 = tpu.matmul %452, %454, %cst_138 {dimension_numbers = #tpu.dot_dimension_numbers<[1], [0], [0], [1], [0, 0, 1, 1], [], []>} : vector<16x32xf32>, vector<32x96xf32>, vector<16x96xf32> -> vector<16x96xf32>
    %c1_139 = arith.constant 1 : index
    %c0_140 = arith.constant 0 : index
    %c0_141 = arith.constant 0 : index
    %456 = vector.load %arg13[%c1_139, %c0_140, %c0_141] : memref<2x1x96xf32, #tpu.memory_space<vmem>>, vector<1x1x96xf32>
    %457 = vector.shape_cast %456 : vector<1x1x96xf32> to vector<1x96xf32>
    %458 = vector.broadcast %457 : vector<1x96xf32> to vector<16x96xf32>
    %459 = arith.addf %455, %458 : vector<16x96xf32>
    %460 = vector.extract_strided_slice %459 {offsets = [0, 0], sizes = [16, 32], strides = [1, 1]} : vector<16x96xf32> to vector<16x32xf32>
    %461 = vector.extract_strided_slice %459 {offsets = [0, 32], sizes = [16, 32], strides = [1, 1]} : vector<16x96xf32> to vector<16x32xf32>
    %462 = vector.extract_strided_slice %459 {offsets = [0, 64], sizes = [16, 32], strides = [1, 1]} : vector<16x96xf32> to vector<16x32xf32>
    %463 = vector.extract_strided_slice %460 {offsets = [0, 0], sizes = [16, 8], strides = [1, 1]} : vector<16x32xf32> to vector<16x8xf32>
    %cst_142 = arith.constant 0.353553385 : f32
    %464 = vector.broadcast %cst_142 : f32 to vector<16x8xf32>
    %465 = arith.mulf %463, %464 : vector<16x8xf32>
    %466 = vector.extract_strided_slice %461 {offsets = [0, 0], sizes = [16, 8], strides = [1, 1]} : vector<16x32xf32> to vector<16x8xf32>
    %cst_143 = arith.constant dense<0.000000e+00> : vector<16x16xf32>
    %467 = tpu.matmul %465, %466, %cst_143 {dimension_numbers = #tpu.dot_dimension_numbers<[1], [1], [0], [0], [0, 0, 1, 0], [], []>} : vector<16x8xf32>, vector<16x8xf32>, vector<16x16xf32> -> vector<16x16xf32>
    %cst_144 = arith.constant dense<0xFF800000> : vector<16xf32>
    %468 = vector.multi_reduction <maximumf>, %467, %cst_144 [1] : vector<16x16xf32> to vector<16xf32>
    %469 = vector.shape_cast %468 : vector<16xf32> to vector<16x1xf32>
    %470 = vector.broadcast %469 : vector<16x1xf32> to vector<16x16xf32>
    %471 = arith.subf %467, %470 : vector<16x16xf32>
    %472 = math.exp %471 : vector<16x16xf32>
    %cst_145 = arith.constant dense<0.000000e+00> : vector<16xf32>
    %473 = vector.multi_reduction <add>, %472, %cst_145 [1] : vector<16x16xf32> to vector<16xf32>
    %474 = vector.shape_cast %473 : vector<16xf32> to vector<16x1xf32>
    %475 = tpu.reciprocal %474 {approx = true} : vector<16x1xf32> -> vector<16x1xf32>
    %476 = vector.broadcast %475 : vector<16x1xf32> to vector<16x16xf32>
    %477 = arith.mulf %472, %476 : vector<16x16xf32>
    %478 = vector.extract_strided_slice %462 {offsets = [0, 0], sizes = [16, 8], strides = [1, 1]} : vector<16x32xf32> to vector<16x8xf32>
    %cst_146 = arith.constant dense<0.000000e+00> : vector<16x8xf32>
    %479 = tpu.matmul %477, %478, %cst_146 {dimension_numbers = #tpu.dot_dimension_numbers<[1], [0], [0], [1], [0, 0, 1, 1], [], []>} : vector<16x16xf32>, vector<16x8xf32>, vector<16x8xf32> -> vector<16x8xf32>
    %480 = vector.extract_strided_slice %460 {offsets = [0, 8], sizes = [16, 8], strides = [1, 1]} : vector<16x32xf32> to vector<16x8xf32>
    %cst_147 = arith.constant 0.353553385 : f32
    %481 = vector.broadcast %cst_147 : f32 to vector<16x8xf32>
    %482 = arith.mulf %480, %481 : vector<16x8xf32>
    %483 = vector.extract_strided_slice %461 {offsets = [0, 8], sizes = [16, 8], strides = [1, 1]} : vector<16x32xf32> to vector<16x8xf32>
    %cst_148 = arith.constant dense<0.000000e+00> : vector<16x16xf32>
    %484 = tpu.matmul %482, %483, %cst_148 {dimension_numbers = #tpu.dot_dimension_numbers<[1], [1], [0], [0], [0, 0, 1, 0], [], []>} : vector<16x8xf32>, vector<16x8xf32>, vector<16x16xf32> -> vector<16x16xf32>
    %cst_149 = arith.constant dense<0xFF800000> : vector<16xf32>
    %485 = vector.multi_reduction <maximumf>, %484, %cst_149 [1] : vector<16x16xf32> to vector<16xf32>
    %486 = vector.shape_cast %485 : vector<16xf32> to vector<16x1xf32>
    %487 = vector.broadcast %486 : vector<16x1xf32> to vector<16x16xf32>
    %488 = arith.subf %484, %487 : vector<16x16xf32>
    %489 = math.exp %488 : vector<16x16xf32>
    %cst_150 = arith.constant dense<0.000000e+00> : vector<16xf32>
    %490 = vector.multi_reduction <add>, %489, %cst_150 [1] : vector<16x16xf32> to vector<16xf32>
    %491 = vector.shape_cast %490 : vector<16xf32> to vector<16x1xf32>
    %492 = tpu.reciprocal %491 {approx = true} : vector<16x1xf32> -> vector<16x1xf32>
    %493 = vector.broadcast %492 : vector<16x1xf32> to vector<16x16xf32>
    %494 = arith.mulf %489, %493 : vector<16x16xf32>
    %495 = vector.extract_strided_slice %462 {offsets = [0, 8], sizes = [16, 8], strides = [1, 1]} : vector<16x32xf32> to vector<16x8xf32>
    %cst_151 = arith.constant dense<0.000000e+00> : vector<16x8xf32>
    %496 = tpu.matmul %494, %495, %cst_151 {dimension_numbers = #tpu.dot_dimension_numbers<[1], [0], [0], [1], [0, 0, 1, 1], [], []>} : vector<16x16xf32>, vector<16x8xf32>, vector<16x8xf32> -> vector<16x8xf32>
    %497 = vector.extract_strided_slice %460 {offsets = [0, 16], sizes = [16, 8], strides = [1, 1]} : vector<16x32xf32> to vector<16x8xf32>
    %cst_152 = arith.constant 0.353553385 : f32
    %498 = vector.broadcast %cst_152 : f32 to vector<16x8xf32>
    %499 = arith.mulf %497, %498 : vector<16x8xf32>
    %500 = vector.extract_strided_slice %461 {offsets = [0, 16], sizes = [16, 8], strides = [1, 1]} : vector<16x32xf32> to vector<16x8xf32>
    %cst_153 = arith.constant dense<0.000000e+00> : vector<16x16xf32>
    %501 = tpu.matmul %499, %500, %cst_153 {dimension_numbers = #tpu.dot_dimension_numbers<[1], [1], [0], [0], [0, 0, 1, 0], [], []>} : vector<16x8xf32>, vector<16x8xf32>, vector<16x16xf32> -> vector<16x16xf32>
    %cst_154 = arith.constant dense<0xFF800000> : vector<16xf32>
    %502 = vector.multi_reduction <maximumf>, %501, %cst_154 [1] : vector<16x16xf32> to vector<16xf32>
    %503 = vector.shape_cast %502 : vector<16xf32> to vector<16x1xf32>
    %504 = vector.broadcast %503 : vector<16x1xf32> to vector<16x16xf32>
    %505 = arith.subf %501, %504 : vector<16x16xf32>
    %506 = math.exp %505 : vector<16x16xf32>
    %cst_155 = arith.constant dense<0.000000e+00> : vector<16xf32>
    %507 = vector.multi_reduction <add>, %506, %cst_155 [1] : vector<16x16xf32> to vector<16xf32>
    %508 = vector.shape_cast %507 : vector<16xf32> to vector<16x1xf32>
    %509 = tpu.reciprocal %508 {approx = true} : vector<16x1xf32> -> vector<16x1xf32>
    %510 = vector.broadcast %509 : vector<16x1xf32> to vector<16x16xf32>
    %511 = arith.mulf %506, %510 : vector<16x16xf32>
    %512 = vector.extract_strided_slice %462 {offsets = [0, 16], sizes = [16, 8], strides = [1, 1]} : vector<16x32xf32> to vector<16x8xf32>
    %cst_156 = arith.constant dense<0.000000e+00> : vector<16x8xf32>
    %513 = tpu.matmul %511, %512, %cst_156 {dimension_numbers = #tpu.dot_dimension_numbers<[1], [0], [0], [1], [0, 0, 1, 1], [], []>} : vector<16x16xf32>, vector<16x8xf32>, vector<16x8xf32> -> vector<16x8xf32>
    %514 = vector.extract_strided_slice %460 {offsets = [0, 24], sizes = [16, 8], strides = [1, 1]} : vector<16x32xf32> to vector<16x8xf32>
    %cst_157 = arith.constant 0.353553385 : f32
    %515 = vector.broadcast %cst_157 : f32 to vector<16x8xf32>
    %516 = arith.mulf %514, %515 : vector<16x8xf32>
    %517 = vector.extract_strided_slice %461 {offsets = [0, 24], sizes = [16, 8], strides = [1, 1]} : vector<16x32xf32> to vector<16x8xf32>
    %cst_158 = arith.constant dense<0.000000e+00> : vector<16x16xf32>
    %518 = tpu.matmul %516, %517, %cst_158 {dimension_numbers = #tpu.dot_dimension_numbers<[1], [1], [0], [0], [0, 0, 1, 0], [], []>} : vector<16x8xf32>, vector<16x8xf32>, vector<16x16xf32> -> vector<16x16xf32>
    %cst_159 = arith.constant dense<0xFF800000> : vector<16xf32>
    %519 = vector.multi_reduction <maximumf>, %518, %cst_159 [1] : vector<16x16xf32> to vector<16xf32>
    %520 = vector.shape_cast %519 : vector<16xf32> to vector<16x1xf32>
    %521 = vector.broadcast %520 : vector<16x1xf32> to vector<16x16xf32>
    %522 = arith.subf %518, %521 : vector<16x16xf32>
    %523 = math.exp %522 : vector<16x16xf32>
    %cst_160 = arith.constant dense<0.000000e+00> : vector<16xf32>
    %524 = vector.multi_reduction <add>, %523, %cst_160 [1] : vector<16x16xf32> to vector<16xf32>
    %525 = vector.shape_cast %524 : vector<16xf32> to vector<16x1xf32>
    %526 = tpu.reciprocal %525 {approx = true} : vector<16x1xf32> -> vector<16x1xf32>
    %527 = vector.broadcast %526 : vector<16x1xf32> to vector<16x16xf32>
    %528 = arith.mulf %523, %527 : vector<16x16xf32>
    %529 = vector.extract_strided_slice %462 {offsets = [0, 24], sizes = [16, 8], strides = [1, 1]} : vector<16x32xf32> to vector<16x8xf32>
    %cst_161 = arith.constant dense<0.000000e+00> : vector<16x8xf32>
    %530 = tpu.matmul %528, %529, %cst_161 {dimension_numbers = #tpu.dot_dimension_numbers<[1], [0], [0], [1], [0, 0, 1, 1], [], []>} : vector<16x16xf32>, vector<16x8xf32>, vector<16x8xf32> -> vector<16x8xf32>
    %531 = tpu.concatenate %479, %496, %513, %530 in 1 : vector<16x8xf32>, vector<16x8xf32>, vector<16x8xf32>, vector<16x8xf32> -> vector<16x32xf32>
    %c1_162 = arith.constant 1 : index
    %c0_163 = arith.constant 0 : index
    %c0_164 = arith.constant 0 : index
    %532 = vector.load %arg14[%c1_162, %c0_163, %c0_164] : memref<2x32x32xf32, #tpu.memory_space<vmem>>, vector<1x32x32xf32>
    %533 = vector.shape_cast %532 : vector<1x32x32xf32> to vector<32x32xf32>
    %cst_165 = arith.constant dense<0.000000e+00> : vector<16x32xf32>
    %534 = tpu.matmul %531, %533, %cst_165 {dimension_numbers = #tpu.dot_dimension_numbers<[1], [0], [0], [1], [0, 0, 1, 1], [], []>} : vector<16x32xf32>, vector<32x32xf32>, vector<16x32xf32> -> vector<16x32xf32>
    %c1_166 = arith.constant 1 : index
    %c0_167 = arith.constant 0 : index
    %c0_168 = arith.constant 0 : index
    %535 = vector.load %arg15[%c1_166, %c0_167, %c0_168] : memref<2x1x32xf32, #tpu.memory_space<vmem>>, vector<1x1x32xf32>
    %536 = vector.shape_cast %535 : vector<1x1x32xf32> to vector<1x32xf32>
    %537 = vector.broadcast %536 : vector<1x32xf32> to vector<16x32xf32>
    %538 = arith.addf %534, %537 : vector<16x32xf32>
    %539 = arith.addf %452, %538 : vector<16x32xf32>
    %c1_169 = arith.constant 1 : index
    %c0_170 = arith.constant 0 : index
    %c0_171 = arith.constant 0 : index
    %540 = vector.load %arg16[%c1_169, %c0_170, %c0_171] : memref<2x1x32xf32, #tpu.memory_space<vmem>>, vector<1x1x32xf32>
    %541 = vector.shape_cast %540 : vector<1x1x32xf32> to vector<1x32xf32>
    %c1_172 = arith.constant 1 : index
    %c0_173 = arith.constant 0 : index
    %c0_174 = arith.constant 0 : index
    %542 = vector.load %arg17[%c1_172, %c0_173, %c0_174] : memref<2x1x32xf32, #tpu.memory_space<vmem>>, vector<1x1x32xf32>
    %543 = vector.shape_cast %542 : vector<1x1x32xf32> to vector<1x32xf32>
    %cst_175 = arith.constant dense<0.000000e+00> : vector<16xf32>
    %544 = vector.multi_reduction <add>, %539, %cst_175 [1] : vector<16x32xf32> to vector<16xf32>
    %545 = vector.shape_cast %544 : vector<16xf32> to vector<16x1xf32>
    %cst_176 = arith.constant 3.200000e+01 : f32
    %546 = vector.broadcast %cst_176 : f32 to vector<16x1xf32>
    %547 = arith.divf %545, %546 : vector<16x1xf32>
    %548 = vector.broadcast %547 : vector<16x1xf32> to vector<16x32xf32>
    %549 = arith.subf %539, %548 : vector<16x32xf32>
    %550 = arith.mulf %549, %549 : vector<16x32xf32>
    %cst_177 = arith.constant dense<0.000000e+00> : vector<16xf32>
    %551 = vector.multi_reduction <add>, %550, %cst_177 [1] : vector<16x32xf32> to vector<16xf32>
    %552 = vector.shape_cast %551 : vector<16xf32> to vector<16x1xf32>
    %cst_178 = arith.constant 3.200000e+01 : f32
    %553 = vector.broadcast %cst_178 : f32 to vector<16x1xf32>
    %554 = arith.divf %552, %553 : vector<16x1xf32>
    %555 = vector.broadcast %547 : vector<16x1xf32> to vector<16x32xf32>
    %556 = arith.subf %539, %555 : vector<16x32xf32>
    %cst_179 = arith.constant 9.99999974E-6 : f32
    %557 = vector.broadcast %cst_179 : f32 to vector<16x1xf32>
    %558 = arith.addf %554, %557 : vector<16x1xf32>
    %559 = math.rsqrt %558 : vector<16x1xf32>
    %560 = vector.broadcast %559 : vector<16x1xf32> to vector<16x32xf32>
    %561 = arith.mulf %556, %560 : vector<16x32xf32>
    %562 = vector.broadcast %541 : vector<1x32xf32> to vector<16x32xf32>
    %563 = arith.mulf %561, %562 : vector<16x32xf32>
    %564 = vector.broadcast %543 : vector<1x32xf32> to vector<16x32xf32>
    %565 = arith.addf %563, %564 : vector<16x32xf32>
    %c1_180 = arith.constant 1 : index
    %c0_181 = arith.constant 0 : index
    %c0_182 = arith.constant 0 : index
    %566 = vector.load %arg18[%c1_180, %c0_181, %c0_182] : memref<2x32x64xf32, #tpu.memory_space<vmem>>, vector<1x32x64xf32>
    %567 = vector.shape_cast %566 : vector<1x32x64xf32> to vector<32x64xf32>
    %cst_183 = arith.constant dense<0.000000e+00> : vector<16x64xf32>
    %568 = tpu.matmul %565, %567, %cst_183 {dimension_numbers = #tpu.dot_dimension_numbers<[1], [0], [0], [1], [0, 0, 1, 1], [], []>} : vector<16x32xf32>, vector<32x64xf32>, vector<16x64xf32> -> vector<16x64xf32>
    %c1_184 = arith.constant 1 : index
    %c0_185 = arith.constant 0 : index
    %c0_186 = arith.constant 0 : index
    %569 = vector.load %arg19[%c1_184, %c0_185, %c0_186] : memref<2x1x64xf32, #tpu.memory_space<vmem>>, vector<1x1x64xf32>
    %570 = vector.shape_cast %569 : vector<1x1x64xf32> to vector<1x64xf32>
    %571 = vector.broadcast %570 : vector<1x64xf32> to vector<16x64xf32>
    %572 = arith.addf %568, %571 : vector<16x64xf32>
    %573 = arith.mulf %572, %572 : vector<16x64xf32>
    %574 = arith.mulf %572, %573 : vector<16x64xf32>
    %cst_187 = arith.constant 4.471500e-02 : f32
    %575 = vector.broadcast %cst_187 : f32 to vector<16x64xf32>
    %576 = arith.mulf %575, %574 : vector<16x64xf32>
    %577 = arith.addf %572, %576 : vector<16x64xf32>
    %cst_188 = arith.constant 0.797884583 : f32
    %578 = vector.broadcast %cst_188 : f32 to vector<16x64xf32>
    %579 = arith.mulf %578, %577 : vector<16x64xf32>
    %580 = math.tanh %579 : vector<16x64xf32>
    %cst_189 = arith.constant 1.000000e+00 : f32
    %581 = vector.broadcast %cst_189 : f32 to vector<16x64xf32>
    %582 = arith.addf %581, %580 : vector<16x64xf32>
    %cst_190 = arith.constant 5.000000e-01 : f32
    %583 = vector.broadcast %cst_190 : f32 to vector<16x64xf32>
    %584 = arith.mulf %583, %582 : vector<16x64xf32>
    %585 = arith.mulf %572, %584 : vector<16x64xf32>
    %c1_191 = arith.constant 1 : index
    %c0_192 = arith.constant 0 : index
    %c0_193 = arith.constant 0 : index
    %586 = vector.load %arg20[%c1_191, %c0_192, %c0_193] : memref<2x64x32xf32, #tpu.memory_space<vmem>>, vector<1x64x32xf32>
    %587 = vector.shape_cast %586 : vector<1x64x32xf32> to vector<64x32xf32>
    %cst_194 = arith.constant dense<0.000000e+00> : vector<16x32xf32>
    %588 = tpu.matmul %585, %587, %cst_194 {dimension_numbers = #tpu.dot_dimension_numbers<[1], [0], [0], [1], [0, 0, 1, 1], [], []>} : vector<16x64xf32>, vector<64x32xf32>, vector<16x32xf32> -> vector<16x32xf32>
    %c1_195 = arith.constant 1 : index
    %c0_196 = arith.constant 0 : index
    %c0_197 = arith.constant 0 : index
    %589 = vector.load %arg21[%c1_195, %c0_196, %c0_197] : memref<2x1x32xf32, #tpu.memory_space<vmem>>, vector<1x1x32xf32>
    %590 = vector.shape_cast %589 : vector<1x1x32xf32> to vector<1x32xf32>
    %591 = vector.broadcast %590 : vector<1x32xf32> to vector<16x32xf32>
    %592 = arith.addf %588, %591 : vector<16x32xf32>
    %593 = arith.addf %565, %592 : vector<16x32xf32>
    %c1_198 = arith.constant 1 : index
    %c0_199 = arith.constant 0 : index
    %c0_200 = arith.constant 0 : index
    %594 = vector.load %arg22[%c1_198, %c0_199, %c0_200] : memref<2x1x32xf32, #tpu.memory_space<vmem>>, vector<1x1x32xf32>
    %595 = vector.shape_cast %594 : vector<1x1x32xf32> to vector<1x32xf32>
    %c1_201 = arith.constant 1 : index
    %c0_202 = arith.constant 0 : index
    %c0_203 = arith.constant 0 : index
    %596 = vector.load %arg23[%c1_201, %c0_202, %c0_203] : memref<2x1x32xf32, #tpu.memory_space<vmem>>, vector<1x1x32xf32>
    %597 = vector.shape_cast %596 : vector<1x1x32xf32> to vector<1x32xf32>
    %cst_204 = arith.constant dense<0.000000e+00> : vector<16xf32>
    %598 = vector.multi_reduction <add>, %593, %cst_204 [1] : vector<16x32xf32> to vector<16xf32>
    %599 = vector.shape_cast %598 : vector<16xf32> to vector<16x1xf32>
    %cst_205 = arith.constant 3.200000e+01 : f32
    %600 = vector.broadcast %cst_205 : f32 to vector<16x1xf32>
    %601 = arith.divf %599, %600 : vector<16x1xf32>
    %602 = vector.broadcast %601 : vector<16x1xf32> to vector<16x32xf32>
    %603 = arith.subf %593, %602 : vector<16x32xf32>
    %604 = arith.mulf %603, %603 : vector<16x32xf32>
    %cst_206 = arith.constant dense<0.000000e+00> : vector<16xf32>
    %605 = vector.multi_reduction <add>, %604, %cst_206 [1] : vector<16x32xf32> to vector<16xf32>
    %606 = vector.shape_cast %605 : vector<16xf32> to vector<16x1xf32>
    %cst_207 = arith.constant 3.200000e+01 : f32
    %607 = vector.broadcast %cst_207 : f32 to vector<16x1xf32>
    %608 = arith.divf %606, %607 : vector<16x1xf32>
    %609 = vector.broadcast %601 : vector<16x1xf32> to vector<16x32xf32>
    %610 = arith.subf %593, %609 : vector<16x32xf32>
    %cst_208 = arith.constant 9.99999974E-6 : f32
    %611 = vector.broadcast %cst_208 : f32 to vector<16x1xf32>
    %612 = arith.addf %608, %611 : vector<16x1xf32>
    %613 = math.rsqrt %612 : vector<16x1xf32>
    %614 = vector.broadcast %613 : vector<16x1xf32> to vector<16x32xf32>
    %615 = arith.mulf %610, %614 : vector<16x32xf32>
    %616 = vector.broadcast %595 : vector<1x32xf32> to vector<16x32xf32>
    %617 = arith.mulf %615, %616 : vector<16x32xf32>
    %618 = vector.broadcast %597 : vector<1x32xf32> to vector<16x32xf32>
    %619 = arith.addf %617, %618 : vector<16x32xf32>
    %cst_209 = arith.constant dense<0.000000e+00> : vector<32xf32>
    %620 = vector.multi_reduction <add>, %619, %cst_209 [0] : vector<16x32xf32> to vector<32xf32>
    %621 = vector.shape_cast %620 : vector<32xf32> to vector<1x32xf32>
    %cst_210 = arith.constant 1.600000e+01 : f32
    %622 = vector.broadcast %cst_210 : f32 to vector<1x32xf32>
    %623 = arith.divf %621, %622 : vector<1x32xf32>
    %c0_211 = arith.constant 0 : index
    %c0_212 = arith.constant 0 : index
    %c0_213 = arith.constant 0 : index
    %624 = vector.load %arg24[%c0_211, %c0_212, %c0_213] : memref<1x1x32xf32, #tpu.memory_space<vmem>>, vector<1x1x32xf32>
    %625 = vector.shape_cast %624 : vector<1x1x32xf32> to vector<1x32xf32>
    %626 = vector.shape_cast %623 : vector<1x32xf32> to vector<1x1x32xf32>
    tpu.vector_store %arg24[%c0_211, %c0_212, %c0_213], %626 {strides = array<i32>} : memref<1x1x32xf32, #tpu.memory_space<vmem>>, vector<1x1x32xf32>,
    return
  }
  func.func @transform_0(%arg0: i32) -> (i32, i32, i32) {
    %c0_i32 = arith.constant 0 : i32
    %c0_i32_0 = arith.constant 0 : i32
    %c0_i32_1 = arith.constant 0 : i32
    return %arg0, %c0_i32, %c0_i32_0 : i32, i32, i32
  }
  func.func @transform_1(%arg0: i32) -> (i32, i32) {
    %c0_i32 = arith.constant 0 : i32
    %c0_i32_0 = arith.constant 0 : i32
    %c0_i32_1 = arith.constant 0 : i32
    return %c0_i32, %c0_i32_0 : i32, i32
  }
  func.func @transform_2(%arg0: i32) -> (i32, i32) {
    %c0_i32 = arith.constant 0 : i32
    %c0_i32_0 = arith.constant 0 : i32
    %c0_i32_1 = arith.constant 0 : i32
    return %c0_i32, %c0_i32_0 : i32, i32
  }
  func.func @transform_3(%arg0: i32) -> (i32, i32) {
    %c0_i32 = arith.constant 0 : i32
    %c0_i32_0 = arith.constant 0 : i32
    %c0_i32_1 = arith.constant 0 : i32
    return %c0_i32, %c0_i32_0 : i32, i32
  }
  func.func @transform_4(%arg0: i32) -> (i32, i32, i32) {
    %c0_i32 = arith.constant 0 : i32
    %c0_i32_0 = arith.constant 0 : i32
    %c0_i32_1 = arith.constant 0 : i32
    %c0_i32_2 = arith.constant 0 : i32
    return %c0_i32, %c0_i32_0, %c0_i32_1 : i32, i32, i32
  }
  func.func @transform_5(%arg0: i32) -> (i32, i32) {
    %c0_i32 = arith.constant 0 : i32
    %c0_i32_0 = arith.constant 0 : i32
    %c0_i32_1 = arith.constant 0 : i32
    return %c0_i32, %c0_i32_0 : i32, i32
  }
  func.func @transform_6(%arg0: i32) -> (i32, i32) {
    %c0_i32 = arith.constant 0 : i32
    %c0_i32_0 = arith.constant 0 : i32
    %c0_i32_1 = arith.constant 0 : i32
    return %c0_i32, %c0_i32_0 : i32, i32
  }
  func.func @transform_7(%arg0: i32) -> (i32, i32) {
    %c0_i32 = arith.constant 0 : i32
    %c0_i32_0 = arith.constant 0 : i32
    %c0_i32_1 = arith.constant 0 : i32
    return %c0_i32, %c0_i32_0 : i32, i32
  }
  func.func @transform_8(%arg0: i32) -> (i32, i32) {
    %c0_i32 = arith.constant 0 : i32
    %c0_i32_0 = arith.constant 0 : i32
    %c0_i32_1 = arith.constant 0 : i32
    return %c0_i32, %c0_i32_0 : i32, i32
  }
  func.func @transform_9(%arg0: i32) -> (i32, i32) {
    %c0_i32 = arith.constant 0 : i32
    %c0_i32_0 = arith.constant 0 : i32
    %c0_i32_1 = arith.constant 0 : i32
    return %c0_i32, %c0_i32_0 : i32, i32
  }
  func.func @transform_10(%arg0: i32) -> (i32, i32) {
    %c0_i32 = arith.constant 0 : i32
    %c0_i32_0 = arith.constant 0 : i32
    %c0_i32_1 = arith.constant 0 : i32
    return %c0_i32, %c0_i32_0 : i32, i32
  }
  func.func @transform_11(%arg0: i32) -> (i32, i32, i32) {
    %c0_i32 = arith.constant 0 : i32
    %c0_i32_0 = arith.constant 0 : i32
    %c0_i32_1 = arith.constant 0 : i32
    %c0_i32_2 = arith.constant 0 : i32
    return %c0_i32, %c0_i32_0, %c0_i32_1 : i32, i32, i32
  }
  func.func @transform_12(%arg0: i32) -> (i32, i32, i32) {
    %c0_i32 = arith.constant 0 : i32
    %c0_i32_0 = arith.constant 0 : i32
    %c0_i32_1 = arith.constant 0 : i32
    %c0_i32_2 = arith.constant 0 : i32
    return %c0_i32, %c0_i32_0, %c0_i32_1 : i32, i32, i32
  }
  func.func @transform_13(%arg0: i32) -> (i32, i32, i32) {
    %c0_i32 = arith.constant 0 : i32
    %c0_i32_0 = arith.constant 0 : i32
    %c0_i32_1 = arith.constant 0 : i32
    %c0_i32_2 = arith.constant 0 : i32
    return %c0_i32, %c0_i32_0, %c0_i32_1 : i32, i32, i32
  }
  func.func @transform_14(%arg0: i32) -> (i32, i32, i32) {
    %c0_i32 = arith.constant 0 : i32
    %c0_i32_0 = arith.constant 0 : i32
    %c0_i32_1 = arith.constant 0 : i32
    %c0_i32_2 = arith.constant 0 : i32
    return %c0_i32, %c0_i32_0, %c0_i32_1 : i32, i32, i32
  }
  func.func @transform_15(%arg0: i32) -> (i32, i32, i32) {
    %c0_i32 = arith.constant 0 : i32
    %c0_i32_0 = arith.constant 0 : i32
    %c0_i32_1 = arith.constant 0 : i32
    %c0_i32_2 = arith.constant 0 : i32
    return %c0_i32, %c0_i32_0, %c0_i32_1 : i32, i32, i32
  }
  func.func @transform_16(%arg0: i32) -> (i32, i32, i32) {
    %c0_i32 = arith.constant 0 : i32
    %c0_i32_0 = arith.constant 0 : i32
    %c0_i32_1 = arith.constant 0 : i32
    %c0_i32_2 = arith.constant 0 : i32
    return %c0_i32, %c0_i32_0, %c0_i32_1 : i32, i32, i32
  }
  func.func @transform_17(%arg0: i32) -> (i32, i32, i32) {
    %c0_i32 = arith.constant 0 : i32
    %c0_i32_0 = arith.constant 0 : i32
    %c0_i32_1 = arith.constant 0 : i32
    %c0_i32_2 = arith.constant 0 : i32
    return %c0_i32, %c0_i32_0, %c0_i32_1 : i32, i32, i32
  }
  func.func @transform_18(%arg0: i32) -> (i32, i32, i32) {
    %c0_i32 = arith.constant 0 : i32
    %c0_i32_0 = arith.constant 0 : i32
    %c0_i32_1 = arith.constant 0 : i32
    %c0_i32_2 = arith.constant 0 : i32
    return %c0_i32, %c0_i32_0, %c0_i32_1 : i32, i32, i32
  }
  func.func @transform_19(%arg0: i32) -> (i32, i32, i32) {
    %c0_i32 = arith.constant 0 : i32
    %c0_i32_0 = arith.constant 0 : i32
    %c0_i32_1 = arith.constant 0 : i32
    %c0_i32_2 = arith.constant 0 : i32
    return %c0_i32, %c0_i32_0, %c0_i32_1 : i32, i32, i32
  }
  func.func @transform_20(%arg0: i32) -> (i32, i32, i32) {
    %c0_i32 = arith.constant 0 : i32
    %c0_i32_0 = arith.constant 0 : i32
    %c0_i32_1 = arith.constant 0 : i32
    %c0_i32_2 = arith.constant 0 : i32
    return %c0_i32, %c0_i32_0, %c0_i32_1 : i32, i32, i32
  }
  func.func @transform_21(%arg0: i32) -> (i32, i32, i32) {
    %c0_i32 = arith.constant 0 : i32
    %c0_i32_0 = arith.constant 0 : i32
    %c0_i32_1 = arith.constant 0 : i32
    %c0_i32_2 = arith.constant 0 : i32
    return %c0_i32, %c0_i32_0, %c0_i32_1 : i32, i32, i32
  }
  func.func @transform_22(%arg0: i32) -> (i32, i32, i32) {
    %c0_i32 = arith.constant 0 : i32
    %c0_i32_0 = arith.constant 0 : i32
    %c0_i32_1 = arith.constant 0 : i32
    %c0_i32_2 = arith.constant 0 : i32
    return %c0_i32, %c0_i32_0, %c0_i32_1 : i32, i32, i32
  }
  func.func @transform_23(%arg0: i32) -> (i32, i32, i32) {
    %c0_i32 = arith.constant 0 : i32
    %c0_i32_0 = arith.constant 0 : i32
    %c0_i32_1 = arith.constant 0 : i32
    return %arg0, %c0_i32, %c0_i32_0 : i32, i32, i32
  }
}

</mosaic_0001>

<llo_original>
// kernel: tpu_custom_call.1
$region0: #{tpu_custom_call.1}
  #allocation0 [shape = 'u32[]', space=smem, size = 0x4, offset = 0x4, fixed_abs, tag = 'smem constant byte address 0x4 - core index']
  #allocation1 [shape = 'u32[72,128]{1,0:T(1,128)}', space=vmem, size = 0x9000, scoped, tag = 'internal scratch']
  %s0 = inlined_call_operand.vmem [shape: f32[2,17,10], index: 0, kind: input, shape index: {}]
  %s1 = inlined_call_operand.vmem [shape: f32[10,32], index: 1, kind: input, shape index: {}]
  %s2 = inlined_call_operand.hbm [shape: f32[1,32], index: 2, kind: input, shape index: {}]
  %s3 = inlined_call_operand.hbm [shape: f32[1,32], index: 3, kind: input, shape index: {}]
  %s4 = inlined_call_operand.vmem [shape: f32[3,32,32], index: 4, kind: input, shape index: {}]
  %s5 = inlined_call_operand.hbm [shape: f32[1,32], index: 5, kind: input, shape index: {}]
  %s6 = inlined_call_operand.hbm [shape: f32[1,32], index: 6, kind: input, shape index: {}]
  %s7 = inlined_call_operand.vmem [shape: f32[32,32], index: 7, kind: input, shape index: {}]
  %s8 = inlined_call_operand.hbm [shape: f32[1,32], index: 8, kind: input, shape index: {}]
  %s9 = inlined_call_operand.hbm [shape: f32[1,32], index: 9, kind: input, shape index: {}]
  %s10 = inlined_call_operand.hbm [shape: f32[1,32], index: 10, kind: input, shape index: {}]
  %s11 = inlined_call_operand.vmem [shape: f32[2,32,96], index: 11, kind: input, shape index: {}]
  %s12 = inlined_call_operand.vmem [shape: f32[2,1,96], index: 12, kind: input, shape index: {}]
  %s13 = inlined_call_operand.hbm [shape: f32[2,32,32], index: 13, kind: input, shape index: {}]
  %s14 = inlined_call_operand.vmem [shape: f32[2,1,32], index: 14, kind: input, shape index: {}]
  %s15 = inlined_call_operand.vmem [shape: f32[2,1,32], index: 15, kind: input, shape index: {}]
  %s16 = inlined_call_operand.hbm [shape: f32[2,1,32], index: 16, kind: input, shape index: {}]
  %s17 = inlined_call_operand.hbm [shape: f32[2,32,64], index: 17, kind: input, shape index: {}]
  %s18 = inlined_call_operand.hbm [shape: f32[2,1,64], index: 18, kind: input, shape index: {}]
  %s19 = inlined_call_operand.vmem [shape: f32[2,64,32], index: 19, kind: input, shape index: {}]
  %s20 = inlined_call_operand.hbm [shape: f32[2,1,32], index: 20, kind: input, shape index: {}]
  %s21 = inlined_call_operand.vmem [shape: f32[2,1,32], index: 21, kind: input, shape index: {}]
  %s22 = inlined_call_operand.hbm [shape: f32[2,1,32], index: 22, kind: input, shape index: {}]
  %s23 = inlined_call_operand.hbm [shape: f32[2,1,32], index: 23, kind: output, shape index: {}]
  %s24 = sld [smem:[#allocation0]]
  $region177: #{tpu_custom_call.1} parent=0
    _
  %s26 = ssub.s32 1, %s24
  %s27 = scalar_select 0, %s26, %s24
  $region1: #{tpu_custom_call.1} parent=0
    #allocation2 [shape = 'u8[512]{0}', space=vmem, size = 0x400, scoped, tag = 'input window, operand 2, single buffered']
    #allocation3 [shape = 's32[2]{0}', space=sflag, size = 0x8, scoped, tag = 'scoped memory for tpu_custom_call.1']
    #allocation4 [shape = 's32[2]{0}', space=sflag, size = 0x8, scoped, tag = 'scoped memory for tpu_custom_call.1']
    #allocation5 [shape = 'u8[512]{0}', space=vmem, size = 0x400, scoped, tag = 'input window, operand 3, single buffered']
    #allocation6 [shape = 's32[1]{0}', space=sflag, size = 0x4, scoped, tag = 'scoped memory for tpu_custom_call.1']
    #allocation7 [shape = 'u8[512]{0}', space=vmem, size = 0x400, scoped, tag = 'input window, operand 5, single buffered']
    #allocation8 [shape = 'u8[512]{0}', space=vmem, size = 0x400, scoped, tag = 'input window, operand 6, single buffered']
    #allocation9 [shape = 's32[1]{0}', space=sflag, size = 0x4, scoped, tag = 'scoped memory for tpu_custom_call.1']
    #allocation10 [shape = 'u8[512]{0}', space=vmem, size = 0x400, scoped, tag = 'input window, operand 8, single buffered']
    #allocation11 [shape = 'u8[512]{0}', space=vmem, size = 0x400, scoped, tag = 'input window, operand 9, single buffered']
    #allocation12 [shape = 's32[1]{0}', space=sflag, size = 0x4, scoped, tag = 'scoped memory for tpu_custom_call.1']
    #allocation13 [shape = 'u8[512]{0}', space=vmem, size = 0x400, scoped, tag = 'input window, operand 10, single buffered']
    #allocation14 [shape = 'u8[32768]{0}', space=vmem, size = 0x8000, scoped, tag = 'input window, operand 13, single buffered']
    #allocation15 [shape = 's32[1]{0}', space=sflag, size = 0x4, scoped, tag = 'scoped memory for tpu_custom_call.1']
    #allocation16 [shape = 'u8[1024]{0}', space=vmem, size = 0x400, scoped, tag = 'input window, operand 16, single buffered']
    #allocation17 [shape = 'u8[32768]{0}', space=vmem, size = 0x8000, scoped, tag = 'input window, operand 17, single buffered']
    #allocation18 [shape = 's32[1]{0}', space=sflag, size = 0x4, scoped, tag = 'scoped memory for tpu_custom_call.1']
    #allocation19 [shape = 'u8[1024]{0}', space=vmem, size = 0x400, scoped, tag = 'input window, operand 18, single buffered']
    #allocation20 [shape = 'u8[1024]{0}', space=vmem, size = 0x400, scoped, tag = 'input window, operand 20, single buffered']
    #allocation21 [shape = 's32[1]{0}', space=sflag, size = 0x4, scoped, tag = 'scoped memory for tpu_custom_call.1']
    #allocation22 [shape = 'u8[1024]{0}', space=vmem, size = 0x400, scoped, tag = 'input window, operand 22, single buffered']
    #allocation23 [shape = 'u8[1024]{0}', space=vmem, size = 0x400, scoped, tag = 'output window, operand 0']
    %28 = vsyncpa [#allocation3], 0
    %29 = vsyncpa [#allocation6], 0
    %30 = vsyncpa [#allocation9], 0
    %31 = vsyncpa [#allocation12], 0
    %32 = vsyncpa [#allocation15], 0
    %33 = vsyncpa [#allocation18], 0
    %34 = vsyncpa [#allocation21], 0
    %35 = vsyncpa [#allocation4], 0
    %s36 = scalar_lea.sflag [#allocation4], 1
    %37 = vsyncpa %s36, 0
    loop: start=0, step=1, limit=4
    $region2: #{tpu_custom_call.1} parent=1 // loop_pre_header
      _
    $region3: #{tpu_custom_call.1} parent=1 // loop_header
      %s39 = sphi 0, %s43
      %p40 = scmp.ge.s32.totalorder %s39, 4
      %s49 = sphi 0, %s51
      %s52 = sphi 0, %s49
      %s53 = sphi 0, %s52
      %s69 = sphi 0, %s53
      %s73 = sphi 0, %s73
      %s75 = sphi 0, %s73
      %s76 = sphi 0, %s75
      %s90 = sphi 0, %s76
      %s94 = sphi 0, %s94
      %s96 = sphi 0, %s94
      %s97 = sphi 0, %s96
      %s111 = sphi 0, %s97
      %s115 = sphi 0, %s115
      %s117 = sphi 0, %s115
      %s118 = sphi 0, %s117
      %s132 = sphi 0, %s118
      %s136 = sphi 0, %s136
      %s138 = sphi 0, %s136
      %s139 = sphi 0, %s138
      %s153 = sphi 0, %s139
      %s157 = sphi 0, %s157
      %s159 = sphi 0, %s157
      %s160 = sphi 0, %s159
      %s174 = sphi 0, %s160
      %s178 = sphi 0, %s178
      %s180 = sphi 0, %s178
      %s181 = sphi 0, %s180
      %s195 = sphi 0, %s181
      %s199 = sphi 0, %s199
      %s201 = sphi 0, %s199
      %s202 = sphi 0, %s201
      %s216 = sphi 0, %s202
      %s220 = sphi 0, %s220
      %s222 = sphi 0, %s220
      %s223 = sphi 0, %s222
      %s237 = sphi 0, %s223
      %s241 = sphi 0, %s241
      %s243 = sphi 0, %s241
      %s244 = sphi 0, %s243
      %s258 = sphi 0, %s244
      %s262 = sphi 0, %s262
      %s264 = sphi 0, %s262
      %s265 = sphi 0, %s264
      %s279 = sphi 0, %s265
      %s283 = sphi 0, %s283
      %s285 = sphi 0, %s283
      %s286 = sphi 0, %s285
      %s300 = sphi 0, %s286
      %s304 = sphi 0, %s304
      %s306 = sphi 0, %s304
      %s307 = sphi 0, %s306
      %s321 = sphi 0, %s307
      %s325 = sphi 0, %s325
      %s327 = sphi 0, %s325
      %s328 = sphi 0, %s327
      %s342 = sphi 0, %s328
      %s346 = sphi 0, %s346
      %s348 = sphi 0, %s346
      %s349 = sphi 0, %s348
      %s363 = sphi 0, %s349
      %s367 = sphi 0, %s367
      %s369 = sphi 0, %s367
      %s370 = sphi 0, %s369
      %s384 = sphi 0, %s370
      %s388 = sphi 0, %s388
      %s390 = sphi 0, %s388
      %s391 = sphi 0, %s390
      %s405 = sphi 0, %s391
      %s409 = sphi 0, %s409
      %s411 = sphi 0, %s409
      %s412 = sphi 0, %s411
      %s426 = sphi 0, %s412
      %s430 = sphi 0, %s430
      %s432 = sphi 0, %s430
      %s433 = sphi 0, %s432
      %s447 = sphi 0, %s433
      %s451 = sphi 0, %s451
      %s453 = sphi 0, %s451
      %s454 = sphi 0, %s453
      %s468 = sphi 0, %s454
      %s472 = sphi 0, %s472
      %s474 = sphi 0, %s472
      %s475 = sphi 0, %s474
      %s489 = sphi 0, %s475
      %s493 = sphi 0, %s493
      %s495 = sphi 0, %s493
      %s496 = sphi 0, %s495
      %s510 = sphi 0, %s496
      %s514 = sphi 0, %s514
      %s516 = sphi 0, %s514
      %s517 = sphi 0, %s516
      %s531 = sphi 0, %s517
      %s537 = sphi 0, %s539
      %s540 = sphi 0, %s537
      %s541 = sphi 0, %s540
      %s557 = sphi 0, %s541
    $region4: #{tpu_custom_call.1} parent=1 // loop_header_branch
      %42 = sbr.rel (%p40) target = $region8
    $region5: #{tpu_custom_call.1} parent=1 // loop_body
      %s44 = ssub.s32 %s39, 1
      %s45 = ssub.s32 %s39, 2
      %s46 = sadd.s32 %s39, 1
      %s47 = ssub.s32 %s39, %s46
      %p48 = scmp.eq.s32.totalorder %s47, 0
      %s50 = sadd.s32 %s49, 1
      %s51 = scalar_select %p48, %s49, %s50
      %p54 = pneg %p48
      %p55 = scmp.eq.s32.totalorder %s39, 1
      %p56 = por %p54, %p55
      %p57 = scmp.ne.s32.totalorder %s49, %s52
      %p58 = scmp.eq.s32.totalorder %s39, 0
      %p59 = por %p57, %p58
      %p60 = scmp.ne.s32.totalorder %s49, %s52
      %p61 = scmp.eq.s32.totalorder %s44, 1
      %p62 = por %p60, %p61
      %p63 = scmp.ne.s32.totalorder %s52, %s53
      %p64 = scmp.eq.s32.totalorder %s44, 0
      %p65 = por %p63, %p64
      %p66 = scmp.ne.s32.totalorder %s52, %s53
      %p67 = scmp.eq.s32.totalorder %s45, 1
      %p68 = por %p66, %p67
      %p70 = scmp.ne.s32.totalorder %s53, %s69
      %p71 = scmp.eq.s32.totalorder %s45, 0
      %p72 = por %p70, %p71
      %s74 = sadd.s32 %s73, 1
      %p77 = scmp.eq.s32.totalorder %s39, 1
      %p78 = scmp.ne.s32.totalorder %s73, %s75
      %p79 = scmp.eq.s32.totalorder %s39, 0
      %p80 = por %p78, %p79
      %p81 = scmp.ne.s32.totalorder %s73, %s75
      %p82 = scmp.eq.s32.totalorder %s44, 1
      %p83 = por %p81, %p82
      %p84 = scmp.ne.s32.totalorder %s75, %s76
      %p85 = scmp.eq.s32.totalorder %s44, 0
      %p86 = por %p84, %p85
      %p87 = scmp.ne.s32.totalorder %s75, %s76
      %p88 = scmp.eq.s32.totalorder %s45, 1
      %p89 = por %p87, %p88
      %p91 = scmp.ne.s32.totalorder %s76, %s90
      %p92 = scmp.eq.s32.totalorder %s45, 0
      %p93 = por %p91, %p92
      %s95 = sadd.s32 %s94, 1
      %p98 = scmp.eq.s32.totalorder %s39, 1
      %p99 = scmp.ne.s32.totalorder %s94, %s96
      %p100 = scmp.eq.s32.totalorder %s39, 0
      %p101 = por %p99, %p100
      %p102 = scmp.ne.s32.totalorder %s94, %s96
      %p103 = scmp.eq.s32.totalorder %s44, 1
      %p104 = por %p102, %p103
      %p105 = scmp.ne.s32.totalorder %s96, %s97
      %p106 = scmp.eq.s32.totalorder %s44, 0
      %p107 = por %p105, %p106
      %p108 = scmp.ne.s32.totalorder %s96, %s97
      %p109 = scmp.eq.s32.totalorder %s45, 1
      %p110 = por %p108, %p109
      %p112 = scmp.ne.s32.totalorder %s97, %s111
      %p113 = scmp.eq.s32.totalorder %s45, 0
      %p114 = por %p112, %p113
      %s116 = sadd.s32 %s115, 1
      %p119 = scmp.eq.s32.totalorder %s39, 1
      %p120 = scmp.ne.s32.totalorder %s115, %s117
      %p121 = scmp.eq.s32.totalorder %s39, 0
      %p122 = por %p120, %p121
      %p123 = scmp.ne.s32.totalorder %s115, %s117
      %p124 = scmp.eq.s32.totalorder %s44, 1
      %p125 = por %p123, %p124
      %p126 = scmp.ne.s32.totalorder %s117, %s118
      %p127 = scmp.eq.s32.totalorder %s44, 0
      %p128 = por %p126, %p127
      %p129 = scmp.ne.s32.totalorder %s117, %s118
      %p130 = scmp.eq.s32.totalorder %s45, 1
      %p131 = por %p129, %p130
      %p133 = scmp.ne.s32.totalorder %s118, %s132
      %p134 = scmp.eq.s32.totalorder %s45, 0
      %p135 = por %p133, %p134
      %s137 = sadd.s32 %s136, 1
      %p140 = scmp.eq.s32.totalorder %s39, 1
      %p141 = scmp.ne.s32.totalorder %s136, %s138
      %p142 = scmp.eq.s32.totalorder %s39, 0
      %p143 = por %p141, %p142
      %p144 = scmp.ne.s32.totalorder %s136, %s138
      %p145 = scmp.eq.s32.totalorder %s44, 1
      %p146 = por %p144, %p145
      %p147 = scmp.ne.s32.totalorder %s138, %s139
      %p148 = scmp.eq.s32.totalorder %s44, 0
      %p149 = por %p147, %p148
      %p150 = scmp.ne.s32.totalorder %s138, %s139
      %p151 = scmp.eq.s32.totalorder %s45, 1
      %p152 = por %p150, %p151
      %p154 = scmp.ne.s32.totalorder %s139, %s153
      %p155 = scmp.eq.s32.totalorder %s45, 0
      %p156 = por %p154, %p155
      %s158 = sadd.s32 %s157, 1
      %p161 = scmp.eq.s32.totalorder %s39, 1
      %p162 = scmp.ne.s32.totalorder %s157, %s159
      %p163 = scmp.eq.s32.totalorder %s39, 0
      %p164 = por %p162, %p163
      %p165 = scmp.ne.s32.totalorder %s157, %s159
      %p166 = scmp.eq.s32.totalorder %s44, 1
      %p167 = por %p165, %p166
      %p168 = scmp.ne.s32.totalorder %s159, %s160
      %p169 = scmp.eq.s32.totalorder %s44, 0
      %p170 = por %p168, %p169
      %p171 = scmp.ne.s32.totalorder %s159, %s160
      %p172 = scmp.eq.s32.totalorder %s45, 1
      %p173 = por %p171, %p172
      %p175 = scmp.ne.s32.totalorder %s160, %s174
      %p176 = scmp.eq.s32.totalorder %s45, 0
      %p177 = por %p175, %p176
      %s179 = sadd.s32 %s178, 1
      %p182 = scmp.eq.s32.totalorder %s39, 1
      %p183 = scmp.ne.s32.totalorder %s178, %s180
      %p184 = scmp.eq.s32.totalorder %s39, 0
      %p185 = por %p183, %p184
      %p186 = scmp.ne.s32.totalorder %s178, %s180
      %p187 = scmp.eq.s32.totalorder %s44, 1
      %p188 = por %p186, %p187
      %p189 = scmp.ne.s32.totalorder %s180, %s181
      %p190 = scmp.eq.s32.totalorder %s44, 0
      %p191 = por %p189, %p190
      %p192 = scmp.ne.s32.totalorder %s180, %s181
      %p193 = scmp.eq.s32.totalorder %s45, 1
      %p194 = por %p192, %p193
      %p196 = scmp.ne.s32.totalorder %s181, %s195
      %p197 = scmp.eq.s32.totalorder %s45, 0
      %p198 = por %p196, %p197
      %s200 = sadd.s32 %s199, 1
      %p203 = scmp.eq.s32.totalorder %s39, 1
      %p204 = scmp.ne.s32.totalorder %s199, %s201
      %p205 = scmp.eq.s32.totalorder %s39, 0
      %p206 = por %p204, %p205
      %p207 = scmp.ne.s32.totalorder %s199, %s201
      %p208 = scmp.eq.s32.totalorder %s44, 1
      %p209 = por %p207, %p208
      %p210 = scmp.ne.s32.totalorder %s201, %s202
      %p211 = scmp.eq.s32.totalorder %s44, 0
      %p212 = por %p210, %p211
      %p213 = scmp.ne.s32.totalorder %s201, %s202
      %p214 = scmp.eq.s32.totalorder %s45, 1
      %p215 = por %p213, %p214
      %p217 = scmp.ne.s32.totalorder %s202, %s216
      %p218 = scmp.eq.s32.totalorder %s45, 0
      %p219 = por %p217, %p218
      %s221 = sadd.s32 %s220, 1
      %p224 = scmp.eq.s32.totalorder %s39, 1
      %p225 = scmp.ne.s32.totalorder %s220, %s222
      %p226 = scmp.eq.s32.totalorder %s39, 0
      %p227 = por %p225, %p226
      %p228 = scmp.ne.s32.totalorder %s220, %s222
      %p229 = scmp.eq.s32.totalorder %s44, 1
      %p230 = por %p228, %p229
      %p231 = scmp.ne.s32.totalorder %s222, %s223
      %p232 = scmp.eq.s32.totalorder %s44, 0
      %p233 = por %p231, %p232
      %p234 = scmp.ne.s32.totalorder %s222, %s223
      %p235 = scmp.eq.s32.totalorder %s45, 1
      %p236 = por %p234, %p235
      %p238 = scmp.ne.s32.totalorder %s223, %s237
      %p239 = scmp.eq.s32.totalorder %s45, 0
      %p240 = por %p238, %p239
      %s242 = sadd.s32 %s241, 1
      %p245 = scmp.eq.s32.totalorder %s39, 1
      %p246 = scmp.ne.s32.totalorder %s241, %s243
      %p247 = scmp.eq.s32.totalorder %s39, 0
      %p248 = por %p246, %p247
      %p249 = scmp.ne.s32.totalorder %s241, %s243
      %p250 = scmp.eq.s32.totalorder %s44, 1
      %p251 = por %p249, %p250
      %p252 = scmp.ne.s32.totalorder %s243, %s244
      %p253 = scmp.eq.s32.totalorder %s44, 0
      %p254 = por %p252, %p253
      %p255 = scmp.ne.s32.totalorder %s243, %s244
      %p256 = scmp.eq.s32.totalorder %s45, 1
      %p257 = por %p255, %p256
      %p259 = scmp.ne.s32.totalorder %s244, %s258
      %p260 = scmp.eq.s32.totalorder %s45, 0
      %p261 = por %p259, %p260
      %s263 = sadd.s32 %s262, 1
      %p266 = scmp.eq.s32.totalorder %s39, 1
      %p267 = scmp.ne.s32.totalorder %s262, %s264
      %p268 = scmp.eq.s32.totalorder %s39, 0
      %p269 = por %p267, %p268
      %p270 = scmp.ne.s32.totalorder %s262, %s264
      %p271 = scmp.eq.s32.totalorder %s44, 1
      %p272 = por %p270, %p271
      %p273 = scmp.ne.s32.totalorder %s264, %s265
      %p274 = scmp.eq.s32.totalorder %s44, 0
      %p275 = por %p273, %p274
      %p276 = scmp.ne.s32.totalorder %s264, %s265
      %p277 = scmp.eq.s32.totalorder %s45, 1
      %p278 = por %p276, %p277
      %p280 = scmp.ne.s32.totalorder %s265, %s279
      %p281 = scmp.eq.s32.totalorder %s45, 0
      %p282 = por %p280, %p281
      %s284 = sadd.s32 %s283, 1
      %p287 = scmp.eq.s32.totalorder %s39, 1
      %p288 = scmp.ne.s32.totalorder %s283, %s285
      %p289 = scmp.eq.s32.totalorder %s39, 0
      %p290 = por %p288, %p289
      %p291 = scmp.ne.s32.totalorder %s283, %s285
      %p292 = scmp.eq.s32.totalorder %s44, 1
      %p293 = por %p291, %p292
      %p294 = scmp.ne.s32.totalorder %s285, %s286
      %p295 = scmp.eq.s32.totalorder %s44, 0
      %p296 = por %p294, %p295
      %p297 = scmp.ne.s32.totalorder %s285, %s286
      %p298 = scmp.eq.s32.totalorder %s45, 1
      %p299 = por %p297, %p298
      %p301 = scmp.ne.s32.totalorder %s286, %s300
      %p302 = scmp.eq.s32.totalorder %s45, 0
      %p303 = por %p301, %p302
      %s305 = sadd.s32 %s304, 1
      %p308 = scmp.eq.s32.totalorder %s39, 1
      %p309 = scmp.ne.s32.totalorder %s304, %s306
      %p310 = scmp.eq.s32.totalorder %s39, 0
      %p311 = por %p309, %p310
      %p312 = scmp.ne.s32.totalorder %s304, %s306
      %p313 = scmp.eq.s32.totalorder %s44, 1
      %p314 = por %p312, %p313
      %p315 = scmp.ne.s32.totalorder %s306, %s307
      %p316 = scmp.eq.s32.totalorder %s44, 0
      %p317 = por %p315, %p316
      %p318 = scmp.ne.s32.totalorder %s306, %s307
      %p319 = scmp.eq.s32.totalorder %s45, 1
      %p320 = por %p318, %p319
      %p322 = scmp.ne.s32.totalorder %s307, %s321
      %p323 = scmp.eq.s32.totalorder %s45, 0
      %p324 = por %p322, %p323
      %s326 = sadd.s32 %s325, 1
      %p329 = scmp.eq.s32.totalorder %s39, 1
      %p330 = scmp.ne.s32.totalorder %s325, %s327
      %p331 = scmp.eq.s32.totalorder %s39, 0
      %p332 = por %p330, %p331
      %p333 = scmp.ne.s32.totalorder %s325, %s327
      %p334 = scmp.eq.s32.totalorder %s44, 1
      %p335 = por %p333, %p334
      %p336 = scmp.ne.s32.totalorder %s327, %s328
      %p337 = scmp.eq.s32.totalorder %s44, 0
      %p338 = por %p336, %p337
      %p339 = scmp.ne.s32.totalorder %s327, %s328
      %p340 = scmp.eq.s32.totalorder %s45, 1
      %p341 = por %p339, %p340
      %p343 = scmp.ne.s32.totalorder %s328, %s342
      %p344 = scmp.eq.s32.totalorder %s45, 0
      %p345 = por %p343, %p344
      %s347 = sadd.s32 %s346, 1
      %p350 = scmp.eq.s32.totalorder %s39, 1
      %p351 = scmp.ne.s32.totalorder %s346, %s348
      %p352 = scmp.eq.s32.totalorder %s39, 0
      %p353 = por %p351, %p352
      %p354 = scmp.ne.s32.totalorder %s346, %s348
      %p355 = scmp.eq.s32.totalorder %s44, 1
      %p356 = por %p354, %p355
      %p357 = scmp.ne.s32.totalorder %s348, %s349
      %p358 = scmp.eq.s32.totalorder %s44, 0
      %p359 = por %p357, %p358
      %p360 = scmp.ne.s32.totalorder %s348, %s349
      %p361 = scmp.eq.s32.totalorder %s45, 1
      %p362 = por %p360, %p361
      %p364 = scmp.ne.s32.totalorder %s349, %s363
      %p365 = scmp.eq.s32.totalorder %s45, 0
      %p366 = por %p364, %p365
      %s368 = sadd.s32 %s367, 1
      %p371 = scmp.eq.s32.totalorder %s39, 1
      %p372 = scmp.ne.s32.totalorder %s367, %s369
      %p373 = scmp.eq.s32.totalorder %s39, 0
      %p374 = por %p372, %p373
      %p375 = scmp.ne.s32.totalorder %s367, %s369
      %p376 = scmp.eq.s32.totalorder %s44, 1
      %p377 = por %p375, %p376
      %p378 = scmp.ne.s32.totalorder %s369, %s370
      %p379 = scmp.eq.s32.totalorder %s44, 0
      %p380 = por %p378, %p379
      %p381 = scmp.ne.s32.totalorder %s369, %s370
      %p382 = scmp.eq.s32.totalorder %s45, 1
      %p383 = por %p381, %p382
      %p385 = scmp.ne.s32.totalorder %s370, %s384
      %p386 = scmp.eq.s32.totalorder %s45, 0
      %p387 = por %p385, %p386
      %s389 = sadd.s32 %s388, 1
      %p392 = scmp.eq.s32.totalorder %s39, 1
      %p393 = scmp.ne.s32.totalorder %s388, %s390
      %p394 = scmp.eq.s32.totalorder %s39, 0
      %p395 = por %p393, %p394
      %p396 = scmp.ne.s32.totalorder %s388, %s390
      %p397 = scmp.eq.s32.totalorder %s44, 1
      %p398 = por %p396, %p397
      %p399 = scmp.ne.s32.totalorder %s390, %s391
      %p400 = scmp.eq.s32.totalorder %s44, 0
      %p401 = por %p399, %p400
      %p402 = scmp.ne.s32.totalorder %s390, %s391
      %p403 = scmp.eq.s32.totalorder %s45, 1
      %p404 = por %p402, %p403
      %p406 = scmp.ne.s32.totalorder %s391, %s405
      %p407 = scmp.eq.s32.totalorder %s45, 0
      %p408 = por %p406, %p407
      %s410 = sadd.s32 %s409, 1
      %p413 = scmp.eq.s32.totalorder %s39, 1
      %p414 = scmp.ne.s32.totalorder %s409, %s411
      %p415 = scmp.eq.s32.totalorder %s39, 0
      %p416 = por %p414, %p415
      %p417 = scmp.ne.s32.totalorder %s409, %s411
      %p418 = scmp.eq.s32.totalorder %s44, 1
      %p419 = por %p417, %p418
      %p420 = scmp.ne.s32.totalorder %s411, %s412
      %p421 = scmp.eq.s32.totalorder %s44, 0
      %p422 = por %p420, %p421
      %p423 = scmp.ne.s32.totalorder %s411, %s412
      %p424 = scmp.eq.s32.totalorder %s45, 1
      %p425 = por %p423, %p424
      %p427 = scmp.ne.s32.totalorder %s412, %s426
      %p428 = scmp.eq.s32.totalorder %s45, 0
      %p429 = por %p427, %p428
      %s431 = sadd.s32 %s430, 1
      %p434 = scmp.eq.s32.totalorder %s39, 1
      %p435 = scmp.ne.s32.totalorder %s430, %s432
      %p436 = scmp.eq.s32.totalorder %s39, 0
      %p437 = por %p435, %p436
      %p438 = scmp.ne.s32.totalorder %s430, %s432
      %p439 = scmp.eq.s32.totalorder %s44, 1
      %p440 = por %p438, %p439
      %p441 = scmp.ne.s32.totalorder %s432, %s433
      %p442 = scmp.eq.s32.totalorder %s44, 0
      %p443 = por %p441, %p442
      %p444 = scmp.ne.s32.totalorder %s432, %s433
      %p445 = scmp.eq.s32.totalorder %s45, 1
      %p446 = por %p444, %p445
      %p448 = scmp.ne.s32.totalorder %s433, %s447
      %p449 = scmp.eq.s32.totalorder %s45, 0
      %p450 = por %p448, %p449
      %s452 = sadd.s32 %s451, 1
      %p455 = scmp.eq.s32.totalorder %s39, 1
      %p456 = scmp.ne.s32.totalorder %s451, %s453
      %p457 = scmp.eq.s32.totalorder %s39, 0
      %p458 = por %p456, %p457
      %p459 = scmp.ne.s32.totalorder %s451, %s453
      %p460 = scmp.eq.s32.totalorder %s44, 1
      %p461 = por %p459, %p460
      %p462 = scmp.ne.s32.totalorder %s453, %s454
      %p463 = scmp.eq.s32.totalorder %s44, 0
      %p464 = por %p462, %p463
      %p465 = scmp.ne.s32.totalorder %s453, %s454
      %p466 = scmp.eq.s32.totalorder %s45, 1
      %p467 = por %p465, %p466
      %p469 = scmp.ne.s32.totalorder %s454, %s468
      %p470 = scmp.eq.s32.totalorder %s45, 0
      %p471 = por %p469, %p470
      %s473 = sadd.s32 %s472, 1
      %p476 = scmp.eq.s32.totalorder %s39, 1
      %p477 = scmp.ne.s32.totalorder %s472, %s474
      %p478 = scmp.eq.s32.totalorder %s39, 0
      %p479 = por %p477, %p478
      %p480 = scmp.ne.s32.totalorder %s472, %s474
      %p481 = scmp.eq.s32.totalorder %s44, 1
      %p482 = por %p480, %p481
      %p483 = scmp.ne.s32.totalorder %s474, %s475
      %p484 = scmp.eq.s32.totalorder %s44, 0
      %p485 = por %p483, %p484
      %p486 = scmp.ne.s32.totalorder %s474, %s475
      %p487 = scmp.eq.s32.totalorder %s45, 1
      %p488 = por %p486, %p487
      %p490 = scmp.ne.s32.totalorder %s475, %s489
      %p491 = scmp.eq.s32.totalorder %s45, 0
      %p492 = por %p490, %p491
      %s494 = sadd.s32 %s493, 1
      %p497 = scmp.eq.s32.totalorder %s39, 1
      %p498 = scmp.ne.s32.totalorder %s493, %s495
      %p499 = scmp.eq.s32.totalorder %s39, 0
      %p500 = por %p498, %p499
      %p501 = scmp.ne.s32.totalorder %s493, %s495
      %p502 = scmp.eq.s32.totalorder %s44, 1
      %p503 = por %p501, %p502
      %p504 = scmp.ne.s32.totalorder %s495, %s496
      %p505 = scmp.eq.s32.totalorder %s44, 0
      %p506 = por %p504, %p505
      %p507 = scmp.ne.s32.totalorder %s495, %s496
      %p508 = scmp.eq.s32.totalorder %s45, 1
      %p509 = por %p507, %p508
      %p511 = scmp.ne.s32.totalorder %s496, %s510
      %p512 = scmp.eq.s32.totalorder %s45, 0
      %p513 = por %p511, %p512
      %s515 = sadd.s32 %s514, 1
      %p518 = scmp.eq.s32.totalorder %s39, 1
      %p519 = scmp.ne.s32.totalorder %s514, %s516
      %p520 = scmp.eq.s32.totalorder %s39, 0
      %p521 = por %p519, %p520
      %p522 = scmp.ne.s32.totalorder %s514, %s516
      %p523 = scmp.eq.s32.totalorder %s44, 1
      %p524 = por %p522, %p523
      %p525 = scmp.ne.s32.totalorder %s516, %s517
      %p526 = scmp.eq.s32.totalorder %s44, 0
      %p527 = por %p525, %p526
      %p528 = scmp.ne.s32.totalorder %s516, %s517
      %p529 = scmp.eq.s32.totalorder %s45, 1
      %p530 = por %p528, %p529
      %p532 = scmp.ne.s32.totalorder %s517, %s531
      %p533 = scmp.eq.s32.totalorder %s45, 0
      %p534 = por %p532, %p533
      %s535 = ssub.s32 %s39, %s46
      %p536 = scmp.eq.s32.totalorder %s535, 0
      %s538 = sadd.s32 %s537, 1
      %s539 = scalar_select %p536, %s537, %s538
      %p542 = pneg %p536
      %p543 = scmp.eq.s32.totalorder %s39, 1
      %p544 = por %p542, %p543
      %p545 = scmp.ne.s32.totalorder %s537, %s540
      %p546 = scmp.eq.s32.totalorder %s39, 0
      %p547 = por %p545, %p546
      %p548 = scmp.ne.s32.totalorder %s537, %s540
      %p549 = scmp.eq.s32.totalorder %s44, 1
      %p550 = por %p548, %p549
      %p551 = scmp.ne.s32.totalorder %s540, %s541
      %p552 = scmp.eq.s32.totalorder %s44, 0
      %p553 = por %p551, %p552
      %p554 = scmp.ne.s32.totalorder %s540, %s541
      %p555 = scmp.eq.s32.totalorder %s45, 1
      %p556 = por %p554, %p555
      %p558 = scmp.ne.s32.totalorder %s541, %s557
      %p559 = scmp.eq.s32.totalorder %s45, 0
      %p560 = por %p558, %p559
      %p561 = scmp.le.s32.totalorder 1, %s39
      %p562 = scmp.lt.s32.totalorder %s39, 3
      %p563 = pnand %p561, %p562
      %p564 = pneg %p563
      // Predicated region
      $region9: #{tpu_custom_call.1} parent=5 // pred_check
        _
      $region10: #{tpu_custom_call.1} parent=5 // pred_check_branch
        %566 = sbr.rel (%p563) target = $region12
      $region11: #{tpu_custom_call.1} parent=5 // pred_region
        %s567 = ssub.s32 %s39, 1
        // Predicated region
        $region13: #{tpu_custom_call.1} parent=11 // pred_check
          %p568 = pneg %p86
        $region14: #{tpu_custom_call.1} parent=11 // pred_check_branch
          %570 = sbr.rel (%p568) target = $region16
        $region15: #{tpu_custom_call.1} parent=11 // pred_region
          _
        $region16: #{tpu_custom_call.1} parent=11 // pred_fallthru
          _
        // Predicated region
        $region17: #{tpu_custom_call.1} parent=11 // pred_check
          %p571 = pneg %p107
        $region18: #{tpu_custom_call.1} parent=11 // pred_check_branch
          %573 = sbr.rel (%p571) target = $region20
        $region19: #{tpu_custom_call.1} parent=11 // pred_region
          %575 = vsyncadd [#allocation3], 0
          %s577 = sshll.u32 %s2, 4
          %s578 = int_to_ptr.hbm [resolvable:$true] %s577
          %s579 = sshll.u32 [#allocation2], 4
          %s580 = int_to_ptr.vmem [resolvable:$true] %s579
          %582 = dma.hbm_to_vmem [thread:$0]  %s578, 16, %s580, [#allocation3]
        $region20: #{tpu_custom_call.1} parent=11 // pred_fallthru
          _
        // Predicated region
        $region21: #{tpu_custom_call.1} parent=11 // pred_check
          %p583 = pneg %p128
        $region22: #{tpu_custom_call.1} parent=11 // pred_check_branch
          %585 = sbr.rel (%p583) target = $region24
        $region23: #{tpu_custom_call.1} parent=11 // pred_region
          %587 = vsyncadd [#allocation6], 0
          %s589 = sshll.u32 %s3, 4
          %s590 = int_to_ptr.hbm [resolvable:$true] %s589
          %s591 = sshll.u32 [#allocation5], 4
          %s592 = int_to_ptr.vmem [resolvable:$true] %s591
          %594 = dma.hbm_to_vmem [thread:$0]  %s590, 16, %s592, [#allocation6]
        $region24: #{tpu_custom_call.1} parent=11 // pred_fallthru
          _
        // Predicated region
        $region25: #{tpu_custom_call.1} parent=11 // pred_check
          %p595 = pneg %p149
        $region26: #{tpu_custom_call.1} parent=11 // pred_check_branch
          %597 = sbr.rel (%p595) target = $region28
        $region27: #{tpu_custom_call.1} parent=11 // pred_region
          _
        $region28: #{tpu_custom_call.1} parent=11 // pred_fallthru
          _
        // Predicated region
        $region29: #{tpu_custom_call.1} parent=11 // pred_check
          %p598 = pneg %p170
        $region30: #{tpu_custom_call.1} parent=11 // pred_check_branch
          %600 = sbr.rel (%p598) target = $region32
        $region31: #{tpu_custom_call.1} parent=11 // pred_region
          %602 = vsyncadd [#allocation6], 0
          %s604 = sshll.u32 %s5, 4
          %s605 = int_to_ptr.hbm [resolvable:$true] %s604
          %s606 = sshll.u32 [#allocation7], 4
          %s607 = int_to_ptr.vmem [resolvable:$true] %s606
          %609 = dma.hbm_to_vmem [thread:$0]  %s605, 16, %s607, [#allocation6]
        $region32: #{tpu_custom_call.1} parent=11 // pred_fallthru
          _
        // Predicated region
        $region33: #{tpu_custom_call.1} parent=11 // pred_check
          %p610 = pneg %p191
        $region34: #{tpu_custom_call.1} parent=11 // pred_check_branch
          %612 = sbr.rel (%p610) target = $region36
        $region35: #{tpu_custom_call.1} parent=11 // pred_region
          %614 = vsyncadd [#allocation9], 0
          %s616 = sshll.u32 %s6, 4
          %s617 = int_to_ptr.hbm [resolvable:$true] %s616
          %s618 = sshll.u32 [#allocation8], 4
          %s619 = int_to_ptr.vmem [resolvable:$true] %s618
          %621 = dma.hbm_to_vmem [thread:$0]  %s617, 16, %s619, [#allocation9]
        $region36: #{tpu_custom_call.1} parent=11 // pred_fallthru
          _
        // Predicated region
        $region37: #{tpu_custom_call.1} parent=11 // pred_check
          %p622 = pneg %p212
        $region38: #{tpu_custom_call.1} parent=11 // pred_check_branch
          %624 = sbr.rel (%p622) target = $region40
        $region39: #{tpu_custom_call.1} parent=11 // pred_region
          _
        $region40: #{tpu_custom_call.1} parent=11 // pred_fallthru
          _
        // Predicated region
        $region41: #{tpu_custom_call.1} parent=11 // pred_check
          %p625 = pneg %p233
        $region42: #{tpu_custom_call.1} parent=11 // pred_check_branch
          %627 = sbr.rel (%p625) target = $region44
        $region43: #{tpu_custom_call.1} parent=11 // pred_region
          %629 = vsyncadd [#allocation9], 0
          %s631 = sshll.u32 %s8, 4
          %s632 = int_to_ptr.hbm [resolvable:$true] %s631
          %s633 = sshll.u32 [#allocation10], 4
          %s634 = int_to_ptr.vmem [resolvable:$true] %s633
          %636 = dma.hbm_to_vmem [thread:$0]  %s632, 16, %s634, [#allocation9]
        $region44: #{tpu_custom_call.1} parent=11 // pred_fallthru
          _
        // Predicated region
        $region45: #{tpu_custom_call.1} parent=11 // pred_check
          %p637 = pneg %p254
        $region46: #{tpu_custom_call.1} parent=11 // pred_check_branch
          %639 = sbr.rel (%p637) target = $region48
        $region47: #{tpu_custom_call.1} parent=11 // pred_region
          %641 = vsyncadd [#allocation12], 0
          %s643 = sshll.u32 %s9, 4
          %s644 = int_to_ptr.hbm [resolvable:$true] %s643
          %s645 = sshll.u32 [#allocation11], 4
          %s646 = int_to_ptr.vmem [resolvable:$true] %s645
          %648 = dma.hbm_to_vmem [thread:$0]  %s644, 16, %s646, [#allocation12]
        $region48: #{tpu_custom_call.1} parent=11 // pred_fallthru
          _
        // Predicated region
        $region49: #{tpu_custom_call.1} parent=11 // pred_check
          %p649 = pneg %p275
        $region50: #{tpu_custom_call.1} parent=11 // pred_check_branch
          %651 = sbr.rel (%p649) target = $region52
        $region51: #{tpu_custom_call.1} parent=11 // pred_region
          %653 = vsyncadd [#allocation12], 0
          %s655 = sshll.u32 %s10, 4
          %s656 = int_to_ptr.hbm [resolvable:$true] %s655
          %s657 = sshll.u32 [#allocation13], 4
          %s658 = int_to_ptr.vmem [resolvable:$true] %s657
          %660 = dma.hbm_to_vmem [thread:$0]  %s656, 16, %s658, [#allocation12]
        $region52: #{tpu_custom_call.1} parent=11 // pred_fallthru
          _
        // Predicated region
        $region53: #{tpu_custom_call.1} parent=11 // pred_check
          %p661 = pneg %p296
        $region54: #{tpu_custom_call.1} parent=11 // pred_check_branch
          %663 = sbr.rel (%p661) target = $region56
        $region55: #{tpu_custom_call.1} parent=11 // pred_region
          _
        $region56: #{tpu_custom_call.1} parent=11 // pred_fallthru
          _
        // Predicated region
        $region57: #{tpu_custom_call.1} parent=11 // pred_check
          %p664 = pneg %p317
        $region58: #{tpu_custom_call.1} parent=11 // pred_check_branch
          %666 = sbr.rel (%p664) target = $region60
        $region59: #{tpu_custom_call.1} parent=11 // pred_region
          _
        $region60: #{tpu_custom_call.1} parent=11 // pred_fallthru
          _
        // Predicated region
        $region61: #{tpu_custom_call.1} parent=11 // pred_check
          %p667 = pneg %p338
        $region62: #{tpu_custom_call.1} parent=11 // pred_check_branch
          %669 = sbr.rel (%p667) target = $region64
        $region63: #{tpu_custom_call.1} parent=11 // pred_region
          %671 = vsyncadd [#allocation15], 0
          %s672 = sshll.u32 %s13, 4
          %s673 = int_to_ptr.hbm [resolvable:$true] %s672
          %s674 = sshll.u32 [#allocation14], 4
          %s675 = int_to_ptr.vmem [resolvable:$true] %s674
          %680 = dma.hbm_to_vmem [thread:$0]  %s673, 1024, %s675, [#allocation15], 128, 128, 8
        $region64: #{tpu_custom_call.1} parent=11 // pred_fallthru
          _
        // Predicated region
        $region65: #{tpu_custom_call.1} parent=11 // pred_check
          %p681 = pneg %p359
        $region66: #{tpu_custom_call.1} parent=11 // pred_check_branch
          %683 = sbr.rel (%p681) target = $region68
        $region67: #{tpu_custom_call.1} parent=11 // pred_region
          _
        $region68: #{tpu_custom_call.1} parent=11 // pred_fallthru
          _
        // Predicated region
        $region69: #{tpu_custom_call.1} parent=11 // pred_check
          %p684 = pneg %p380
        $region70: #{tpu_custom_call.1} parent=11 // pred_check_branch
          %686 = sbr.rel (%p684) target = $region72
        $region71: #{tpu_custom_call.1} parent=11 // pred_region
          _
        $region72: #{tpu_custom_call.1} parent=11 // pred_fallthru
          _
        // Predicated region
        $region73: #{tpu_custom_call.1} parent=11 // pred_check
          %p687 = pneg %p401
        $region74: #{tpu_custom_call.1} parent=11 // pred_check_branch
          %689 = sbr.rel (%p687) target = $region76
        $region75: #{tpu_custom_call.1} parent=11 // pred_region
          %691 = vsyncadd [#allocation15], 0
          %s692 = sshll.u32 %s16, 4
          %s693 = int_to_ptr.hbm [resolvable:$true] %s692
          %s694 = sshll.u32 [#allocation16], 4
          %s695 = int_to_ptr.vmem [resolvable:$true] %s694
          %700 = dma.hbm_to_vmem [thread:$0]  %s693, 32, %s695, [#allocation15], 16, 16, 1
        $region76: #{tpu_custom_call.1} parent=11 // pred_fallthru
          _
        // Predicated region
        $region77: #{tpu_custom_call.1} parent=11 // pred_check
          %p701 = pneg %p422
        $region78: #{tpu_custom_call.1} parent=11 // pred_check_branch
          %703 = sbr.rel (%p701) target = $region80
        $region79: #{tpu_custom_call.1} parent=11 // pred_region
          %705 = vsyncadd [#allocation18], 0
          %s706 = sshll.u32 %s17, 4
          %s707 = int_to_ptr.hbm [resolvable:$true] %s706
          %s708 = sshll.u32 [#allocation17], 4
          %s709 = int_to_ptr.vmem [resolvable:$true] %s708
          %714 = dma.hbm_to_vmem [thread:$0]  %s707, 1024, %s709, [#allocation18], 128, 128, 8
        $region80: #{tpu_custom_call.1} parent=11 // pred_fallthru
          _
        // Predicated region
        $region81: #{tpu_custom_call.1} parent=11 // pred_check
          %p715 = pneg %p443
        $region82: #{tpu_custom_call.1} parent=11 // pred_check_branch
          %717 = sbr.rel (%p715) target = $region84
        $region83: #{tpu_custom_call.1} parent=11 // pred_region
          %719 = vsyncadd [#allocation18], 0
          %s720 = sshll.u32 %s18, 4
          %s721 = int_to_ptr.hbm [resolvable:$true] %s720
          %s722 = sshll.u32 [#allocation19], 4
          %s723 = int_to_ptr.vmem [resolvable:$true] %s722
          %728 = dma.hbm_to_vmem [thread:$0]  %s721, 32, %s723, [#allocation18], 16, 16, 1
        $region84: #{tpu_custom_call.1} parent=11 // pred_fallthru
          _
        // Predicated region
        $region85: #{tpu_custom_call.1} parent=11 // pred_check
          %p729 = pneg %p464
        $region86: #{tpu_custom_call.1} parent=11 // pred_check_branch
          %731 = sbr.rel (%p729) target = $region88
        $region87: #{tpu_custom_call.1} parent=11 // pred_region
          _
        $region88: #{tpu_custom_call.1} parent=11 // pred_fallthru
          _
        // Predicated region
        $region89: #{tpu_custom_call.1} parent=11 // pred_check
          %p732 = pneg %p485
        $region90: #{tpu_custom_call.1} parent=11 // pred_check_branch
          %734 = sbr.rel (%p732) target = $region92
        $region91: #{tpu_custom_call.1} parent=11 // pred_region
          %736 = vsyncadd [#allocation21], 0
          %s737 = sshll.u32 %s20, 4
          %s738 = int_to_ptr.hbm [resolvable:$true] %s737
          %s739 = sshll.u32 [#allocation20], 4
          %s740 = int_to_ptr.vmem [resolvable:$true] %s739
          %745 = dma.hbm_to_vmem [thread:$0]  %s738, 32, %s740, [#allocation21], 16, 16, 1
        $region92: #{tpu_custom_call.1} parent=11 // pred_fallthru
          _
        // Predicated region
        $region93: #{tpu_custom_call.1} parent=11 // pred_check
          %p746 = pneg %p506
        $region94: #{tpu_custom_call.1} parent=11 // pred_check_branch
          %748 = sbr.rel (%p746) target = $region96
        $region95: #{tpu_custom_call.1} parent=11 // pred_region
          _
        $region96: #{tpu_custom_call.1} parent=11 // pred_fallthru
          _
        // Predicated region
        $region97: #{tpu_custom_call.1} parent=11 // pred_check
          %p749 = pneg %p527
        $region98: #{tpu_custom_call.1} parent=11 // pred_check_branch
          %751 = sbr.rel (%p749) target = $region100
        $region99: #{tpu_custom_call.1} parent=11 // pred_region
          %753 = vsyncadd [#allocation21], 0
          %s754 = sshll.u32 %s22, 4
          %s755 = int_to_ptr.hbm [resolvable:$true] %s754
          %s756 = sshll.u32 [#allocation22], 4
          %s757 = int_to_ptr.vmem [resolvable:$true] %s756
          %762 = dma.hbm_to_vmem [thread:$0]  %s755, 32, %s757, [#allocation21], 16, 16, 1
        $region100: #{tpu_custom_call.1} parent=11 // pred_fallthru
          _
      $region12: #{tpu_custom_call.1} parent=5 // pred_fallthru
        _
      %p763 = scmp.lt.s32.totalorder %s39, 2
      // Predicated region
      $region101: #{tpu_custom_call.1} parent=5 // pred_check
        %p764 = pneg %p763
      $region102: #{tpu_custom_call.1} parent=5 // pred_check_branch
        %766 = sbr.rel (%p764) target = $region104
      $region103: #{tpu_custom_call.1} parent=5 // pred_region
        // Predicated region
        $region105: #{tpu_custom_call.1} parent=103 // pred_check
          %p767 = pneg %p59
        $region106: #{tpu_custom_call.1} parent=103 // pred_check_branch
          %769 = sbr.rel (%p767) target = $region108
        $region107: #{tpu_custom_call.1} parent=103 // pred_region
          %p770 = scmp.lt.s32.totalorder %s39, 1
          %s771 = scalar_select %p770, %s39, 1
          %s772 = smul.addr %s771, 3
          %s773 = smul.addr %s772, 8
          %s774 = scalar_lea.vmem %s0, %s773
        $region108: #{tpu_custom_call.1} parent=103 // pred_fallthru
          _
      $region104: #{tpu_custom_call.1} parent=5 // pred_fallthru
        _
      %p775 = scmp.le.s32.totalorder 1, %s39
      %p776 = scmp.lt.s32.totalorder %s39, 3
      %p777 = pnand %p775, %p776
      %p778 = pneg %p777
      // Predicated region
      $region109: #{tpu_custom_call.1} parent=5 // pred_check
        _
      $region110: #{tpu_custom_call.1} parent=5 // pred_check_branch
        %780 = sbr.rel (%p777) target = $region112
      $region111: #{tpu_custom_call.1} parent=5 // pred_region
        %s781 = ssub.s32 %s39, 1
        // Predicated region
        $region113: #{tpu_custom_call.1} parent=111 // pred_check
          %p782 = pneg %p107
        $region114: #{tpu_custom_call.1} parent=111 // pred_check_branch
          %784 = sbr.rel (%p782) target = $region116
        $region115: #{tpu_custom_call.1} parent=111 // pred_region
          %786 = dma.done [#allocation3], 16
        $region116: #{tpu_custom_call.1} parent=111 // pred_fallthru
          _
        // Predicated region
        $region117: #{tpu_custom_call.1} parent=111 // pred_check
          %p787 = pneg %p128
        $region118: #{tpu_custom_call.1} parent=111 // pred_check_branch
          %789 = sbr.rel (%p787) target = $region120
        $region119: #{tpu_custom_call.1} parent=111 // pred_region
          %791 = dma.done [#allocation6], 16
        $region120: #{tpu_custom_call.1} parent=111 // pred_fallthru
          _
        // Predicated region
        $region121: #{tpu_custom_call.1} parent=111 // pred_check
          %p792 = pneg %p170
        $region122: #{tpu_custom_call.1} parent=111 // pred_check_branch
          %794 = sbr.rel (%p792) target = $region124
        $region123: #{tpu_custom_call.1} parent=111 // pred_region
          %796 = dma.done [#allocation6], 16
        $region124: #{tpu_custom_call.1} parent=111 // pred_fallthru
          _
        // Predicated region
        $region125: #{tpu_custom_call.1} parent=111 // pred_check
          %p797 = pneg %p191
        $region126: #{tpu_custom_call.1} parent=111 // pred_check_branch
          %799 = sbr.rel (%p797) target = $region128
        $region127: #{tpu_custom_call.1} parent=111 // pred_region
          %801 = dma.done [#allocation9], 16
        $region128: #{tpu_custom_call.1} parent=111 // pred_fallthru
          _
        // Predicated region
        $region129: #{tpu_custom_call.1} parent=111 // pred_check
          %p802 = pneg %p233
        $region130: #{tpu_custom_call.1} parent=111 // pred_check_branch
          %804 = sbr.rel (%p802) target = $region132
        $region131: #{tpu_custom_call.1} parent=111 // pred_region
          %806 = dma.done [#allocation9], 16
        $region132: #{tpu_custom_call.1} parent=111 // pred_fallthru
          _
        // Predicated region
        $region133: #{tpu_custom_call.1} parent=111 // pred_check
          %p807 = pneg %p254
        $region134: #{tpu_custom_call.1} parent=111 // pred_check_branch
          %809 = sbr.rel (%p807) target = $region136
        $region135: #{tpu_custom_call.1} parent=111 // pred_region
          %811 = dma.done [#allocation12], 16
        $region136: #{tpu_custom_call.1} parent=111 // pred_fallthru
          _
        // Predicated region
        $region137: #{tpu_custom_call.1} parent=111 // pred_check
          %p812 = pneg %p275
        $region138: #{tpu_custom_call.1} parent=111 // pred_check_branch
          %814 = sbr.rel (%p812) target = $region140
        $region139: #{tpu_custom_call.1} parent=111 // pred_region
          %816 = dma.done [#allocation12], 16
        $region140: #{tpu_custom_call.1} parent=111 // pred_fallthru
          _
        // Predicated region
        $region141: #{tpu_custom_call.1} parent=111 // pred_check
          %p817 = pneg %p338
        $region142: #{tpu_custom_call.1} parent=111 // pred_check_branch
          %819 = sbr.rel (%p817) target = $region144
        $region143: #{tpu_custom_call.1} parent=111 // pred_region
          %821 = dma.done [#allocation15], 1024
        $region144: #{tpu_custom_call.1} parent=111 // pred_fallthru
          _
        // Predicated region
        $region145: #{tpu_custom_call.1} parent=111 // pred_check
          %p822 = pneg %p401
        $region146: #{tpu_custom_call.1} parent=111 // pred_check_branch
          %824 = sbr.rel (%p822) target = $region148
        $region147: #{tpu_custom_call.1} parent=111 // pred_region
          %826 = dma.done [#allocation15], 32
        $region148: #{tpu_custom_call.1} parent=111 // pred_fallthru
          _
        // Predicated region
        $region149: #{tpu_custom_call.1} parent=111 // pred_check
          %p827 = pneg %p422
        $region150: #{tpu_custom_call.1} parent=111 // pred_check_branch
          %829 = sbr.rel (%p827) target = $region152
        $region151: #{tpu_custom_call.1} parent=111 // pred_region
          %831 = dma.done [#allocation18], 1024
        $region152: #{tpu_custom_call.1} parent=111 // pred_fallthru
          _
        // Predicated region
        $region153: #{tpu_custom_call.1} parent=111 // pred_check
          %p832 = pneg %p443
        $region154: #{tpu_custom_call.1} parent=111 // pred_check_branch
          %834 = sbr.rel (%p832) target = $region156
        $region155: #{tpu_custom_call.1} parent=111 // pred_region
          %836 = dma.done [#allocation18], 32
        $region156: #{tpu_custom_call.1} parent=111 // pred_fallthru
          _
        // Predicated region
        $region157: #{tpu_custom_call.1} parent=111 // pred_check
          %p837 = pneg %p485
        $region158: #{tpu_custom_call.1} parent=111 // pred_check_branch
          %839 = sbr.rel (%p837) target = $region160
        $region159: #{tpu_custom_call.1} parent=111 // pred_region
          %841 = dma.done [#allocation21], 32
        $region160: #{tpu_custom_call.1} parent=111 // pred_fallthru
          _
        // Predicated region
        $region161: #{tpu_custom_call.1} parent=111 // pred_check
          %p842 = pneg %p527
        $region162: #{tpu_custom_call.1} parent=111 // pred_check_branch
          %844 = sbr.rel (%p842) target = $region164
        $region163: #{tpu_custom_call.1} parent=111 // pred_region
          %846 = dma.done [#allocation21], 32
        $region164: #{tpu_custom_call.1} parent=111 // pred_fallthru
          _
        %p847 = scmp.lt.s32.totalorder %s44, 1
        %s848 = scalar_select %p847, %s44, 1
        %s849 = smul.addr %s848, 3
        %s850 = smul.addr %s849, 8
        %s851 = scalar_lea.vmem %s0, %s850
        %p852 = pneg %p65
        %p853 = pneg %p62
        %p854 = pneg %p86
        %p855 = pneg %p83
        %p856 = pneg %p107
        %p857 = pneg %p104
        %p858 = pneg %p128
        %p859 = pneg %p125
        %p860 = pneg %p149
        %p861 = pneg %p146
        %p862 = pneg %p170
        %p863 = pneg %p167
        %p864 = pneg %p191
        %p865 = pneg %p188
        %p866 = pneg %p212
        %p867 = pneg %p209
        %p868 = pneg %p233
        %p869 = pneg %p230
        %p870 = pneg %p254
        %p871 = pneg %p251
        %p872 = pneg %p275
        %p873 = pneg %p272
        %p874 = pneg %p296
        %p875 = pneg %p293
        %p876 = pneg %p317
        %p877 = pneg %p314
        %p878 = pneg %p338
        %p879 = pneg %p335
        %p880 = pneg %p359
        %p881 = pneg %p356
        %p882 = pneg %p380
        %p883 = pneg %p377
        %p884 = pneg %p401
        %p885 = pneg %p398
        %p886 = pneg %p422
        %p887 = pneg %p419
        %p888 = pneg %p443
        %p889 = pneg %p440
        %p890 = pneg %p464
        %p891 = pneg %p461
        %p892 = pneg %p485
        %p893 = pneg %p482
        %p894 = pneg %p506
        %p895 = pneg %p503
        %p896 = pneg %p527
        %p897 = pneg %p524
        %p898 = pneg %p553
        %p899 = pneg %p550
        %s900 = sand.u32 %s540, 1
        %s901 = scalar_lea.sflag [#allocation4], %s900
        %s902 = sand.u32 %s540, 1
        %s903 = scalar_lea.vmem [#allocation23], %s902
        %p904 = scmp.lt.s32.totalorder %s44, 1
        %s905 = scalar_select %p904, %s44, 1
        %s906 = smul.addr %s905, 3
        %s907 = smul.addr %s906, 8
        %s908 = scalar_lea.vmem %s0, %s907
        %v909 = vld [vmem:[%s908] sm:$0xff]
        %v910 = vld [vmem:[%s908 + $0x8] sm:$0xff]
        %v911 = vld [vmem:[%s908 + $0x10] sm:$0x1]
        %vm912 = vcmask 80896
        %v913 = vsel %vm912, %v909, 0.0
        %v914 = vsel %vm912, %v910, 0.0
        %v915 = vadd.f32 %v913, %v914
        %vm916 = vcmask 73728
        %v917 = vsel %vm916, %v911, 0.0
        %v918 = vadd.f32 %v915, %v917
        %919 = vadd.xlane.f32.xlu0 %v918
        %v920 = vpop.xlane.xlu0 %919
        %v921 = vrot.slane %v920, 4
        %v922 = vadd.f32 %v920, %v921
        %v923 = vrot.slane %v922, 2
        %v924 = vadd.f32 %v922, %v923
        %v925 = vrot.slane %v924, 1
        %v926 = vadd.f32 %v924, %v925
        %s927 = vtos %v926
        %v928 = vstv %s927
        %v929 = vrcp.pop 170.0
        %v930 = vmul.f32 170.0, %v929
        %v931 = vsub.f32 1.0, %v930
        %v932 = vmul.f32 %v929, %v931
        %v933 = vadd.f32 %v929, %v932
        %vm934 = vweird.f32 %v929
        %v935 = vsel %vm934, %v929, %v933
        %v936 = vmul.f32 %v928, %v935
        %v937 = vmul.f32 %v909, %v909
        %v938 = vmul.f32 %v910, %v910
        %v939 = vmul.f32 %v911, %v911
        %v940 = vsel %vm912, %v937, 0.0
        %v941 = vsel %vm912, %v938, 0.0
        %v942 = vadd.f32 %v940, %v941
        %v943 = vsel %vm916, %v939, 0.0
        %v944 = vadd.f32 %v942, %v943
        %945 = vadd.xlane.f32.xlu0 %v944
        %v946 = vpop.xlane.xlu0 %945
        %v947 = vrot.slane %v946, 4
        %v948 = vadd.f32 %v946, %v947
        %v949 = vrot.slane %v948, 2
        %v950 = vadd.f32 %v948, %v949
        %v951 = vrot.slane %v950, 1
        %v952 = vadd.f32 %v950, %v951
        %s953 = vtos %v952
        %v954 = vstv %s953
        %v955 = vmul.f32 %v954, %v935
        %v956 = vmul.f32 %v936, %v936
        %v957 = vsub.f32 %v955, %v956
        %v958 = vsub.f32 %v909, %v936
        %v959 = vsub.f32 %v910, %v936
        %v960 = vsub.f32 %v911, %v936
        %v961 = vadd.f32 %v957, 1e-07
        %v962 = vrsqrt.pop %v961
        %v963 = vmul.f32 %v962, %v961
        %v964 = vmul.f32 %v963, %v962
        %v965 = vmul.f32 0.5, %v964
        %v966 = vsub.f32 1.5, %v965
        %v967 = vmul.f32 %v962, %v966
        %vm968 = vweird.f32 %v961
        %vm969 = vweird.f32 %v962
        %vm970 = vmor %vm968, %vm969
        %v971 = vsel %vm970, %v962, %v967
        %v972 = vmul.f32 %v958, %v971
        %v973 = vmul.f32 %v959, %v971
        %v974 = vmul.f32 %v960, %v971
        %v975 = vld [vmem:[%s1] sm:$0xff]
        %v976 = vld [vmem:[%s1 + $0x8] sm:$0x3]
        %978 = vset.pattern.permute.xlu0 0
        %979 = vperm.xlu0 %978, %v972
        %v980 = vpop.permute.xlu0 %979
        %983 = vset.pattern.permute.xlu0 0
        %984 = vperm.xlu0 %983, %v973
        %v985 = vpop.permute.xlu0 %984
        %988 = vset.pattern.permute.xlu0 0
        %989 = vperm.xlu0 %988, %v974
        %v990 = vpop.permute.xlu0 %989
        %v992 = vperm.slane %v975, 0
        %v993 = vmul.f32 %v980, %v992
        %v994 = vmul.f32 %v985, %v992
        %v995 = vmul.f32 %v990, %v992
        %v996 = vadd.f32 %v993, 0.0
        %v997 = vadd.f32 %v994, 0.0
        %v998 = vadd.f32 %v995, 0.0
        %999 = vset.pattern.permute.xlu0 5
        %1000 = vperm.xlu0 %999, %v972
        %v1001 = vpop.permute.xlu0 %1000
        %1003 = vset.pattern.permute.xlu0 5
        %1004 = vperm.xlu0 %1003, %v973
        %v1005 = vpop.permute.xlu0 %1004
        %v1007 = vmul.f32 %v1001, %v992
        %v1008 = vmul.f32 %v1005, %v992
        %v1009 = vadd.f32 %v1007, 0.0
        %v1010 = vadd.f32 %v1008, 0.0
        %1011 = vset.pattern.permute.xlu0 1
        %1012 = vperm.xlu0 %1011, %v972
        %v1013 = vpop.permute.xlu0 %1012
        %1015 = vset.pattern.permute.xlu0 1
        %1016 = vperm.xlu0 %1015, %v973
        %v1017 = vpop.permute.xlu0 %1016
        %1019 = vset.pattern.permute.xlu0 1
        %1020 = vperm.xlu0 %1019, %v974
        %v1021 = vpop.permute.xlu0 %1020
        %v1023 = vperm.slane %v975, 1
        %v1024 = vmul.f32 %v1013, %v1023
        %v1025 = vmul.f32 %v1017, %v1023
        %v1026 = vmul.f32 %v1021, %v1023
        %v1027 = vadd.f32 %v996, %v1024
        %v1028 = vadd.f32 %v997, %v1025
        %v1029 = vadd.f32 %v998, %v1026
        %1030 = vset.pattern.permute.xlu0 6
        %1031 = vperm.xlu0 %1030, %v972
        %v1032 = vpop.permute.xlu0 %1031
        %1034 = vset.pattern.permute.xlu0 6
        %1035 = vperm.xlu0 %1034, %v973
        %v1036 = vpop.permute.xlu0 %1035
        %v1038 = vmul.f32 %v1032, %v1023
        %v1039 = vmul.f32 %v1036, %v1023
        %v1040 = vadd.f32 %v1009, %v1038
        %v1041 = vadd.f32 %v1010, %v1039
        %1042 = vset.pattern.permute.xlu0 2
        %1043 = vperm.xlu0 %1042, %v972
        %v1044 = vpop.permute.xlu0 %1043
        %1046 = vset.pattern.permute.xlu0 2
        %1047 = vperm.xlu0 %1046, %v973
        %v1048 = vpop.permute.xlu0 %1047
        %1050 = vset.pattern.permute.xlu0 2
        %1051 = vperm.xlu0 %1050, %v974
        %v1052 = vpop.permute.xlu0 %1051
        %v1054 = vperm.slane %v975, 2
        %v1055 = vmul.f32 %v1044, %v1054
        %v1056 = vmul.f32 %v1048, %v1054
        %v1057 = vmul.f32 %v1052, %v1054
        %v1058 = vadd.f32 %v1027, %v1055
        %v1059 = vadd.f32 %v1028, %v1056
        %v1060 = vadd.f32 %v1029, %v1057
        %1061 = vset.pattern.permute.xlu0 7
        %1062 = vperm.xlu0 %1061, %v972
        %v1063 = vpop.permute.xlu0 %1062
        %1065 = vset.pattern.permute.xlu0 7
        %1066 = vperm.xlu0 %1065, %v973
        %v1067 = vpop.permute.xlu0 %1066
        %v1069 = vmul.f32 %v1063, %v1054
        %v1070 = vmul.f32 %v1067, %v1054
        %v1071 = vadd.f32 %v1040, %v1069
        %v1072 = vadd.f32 %v1041, %v1070
        %1073 = vset.pattern.permute.xlu0 3
        %1074 = vperm.xlu0 %1073, %v972
        %v1075 = vpop.permute.xlu0 %1074
        %1077 = vset.pattern.permute.xlu0 3
        %1078 = vperm.xlu0 %1077, %v973
        %v1079 = vpop.permute.xlu0 %1078
        %1081 = vset.pattern.permute.xlu0 3
        %1082 = vperm.xlu0 %1081, %v974
        %v1083 = vpop.permute.xlu0 %1082
        %v1085 = vperm.slane %v975, 3
        %v1086 = vmul.f32 %v1075, %v1085
        %v1087 = vmul.f32 %v1079, %v1085
        %v1088 = vmul.f32 %v1083, %v1085
        %v1089 = vadd.f32 %v1058, %v1086
        %v1090 = vadd.f32 %v1059, %v1087
        %v1091 = vadd.f32 %v1060, %v1088
        %1092 = vset.pattern.permute.xlu0 8
        %1093 = vperm.xlu0 %1092, %v972
        %v1094 = vpop.permute.xlu0 %1093
        %1096 = vset.pattern.permute.xlu0 8
        %1097 = vperm.xlu0 %1096, %v973
        %v1098 = vpop.permute.xlu0 %1097
        %v1100 = vmul.f32 %v1094, %v1085
        %v1101 = vmul.f32 %v1098, %v1085
        %v1102 = vadd.f32 %v1071, %v1100
        %v1103 = vadd.f32 %v1072, %v1101
        %1104 = vset.pattern.permute.xlu0 4
        %1105 = vperm.xlu0 %1104, %v972
        %v1106 = vpop.permute.xlu0 %1105
        %1108 = vset.pattern.permute.xlu0 4
        %1109 = vperm.xlu0 %1108, %v973
        %v1110 = vpop.permute.xlu0 %1109
        %1112 = vset.pattern.permute.xlu0 4
        %1113 = vperm.xlu0 %1112, %v974
        %v1114 = vpop.permute.xlu0 %1113
        %v1116 = vperm.slane %v975, 4
        %v1117 = vmul.f32 %v1106, %v1116
        %v1118 = vmul.f32 %v1110, %v1116
        %v1119 = vmul.f32 %v1114, %v1116
        %v1120 = vadd.f32 %v1089, %v1117
        %v1121 = vadd.f32 %v1090, %v1118
        %v1122 = vadd.f32 %v1091, %v1119
        %1123 = vset.pattern.permute.xlu0 9
        %1124 = vperm.xlu0 %1123, %v972
        %v1125 = vpop.permute.xlu0 %1124
        %1127 = vset.pattern.permute.xlu0 9
        %1128 = vperm.xlu0 %1127, %v973
        %v1129 = vpop.permute.xlu0 %1128
        %v1131 = vmul.f32 %v1125, %v1116
        %v1132 = vmul.f32 %v1129, %v1116
        %v1133 = vadd.f32 %v1102, %v1131
        %v1134 = vadd.f32 %v1103, %v1132
        %1135 = vset.pattern.permute.xlu0 5
        %1136 = vperm.xlu0 %1135, %v974
        %v1137 = vpop.permute.xlu0 %1136
        %v1139 = vperm.slane %v975, 5
        %v1140 = vmul.f32 %v1001, %v1139
        %v1141 = vmul.f32 %v1005, %v1139
        %v1142 = vmul.f32 %v1137, %v1139
        %v1143 = vadd.f32 %v1120, %v1140
        %v1144 = vadd.f32 %v1121, %v1141
        %v1145 = vadd.f32 %v1122, %v1142
        %v1146 = vmul.f32 %v980, %v1139
        %v1147 = vmul.f32 %v985, %v1139
        %v1148 = vmul.f32 %v990, %v1139
        %vm1152 = vcmask 1046528
        %v1153 = vrot.slane %v1146, 1
        %v1154 = vrot.slane %v1147, 1
        %v1155 = vsel %vm1152, %v1153, %v1154
        %v1156 = vrot.slane %v1148, 1
        %v1157 = vsel %vm1152, %v1154, %v1156
        %v1160 = vadd.f32 %v1133, %v1155
        %v1161 = vadd.f32 %v1134, %v1157
        %1162 = vset.pattern.permute.xlu0 6
        %1163 = vperm.xlu0 %1162, %v974
        %v1164 = vpop.permute.xlu0 %1163
        %v1166 = vperm.slane %v975, 6
        %v1167 = vmul.f32 %v1032, %v1166
        %v1168 = vmul.f32 %v1036, %v1166
        %v1169 = vmul.f32 %v1164, %v1166
        %v1170 = vadd.f32 %v1143, %v1167
        %v1171 = vadd.f32 %v1144, %v1168
        %v1172 = vadd.f32 %v1145, %v1169
        %v1173 = vmul.f32 %v1013, %v1166
        %v1174 = vmul.f32 %v1017, %v1166
        %v1175 = vmul.f32 %v1021, %v1166
        %v1179 = vrot.slane %v1173, 1
        %v1180 = vrot.slane %v1174, 1
        %v1181 = vsel %vm1152, %v1179, %v1180
        %v1182 = vrot.slane %v1175, 1
        %v1183 = vsel %vm1152, %v1180, %v1182
        %v1186 = vadd.f32 %v1160, %v1181
        %v1187 = vadd.f32 %v1161, %v1183
        %1188 = vset.pattern.permute.xlu0 7
        %1189 = vperm.xlu0 %1188, %v974
        %v1190 = vpop.permute.xlu0 %1189
        %v1192 = vperm.slane %v975, 7
        %v1193 = vmul.f32 %v1063, %v1192
        %v1194 = vmul.f32 %v1067, %v1192
        %v1195 = vmul.f32 %v1190, %v1192
        %v1196 = vadd.f32 %v1170, %v1193
        %v1197 = vadd.f32 %v1171, %v1194
        %v1198 = vadd.f32 %v1172, %v1195
        %v1199 = vmul.f32 %v1044, %v1192
        %v1200 = vmul.f32 %v1048, %v1192
        %v1201 = vmul.f32 %v1052, %v1192
        %v1205 = vrot.slane %v1199, 1
        %v1206 = vrot.slane %v1200, 1
        %v1207 = vsel %vm1152, %v1205, %v1206
        %v1208 = vrot.slane %v1201, 1
        %v1209 = vsel %vm1152, %v1206, %v1208
        %v1212 = vadd.f32 %v1186, %v1207
        %v1213 = vadd.f32 %v1187, %v1209
        %1214 = vset.pattern.permute.xlu0 8
        %1215 = vperm.xlu0 %1214, %v974
        %v1216 = vpop.permute.xlu0 %1215
        %v1218 = vperm.slane %v976, 0
        %v1219 = vmul.f32 %v1094, %v1218
        %v1220 = vmul.f32 %v1098, %v1218
        %v1221 = vmul.f32 %v1216, %v1218
        %v1222 = vadd.f32 %v1196, %v1219
        %v1223 = vadd.f32 %v1197, %v1220
        %v1224 = vadd.f32 %v1198, %v1221
        %v1225 = vmul.f32 %v1075, %v1218
        %v1226 = vmul.f32 %v1079, %v1218
        %v1227 = vmul.f32 %v1083, %v1218
        %v1231 = vrot.slane %v1225, 1
        %v1232 = vrot.slane %v1226, 1
        %v1233 = vsel %vm1152, %v1231, %v1232
        %v1234 = vrot.slane %v1227, 1
        %v1235 = vsel %vm1152, %v1232, %v1234
        %v1238 = vadd.f32 %v1212, %v1233
        %v1239 = vadd.f32 %v1213, %v1235
        %1240 = vset.pattern.permute.xlu0 9
        %1241 = vperm.xlu0 %1240, %v974
        %v1242 = vpop.permute.xlu0 %1241
        %v1244 = vperm.slane %v976, 1
        %v1245 = vmul.f32 %v1125, %v1244
        %v1246 = vmul.f32 %v1129, %v1244
        %v1247 = vmul.f32 %v1242, %v1244
        %v1248 = vadd.f32 %v1222, %v1245
        %v1249 = vadd.f32 %v1223, %v1246
        %v1250 = vadd.f32 %v1224, %v1247
        %v1251 = vmul.f32 %v1106, %v1244
        %v1252 = vmul.f32 %v1110, %v1244
        %v1253 = vmul.f32 %v1114, %v1244
        %v1257 = vrot.slane %v1251, 1
        %v1258 = vrot.slane %v1252, 1
        %v1259 = vsel %vm1152, %v1257, %v1258
        %v1260 = vrot.slane %v1253, 1
        %v1261 = vsel %vm1152, %v1258, %v1260
        %v1264 = vadd.f32 %v1238, %v1259
        %v1265 = vadd.f32 %v1239, %v1261
        %vm1266 = vcmask 261120
        %v1267 = vsel %vm1266, %v1248, 0.0
        %v1268 = vsel %vm1266, %v1249, 0.0
        %v1269 = vadd.f32 %v1267, %v1268
        %vm1270 = vcmask 253952
        %v1271 = vsel %vm1270, %v1250, 0.0
        %v1272 = vadd.f32 %v1269, %v1271
        %v1273 = vrot.slane %v1272, 4
        %v1274 = vadd.f32 %v1272, %v1273
        %v1275 = vrot.slane %v1274, 2
        %v1276 = vadd.f32 %v1274, %v1275
        %v1277 = vrot.slane %v1276, 1
        %v1278 = vadd.f32 %v1276, %v1277
        %v1279 = vsel %vm1266, %v1264, 0.0
        %v1280 = vsel %vm1266, %v1265, 0.0
        %v1281 = vadd.f32 %v1279, %v1280
        %v1282 = vrot.slane %v1281, 4
        %v1283 = vadd.f32 %v1281, %v1282
        %v1284 = vrot.slane %v1283, 2
        %v1285 = vadd.f32 %v1283, %v1284
        %v1286 = vrot.slane %v1285, 1
        %v1287 = vadd.f32 %v1285, %v1286
        %v1288 = vadd.f32 %v1278, %v1287
        %v1289 = vrcp.pop 33.0
        %v1290 = vmul.f32 33.0, %v1289
        %v1291 = vsub.f32 1.0, %v1290
        %v1292 = vmul.f32 %v1289, %v1291
        %v1293 = vadd.f32 %v1289, %v1292
        %vm1294 = vweird.f32 %v1289
        %v1295 = vsel %vm1294, %v1289, %v1293
        %v1296 = vmul.f32 %v1288, %v1295
        %v1297 = vsub.f32 %v1248, %v1296
        %v1298 = vsub.f32 %v1249, %v1296
        %v1299 = vsub.f32 %v1250, %v1296
        %v1300 = vmul.f32 %v1297, %v1297
        %v1301 = vmul.f32 %v1298, %v1298
        %v1302 = vmul.f32 %v1299, %v1299
        %v1303 = vsel %vm1266, %v1300, 0.0
        %v1304 = vsel %vm1266, %v1301, 0.0
        %v1305 = vadd.f32 %v1303, %v1304
        %v1306 = vsel %vm1270, %v1302, 0.0
        %v1307 = vadd.f32 %v1305, %v1306
        %v1308 = vrot.slane %v1307, 4
        %v1309 = vadd.f32 %v1307, %v1308
        %v1310 = vrot.slane %v1309, 2
        %v1311 = vadd.f32 %v1309, %v1310
        %v1312 = vrot.slane %v1311, 1
        %v1313 = vadd.f32 %v1311, %v1312
        %v1314 = vsub.f32 %v1264, %v1296
        %v1315 = vsub.f32 %v1265, %v1296
        %v1316 = vmul.f32 %v1314, %v1314
        %v1317 = vmul.f32 %v1315, %v1315
        %v1318 = vsel %vm1266, %v1316, 0.0
        %v1319 = vsel %vm1266, %v1317, 0.0
        %v1320 = vadd.f32 %v1318, %v1319
        %v1321 = vrot.slane %v1320, 4
        %v1322 = vadd.f32 %v1320, %v1321
        %v1323 = vrot.slane %v1322, 2
        %v1324 = vadd.f32 %v1322, %v1323
        %v1325 = vrot.slane %v1324, 1
        %v1326 = vadd.f32 %v1324, %v1325
        %v1327 = vadd.f32 %v1313, %v1326
        %v1328 = vmul.f32 %v1327, %v1295
        %v1329 = vadd.f32 %v1328, 1e-05
        %v1330 = vrsqrt.pop %v1329
        %v1331 = vmul.f32 %v1330, %v1329
        %v1332 = vmul.f32 %v1331, %v1330
        %v1333 = vmul.f32 0.5, %v1332
        %v1334 = vsub.f32 1.5, %v1333
        %v1335 = vmul.f32 %v1330, %v1334
        %vm1336 = vweird.f32 %v1329
        %vm1337 = vweird.f32 %v1330
        %vm1338 = vmor %vm1336, %vm1337
        %v1339 = vsel %vm1338, %v1330, %v1335
        %v1340 = vld [vmem:[#allocation2] sm:$0x1]
        %v1341 = vld [vmem:[#allocation5] sm:$0x1]
        %v1342 = vmul.f32 %v1297, %v1339
        %v1343 = vmul.f32 %v1298, %v1339
        %v1344 = vmul.f32 %v1299, %v1339
        %v1346 = vperm.slane %v1340, 0
        %v1348 = vmul.f32 %v1342, %v1346
        %v1349 = vmul.f32 %v1343, %v1346
        %v1350 = vmul.f32 %v1344, %v1346
        %v1352 = vperm.slane %v1341, 0
        %v1354 = vadd.f32 %v1348, %v1352
        %v1355 = vadd.f32 %v1349, %v1352
        %v1356 = vadd.f32 %v1350, %v1352
        %v1357 = vmul.f32 %v1354, %v1354
        %v1358 = vmul.f32 %v1355, %v1355
        %v1359 = vmul.f32 %v1356, %v1356
        %v1360 = vmul.f32 %v1354, %v1357
        %v1361 = vmul.f32 %v1355, %v1358
        %v1362 = vmul.f32 %v1356, %v1359
        %v1363 = vmul.f32 %v1360, 0.044715
        %v1364 = vmul.f32 %v1361, 0.044715
        %v1365 = vmul.f32 %v1362, 0.044715
        %v1366 = vadd.f32 %v1354, %v1363
        %v1367 = vadd.f32 %v1355, %v1364
        %v1368 = vadd.f32 %v1356, %v1365
        %v1369 = vmul.f32 %v1366, 0.7978846
        %v1370 = vmul.f32 %v1367, 0.7978846
        %v1371 = vmul.f32 %v1368, 0.7978846
        %v1372 = vtanh.pop %v1369
        %v1373 = vtanh.pop %v1370
        %v1374 = vtanh.pop %v1371
        %v1375 = vadd.f32 %v1372, 1.0
        %v1376 = vadd.f32 %v1373, 1.0
        %v1377 = vadd.f32 %v1374, 1.0
        %v1378 = vmul.f32 %v1375, 0.5
        %v1379 = vmul.f32 %v1376, 0.5
        %v1380 = vmul.f32 %v1377, 0.5
        %v1381 = vmul.f32 %v1354, %v1378
        %v1382 = vmul.f32 %v1355, %v1379
        %v1383 = vmul.f32 %v1356, %v1380
        %v1384 = vmul.f32 %v1314, %v1339
        %v1385 = vmul.f32 %v1315, %v1339
        %v1386 = vmul.f32 %v1384, %v1346
        %v1387 = vmul.f32 %v1385, %v1346
        %v1388 = vadd.f32 %v1386, %v1352
        %v1389 = vadd.f32 %v1387, %v1352
        %v1390 = vmul.f32 %v1388, %v1388
        %v1391 = vmul.f32 %v1389, %v1389
        %v1392 = vmul.f32 %v1388, %v1390
        %v1393 = vmul.f32 %v1389, %v1391
        %v1394 = vmul.f32 %v1392, 0.044715
        %v1395 = vmul.f32 %v1393, 0.044715
        %v1396 = vadd.f32 %v1388, %v1394
        %v1397 = vadd.f32 %v1389, %v1395
        %v1398 = vmul.f32 %v1396, 0.7978846
        %v1399 = vmul.f32 %v1397, 0.7978846
        %v1400 = vtanh.pop %v1398
        %v1401 = vtanh.pop %v1399
        %v1402 = vadd.f32 %v1400, 1.0
        %v1403 = vadd.f32 %v1401, 1.0
        %v1404 = vmul.f32 %v1402, 0.5
        %v1405 = vmul.f32 %v1403, 0.5
        %v1406 = vmul.f32 %v1388, %v1404
        %v1407 = vmul.f32 %v1389, %v1405
        %v1408 = vld [vmem:[%s4] sm:$0xff]
        %v1409 = vld [vmem:[%s4 + $0x8] sm:$0xff]
        %v1410 = vld [vmem:[%s4 + $0x10] sm:$0xff]
        %v1411 = vld [vmem:[%s4 + $0x18] sm:$0xff]
        %v1412 = vld [vmem:[%s4 + $0x20] sm:$0xff]
        %v1413 = vld [vmem:[%s4 + $0x28] sm:$0xff]
        %v1414 = vld [vmem:[%s4 + $0x30] sm:$0xff]
        %v1415 = vld [vmem:[%s4 + $0x38] sm:$0xff]
        %v1416 = vld [vmem:[%s4 + $0x40] sm:$0xff]
        %v1417 = vld [vmem:[%s4 + $0x48] sm:$0xff]
        %v1418 = vld [vmem:[%s4 + $0x50] sm:$0xff]
        %v1419 = vld [vmem:[%s4 + $0x58] sm:$0xff]
        %v1421 = vsel %vm1266, %v1406, 0
        %v1424 = vsel %vm1266, %v1407, 0
        %1426 = vmatpush.msra.mxu0 0.0
        %1427 = vmatpush.msra.mxu0 0.0
        %1428 = vmatpush.msra.mxu0 0.0
        %1429 = vmatpush.msra.mxu0 0.0
        %1430 = vmatpush.msra.mxu0 0.0
        %1431 = vmatpush.msra.mxu0 0.0
        %1432 = vmatpush.msra.mxu0 0.0
        %1433 = vmatpush.msra.mxu0 0.0
        %1434 = vmatpush.msra.mxu0 0.0
        %1435 = vmatpush.msra.mxu0 0.0
        %1436 = vmatpush.msra.mxu0 0.0
        %1437 = vmatpush.msra.mxu0 0.0
        %1438 = vmatpush.msra.mxu0 %v1415
        %1439 = vmatpush.msra.mxu0 %v1414
        %1440 = vmatpush.msra.mxu0 %v1413
        %1441 = vmatpush.msra.mxu0 %v1412
        %1442 = vmatmul.f32.gmra.mxu0 %v1421
        %v1443 = vpop.f32.mrf.mxu0
        %v1444 = vadd.f32 0.0, %v1443
        %1445 = vmatmul.f32.gmra.mxu0 %v1424
        %v1446 = vpop.f32.mrf.mxu0
        %v1447 = vadd.f32 0.0, %v1446
        %1448 = vdwg.mxu0
        %v1450 = vsel %vm1266, %v1381, 0
        %v1453 = vsel %vm1266, %v1382, 0
        %1455 = vmatpush.msra.mxu0 0.0
        %1456 = vmatpush.msra.mxu0 0.0
        %1457 = vmatpush.msra.mxu0 0.0
        %1458 = vmatpush.msra.mxu0 0.0
        %1459 = vmatpush.msra.mxu0 0.0
        %1460 = vmatpush.msra.mxu0 0.0
        %1461 = vmatpush.msra.mxu0 0.0
        %1462 = vmatpush.msra.mxu0 0.0
        %1463 = vmatpush.msra.mxu0 0.0
        %1464 = vmatpush.msra.mxu0 0.0
        %1465 = vmatpush.msra.mxu0 0.0
        %1466 = vmatpush.msra.mxu0 0.0
        %1467 = vmatpush.msra.mxu0 %v1411
        %1468 = vmatpush.msra.mxu0 %v1410
        %1469 = vmatpush.msra.mxu0 %v1409
        %1470 = vmatpush.msra.mxu0 %v1408
        %1471 = vmatmul.f32.gmra.mxu0 %v1450
        %v1472 = vpop.f32.mrf.mxu0
        %v1473 = vadd.f32 %v1444, %v1472
        %1474 = vmatmul.f32.gmra.mxu0 %v1453
        %v1475 = vpop.f32.mrf.mxu0
        %v1476 = vadd.f32 %v1447, %v1475
        %1477 = vdwg.mxu0
        %v1479 = vrot.slane %v1381, 1
        %v1480 = vrot.slane %v1382, 1
        %v1481 = vsel %vm1152, %v1479, %v1480
        %v1482 = vrot.slane %v1383, 1
        %v1483 = vsel %vm1152, %v1480, %v1482
        %v1484 = vsel %vm1266, %v1481, 0
        %v1486 = vsel %vm1266, %v1483, 0
        %1488 = vmatpush.msra.mxu0 0.0
        %1489 = vmatpush.msra.mxu0 0.0
        %1490 = vmatpush.msra.mxu0 0.0
        %1491 = vmatpush.msra.mxu0 0.0
        %1492 = vmatpush.msra.mxu0 0.0
        %1493 = vmatpush.msra.mxu0 0.0
        %1494 = vmatpush.msra.mxu0 0.0
        %1495 = vmatpush.msra.mxu0 0.0
        %1496 = vmatpush.msra.mxu0 0.0
        %1497 = vmatpush.msra.mxu0 0.0
        %1498 = vmatpush.msra.mxu0 0.0
        %1499 = vmatpush.msra.mxu0 0.0
        %1500 = vmatpush.msra.mxu0 %v1419
        %1501 = vmatpush.msra.mxu0 %v1418
        %1502 = vmatpush.msra.mxu0 %v1417
        %1503 = vmatpush.msra.mxu0 %v1416
        %1504 = vmatmul.f32.gmra.mxu0 %v1484
        %v1505 = vpop.f32.mrf.mxu0
        %v1506 = vadd.f32 0.0, %v1505
        %1507 = vmatmul.f32.gmra.mxu0 %v1486
        %v1508 = vpop.f32.mrf.mxu0
        %v1509 = vadd.f32 0.0, %v1508
        %1510 = vdwg.mxu0
        %v1511 = vadd.f32 %v1473, %v1506
        %v1512 = vadd.f32 %v1476, %v1509
        %v1513 = vmul.f32 %v1511, %v1511
        %v1514 = vmul.f32 %v1512, %v1512
        %v1515 = vmul.f32 %v1511, %v1513
        %v1516 = vmul.f32 %v1512, %v1514
        %v1517 = vmul.f32 %v1515, 0.044715
        %v1518 = vmul.f32 %v1516, 0.044715
        %v1519 = vadd.f32 %v1511, %v1517
        %v1520 = vadd.f32 %v1512, %v1518
        %v1521 = vmul.f32 %v1519, 0.7978846
        %v1522 = vmul.f32 %v1520, 0.7978846
        %v1523 = vtanh.pop %v1521
        %v1524 = vtanh.pop %v1522
        %v1525 = vadd.f32 %v1523, 1.0
        %v1526 = vadd.f32 %v1524, 1.0
        %v1527 = vmul.f32 %v1525, 0.5
        %v1528 = vmul.f32 %v1526, 0.5
        %v1529 = vmul.f32 %v1511, %v1527
        %v1530 = vmul.f32 %v1512, %v1528
        %v1531 = vld [vmem:[#allocation7] sm:$0x1]
        %v1532 = vld [vmem:[#allocation8] sm:$0x1]
        %v1533 = vsel %vm1266, %v1529, 0.0
        %1534 = vadd.xlane.f32.xlu0 %v1533
        %v1535 = vpop.xlane.xlu0 %1534
        %v1536 = vsel %vm1266, %v1530, 0.0
        %1537 = vadd.xlane.f32.xlu0 %v1536
        %v1538 = vpop.xlane.xlu0 %1537
        %v1539 = vrcp.pop 32.0
        %v1540 = vmul.f32 32.0, %v1539
        %v1541 = vsub.f32 1.0, %v1540
        %v1542 = vmul.f32 %v1539, %v1541
        %v1543 = vadd.f32 %v1539, %v1542
        %vm1544 = vweird.f32 %v1539
        %v1545 = vsel %vm1544, %v1539, %v1543
        %v1546 = vmul.f32 %v1535, %v1545
        %v1547 = vmul.f32 %v1538, %v1545
        %v1548 = vsub.f32 %v1529, %v1546
        %v1549 = vsub.f32 %v1530, %v1547
        %v1550 = vmul.f32 %v1548, %v1548
        %v1551 = vmul.f32 %v1549, %v1549
        %v1552 = vsel %vm1266, %v1550, 0.0
        %1553 = vadd.xlane.f32.xlu0 %v1552
        %v1554 = vpop.xlane.xlu0 %1553
        %v1555 = vsel %vm1266, %v1551, 0.0
        %1556 = vadd.xlane.f32.xlu0 %v1555
        %v1557 = vpop.xlane.xlu0 %1556
        %v1558 = vmul.f32 %v1554, %v1545
        %v1559 = vmul.f32 %v1557, %v1545
        %v1560 = vadd.f32 %v1558, 1e-05
        %v1561 = vadd.f32 %v1559, 1e-05
        %v1562 = vrsqrt.pop %v1560
        %v1563 = vmul.f32 %v1562, %v1560
        %v1564 = vmul.f32 %v1563, %v1562
        %v1565 = vmul.f32 0.5, %v1564
        %v1566 = vsub.f32 1.5, %v1565
        %v1567 = vmul.f32 %v1562, %v1566
        %vm1568 = vweird.f32 %v1560
        %vm1569 = vweird.f32 %v1562
        %vm1570 = vmor %vm1568, %vm1569
        %v1571 = vsel %vm1570, %v1562, %v1567
        %v1572 = vrsqrt.pop %v1561
        %v1573 = vmul.f32 %v1572, %v1561
        %v1574 = vmul.f32 %v1573, %v1572
        %v1575 = vmul.f32 0.5, %v1574
        %v1576 = vsub.f32 1.5, %v1575
        %v1577 = vmul.f32 %v1572, %v1576
        %vm1578 = vweird.f32 %v1561
        %vm1579 = vweird.f32 %v1572
        %vm1580 = vmor %vm1578, %vm1579
        %v1581 = vsel %vm1580, %v1572, %v1577
        %v1582 = vmul.f32 %v1548, %v1571
        %v1583 = vmul.f32 %v1549, %v1581
        %v1585 = vperm.slane %v1531, 0
        %v1587 = vmul.f32 %v1582, %v1585
        %v1588 = vmul.f32 %v1583, %v1585
        %v1590 = vperm.slane %v1532, 0
        %v1592 = vadd.f32 %v1587, %v1590
        %v1593 = vadd.f32 %v1588, %v1590
        %v1594 = vld [vmem:[%s7] sm:$0xff]
        %v1595 = vld [vmem:[%s7 + $0x8] sm:$0xff]
        %v1596 = vld [vmem:[%s7 + $0x10] sm:$0xff]
        %v1597 = vld [vmem:[%s7 + $0x18] sm:$0xff]
        %v1598 = vld [vmem:[#allocation10] sm:$0x1]
        %v1600 = vperm.slane %v1598, 0
        %v1603 = vsel %vm1266, %v1592, 0
        %v1606 = vsel %vm1266, %v1593, 0
        %1608 = vmatpush.msra.mxu0 0.0
        %1609 = vmatpush.msra.mxu0 0.0
        %1610 = vmatpush.msra.mxu0 0.0
        %1611 = vmatpush.msra.mxu0 0.0
        %1612 = vmatpush.msra.mxu0 0.0
        %1613 = vmatpush.msra.mxu0 0.0
        %1614 = vmatpush.msra.mxu0 0.0
        %1615 = vmatpush.msra.mxu0 0.0
        %1616 = vmatpush.msra.mxu0 0.0
        %1617 = vmatpush.msra.mxu0 0.0
        %1618 = vmatpush.msra.mxu0 0.0
        %1619 = vmatpush.msra.mxu0 0.0
        %1620 = vmatpush.msra.mxu0 %v1597
        %1621 = vmatpush.msra.mxu0 %v1596
        %1622 = vmatpush.msra.mxu0 %v1595
        %1623 = vmatpush.msra.mxu0 %v1594
        %1624 = vmatmul.f32.gmra.mxu0 %v1603
        %v1625 = vpop.f32.mrf.mxu0
        %v1626 = vadd.f32 %v1600, %v1625
        %1627 = vmatmul.f32.gmra.mxu0 %v1606
        %v1628 = vpop.f32.mrf.mxu0
        %v1629 = vadd.f32 %v1600, %v1628
        %1630 = vdwg.mxu0
        %v1631 = vld [vmem:[#allocation11] sm:$0x1]
        %v1632 = vld [vmem:[#allocation13] sm:$0x1]
        %v1633 = vsel %vm1266, %v1626, 0.0
        %1634 = vadd.xlane.f32.xlu0 %v1633
        %v1635 = vpop.xlane.xlu0 %1634
        %v1636 = vsel %vm1266, %v1629, 0.0
        %1637 = vadd.xlane.f32.xlu0 %v1636
        %v1638 = vpop.xlane.xlu0 %1637
        %v1639 = vmul.f32 %v1635, %v1545
        %v1640 = vmul.f32 %v1638, %v1545
        %v1641 = vsub.f32 %v1626, %v1639
        %v1642 = vsub.f32 %v1629, %v1640
        %v1643 = vmul.f32 %v1641, %v1641
        %v1644 = vmul.f32 %v1642, %v1642
        %v1645 = vsel %vm1266, %v1643, 0.0
        %1646 = vadd.xlane.f32.xlu0 %v1645
        %v1647 = vpop.xlane.xlu0 %1646
        %v1648 = vsel %vm1266, %v1644, 0.0
        %1649 = vadd.xlane.f32.xlu0 %v1648
        %v1650 = vpop.xlane.xlu0 %1649
        %v1651 = vmul.f32 %v1647, %v1545
        %v1652 = vmul.f32 %v1650, %v1545
        %v1653 = vadd.f32 %v1651, 1e-05
        %v1654 = vadd.f32 %v1652, 1e-05
        %v1655 = vrsqrt.pop %v1653
        %v1656 = vmul.f32 %v1655, %v1653
        %v1657 = vmul.f32 %v1656, %v1655
        %v1658 = vmul.f32 0.5, %v1657
        %v1659 = vsub.f32 1.5, %v1658
        %v1660 = vmul.f32 %v1655, %v1659
        %vm1661 = vweird.f32 %v1653
        %vm1662 = vweird.f32 %v1655
        %vm1663 = vmor %vm1661, %vm1662
        %v1664 = vsel %vm1663, %v1655, %v1660
        %v1665 = vrsqrt.pop %v1654
        %v1666 = vmul.f32 %v1665, %v1654
        %v1667 = vmul.f32 %v1666, %v1665
        %v1668 = vmul.f32 0.5, %v1667
        %v1669 = vsub.f32 1.5, %v1668
        %v1670 = vmul.f32 %v1665, %v1669
        %vm1671 = vweird.f32 %v1654
        %vm1672 = vweird.f32 %v1665
        %vm1673 = vmor %vm1671, %vm1672
        %v1674 = vsel %vm1673, %v1665, %v1670
        %v1675 = vmul.f32 %v1641, %v1664
        %v1676 = vmul.f32 %v1642, %v1674
        %v1678 = vperm.slane %v1631, 0
        %v1680 = vmul.f32 %v1675, %v1678
        %v1681 = vmul.f32 %v1676, %v1678
        %v1683 = vperm.slane %v1632, 0
        %v1685 = vadd.f32 %v1680, %v1683
        %v1686 = vadd.f32 %v1681, %v1683
        %v1687 = vld [vmem:[%s11] sm:$0xff]
        %v1688 = vld [vmem:[%s11 + $0x8] sm:$0xff]
        %v1689 = vld [vmem:[%s11 + $0x10] sm:$0xff]
        %v1690 = vld [vmem:[%s11 + $0x18] sm:$0xff]
        %v1691 = vld [vmem:[%s12] sm:$0x1]
        %v1693 = vperm.slane %v1691, 0
        %v1696 = vsel %vm1266, %v1685, 0
        %v1699 = vsel %vm1266, %v1686, 0
        %1701 = vmatpush.msra.mxu0 0.0
        %1702 = vmatpush.msra.mxu0 0.0
        %1703 = vmatpush.msra.mxu0 0.0
        %1704 = vmatpush.msra.mxu0 0.0
        %1705 = vmatpush.msra.mxu0 0.0
        %1706 = vmatpush.msra.mxu0 0.0
        %1707 = vmatpush.msra.mxu0 0.0
        %1708 = vmatpush.msra.mxu0 0.0
        %1709 = vmatpush.msra.mxu0 0.0
        %1710 = vmatpush.msra.mxu0 0.0
        %1711 = vmatpush.msra.mxu0 0.0
        %1712 = vmatpush.msra.mxu0 0.0
        %1713 = vmatpush.msra.mxu0 %v1690
        %1714 = vmatpush.msra.mxu0 %v1689
        %1715 = vmatpush.msra.mxu0 %v1688
        %1716 = vmatpush.msra.mxu0 %v1687
        %1717 = vmatmul.f32.gmra.mxu0 %v1696
        %v1718 = vpop.f32.mrf.mxu0
        %v1719 = vadd.f32 %v1693, %v1718
        %1720 = vmatmul.f32.gmra.mxu0 %v1699
        %v1721 = vpop.f32.mrf.mxu0
        %v1722 = vadd.f32 %v1693, %v1721
        %1723 = vdwg.mxu0
        %v1724 = vmul.f32 %v1719, 0.35355338
        %v1725 = vmul.f32 %v1722, 0.35355338
        %1728 = vrot.lane.b32.xlu0 %v1719, 96
        %v1729 = vpop.permute.xlu0 %1728
        %1730 = vrot.lane.b32.xlu0 %v1722, 96
        %v1731 = vpop.permute.xlu0 %1730
        %vm1732 = vcmask 64512
        %v1734 = vsel %vm1732, %v1724, 0
        %v1737 = vsel %vm1732, %v1725, 0
        %v1739 = vsel %vm1732, %v1729, 0
        %v1741 = vsel %vm1732, %v1731, 0
        %1743 = vmatpush.xpose.msra.mxu0 0.0
        %1744 = vmatpush.xpose.msra.mxu0 0.0
        %1745 = vmatpush.xpose.msra.mxu0 0.0
        %1746 = vmatpush.xpose.msra.mxu0 0.0
        %1747 = vmatpush.xpose.msra.mxu0 0.0
        %1748 = vmatpush.xpose.msra.mxu0 0.0
        %1749 = vmatpush.xpose.msra.mxu0 0.0
        %1750 = vmatpush.xpose.msra.mxu0 0.0
        %1751 = vmatpush.xpose.msra.mxu0 0.0
        %1752 = vmatpush.xpose.msra.mxu0 0.0
        %1753 = vmatpush.xpose.msra.mxu0 0.0
        %1754 = vmatpush.xpose.msra.mxu0 0.0
        %1755 = vmatpush.xpose.msra.mxu0 0.0
        %1756 = vmatpush.xpose.msra.mxu0 0.0
        %1757 = vmatpush.xpose.msra.mxu0 %v1741
        %1758 = vmatpush.xpose.msra.mxu0 %v1739
        %1759 = vmatmul.f32.gmra.mxu0 %v1734
        %v1760 = vpop.f32.mrf.mxu0
        %v1761 = vadd.f32 0.0, %v1760
        %1762 = vmatmul.f32.gmra.mxu0 %v1737
        %v1763 = vpop.f32.mrf.mxu0
        %v1764 = vadd.f32 0.0, %v1763
        %1765 = vdwg.mxu0
        %vm1766 = vcmask 130048
        %v1767 = vsel %vm1766, %v1761, -inf
        %1768 = vmax.xlane.f32.xlu0 %v1767
        %v1769 = vpop.xlane.xlu0 %1768
        %v1770 = vsel %vm1766, %v1764, -inf
        %1771 = vmax.xlane.f32.xlu0 %v1770
        %v1772 = vpop.xlane.xlu0 %1771
        %v1773 = vsub.f32 %v1761, %v1769
        %v1774 = vsub.f32 %v1764, %v1772
        %v1775 = vmul.f32 %v1773, 1.442695
        %v1776 = vpow.pop %v1775
        %v1777 = vmul.f32 %v1774, 1.442695
        %v1778 = vpow.pop %v1777
        %v1779 = vsel %vm1766, %v1776, 0.0
        %1780 = vadd.xlane.f32.xlu0 %v1779
        %v1781 = vpop.xlane.xlu0 %1780
        %v1782 = vsel %vm1766, %v1778, 0.0
        %1783 = vadd.xlane.f32.xlu0 %v1782
        %v1784 = vpop.xlane.xlu0 %1783
        %v1785 = vrcp.pop %v1781
        %v1786 = vrcp.pop %v1784
        %v1787 = vmul.f32 %v1776, %v1785
        %v1788 = vmul.f32 %v1778, %v1786
        %1789 = vrot.lane.b32.xlu0 %v1719, 64
        %v1790 = vpop.permute.xlu0 %1789
        %1791 = vrot.lane.b32.xlu0 %v1722, 64
        %v1792 = vpop.permute.xlu0 %1791
        %v1796 = vsel %vm1766, %v1787, 0
        %v1799 = vsel %vm1766, %v1788, 0
        %1801 = vmatpush.msra.mxu0 0.0
        %1802 = vmatpush.msra.mxu0 0.0
        %1803 = vmatpush.msra.mxu0 0.0
        %1804 = vmatpush.msra.mxu0 0.0
        %1805 = vmatpush.msra.mxu0 0.0
        %1806 = vmatpush.msra.mxu0 0.0
        %1807 = vmatpush.msra.mxu0 0.0
        %1808 = vmatpush.msra.mxu0 0.0
        %1809 = vmatpush.msra.mxu0 0.0
        %1810 = vmatpush.msra.mxu0 0.0
        %1811 = vmatpush.msra.mxu0 0.0
        %1812 = vmatpush.msra.mxu0 0.0
        %1813 = vmatpush.msra.mxu0 0.0
        %1814 = vmatpush.msra.mxu0 0.0
        %1815 = vmatpush.msra.mxu0 %v1792
        %1816 = vmatpush.msra.mxu0 %v1790
        %1817 = vmatmul.f32.gmra.mxu0 %v1796
        %v1818 = vpop.f32.mrf.mxu0
        %v1819 = vadd.f32 0.0, %v1818
        %1820 = vmatmul.f32.gmra.mxu0 %v1799
        %v1821 = vpop.f32.mrf.mxu0
        %v1822 = vadd.f32 0.0, %v1821
        %1823 = vdwg.mxu0
        %1824 = vrot.lane.b32.xlu0 %v1724, 120
        %v1825 = vpop.permute.xlu0 %1824
        %1826 = vrot.lane.b32.xlu0 %v1725, 120
        %v1827 = vpop.permute.xlu0 %1826
        %1828 = vrot.lane.b32.xlu0 %v1719, 88
        %v1829 = vpop.permute.xlu0 %1828
        %1830 = vrot.lane.b32.xlu0 %v1722, 88
        %v1831 = vpop.permute.xlu0 %1830
        %v1832 = vsel %vm1732, %v1825, 0
        %v1834 = vsel %vm1732, %v1827, 0
        %v1836 = vsel %vm1732, %v1829, 0
        %v1838 = vsel %vm1732, %v1831, 0
        %1840 = vmatpush.xpose.msra.mxu0 0.0
        %1841 = vmatpush.xpose.msra.mxu0 0.0
        %1842 = vmatpush.xpose.msra.mxu0 0.0
        %1843 = vmatpush.xpose.msra.mxu0 0.0
        %1844 = vmatpush.xpose.msra.mxu0 0.0
        %1845 = vmatpush.xpose.msra.mxu0 0.0
        %1846 = vmatpush.xpose.msra.mxu0 0.0
        %1847 = vmatpush.xpose.msra.mxu0 0.0
        %1848 = vmatpush.xpose.msra.mxu0 0.0
        %1849 = vmatpush.xpose.msra.mxu0 0.0
        %1850 = vmatpush.xpose.msra.mxu0 0.0
        %1851 = vmatpush.xpose.msra.mxu0 0.0
        %1852 = vmatpush.xpose.msra.mxu0 0.0
        %1853 = vmatpush.xpose.msra.mxu0 0.0
        %1854 = vmatpush.xpose.msra.mxu0 %v1838
        %1855 = vmatpush.xpose.msra.mxu0 %v1836
        %1856 = vmatmul.f32.gmra.mxu0 %v1832
        %v1857 = vpop.f32.mrf.mxu0
        %v1858 = vadd.f32 0.0, %v1857
        %1859 = vmatmul.f32.gmra.mxu0 %v1834
        %v1860 = vpop.f32.mrf.mxu0
        %v1861 = vadd.f32 0.0, %v1860
        %1862 = vdwg.mxu0
        %v1863 = vsel %vm1766, %v1858, -inf
        %1864 = vmax.xlane.f32.xlu0 %v1863
        %v1865 = vpop.xlane.xlu0 %1864
        %v1866 = vsel %vm1766, %v1861, -inf
        %1867 = vmax.xlane.f32.xlu0 %v1866
        %v1868 = vpop.xlane.xlu0 %1867
        %v1869 = vsub.f32 %v1858, %v1865
        %v1870 = vsub.f32 %v1861, %v1868
        %v1871 = vmul.f32 %v1869, 1.442695
        %v1872 = vpow.pop %v1871
        %v1873 = vmul.f32 %v1870, 1.442695
        %v1874 = vpow.pop %v1873
        %v1875 = vsel %vm1766, %v1872, 0.0
        %1876 = vadd.xlane.f32.xlu0 %v1875
        %v1877 = vpop.xlane.xlu0 %1876
        %v1878 = vsel %vm1766, %v1874, 0.0
        %1879 = vadd.xlane.f32.xlu0 %v1878
        %v1880 = vpop.xlane.xlu0 %1879
        %v1881 = vrcp.pop %v1877
        %v1882 = vrcp.pop %v1880
        %v1883 = vmul.f32 %v1872, %v1881
        %v1884 = vmul.f32 %v1874, %v1882
        %1885 = vrot.lane.b32.xlu0 %v1719, 56
        %v1886 = vpop.permute.xlu0 %1885
        %1887 = vrot.lane.b32.xlu0 %v1722, 56
        %v1888 = vpop.permute.xlu0 %1887
        %v1892 = vsel %vm1766, %v1883, 0
        %v1895 = vsel %vm1766, %v1884, 0
        %1897 = vmatpush.msra.mxu0 0.0
        %1898 = vmatpush.msra.mxu0 0.0
        %1899 = vmatpush.msra.mxu0 0.0
        %1900 = vmatpush.msra.mxu0 0.0
        %1901 = vmatpush.msra.mxu0 0.0
        %1902 = vmatpush.msra.mxu0 0.0
        %1903 = vmatpush.msra.mxu0 0.0
        %1904 = vmatpush.msra.mxu0 0.0
        %1905 = vmatpush.msra.mxu0 0.0
        %1906 = vmatpush.msra.mxu0 0.0
        %1907 = vmatpush.msra.mxu0 0.0
        %1908 = vmatpush.msra.mxu0 0.0
        %1909 = vmatpush.msra.mxu0 0.0
        %1910 = vmatpush.msra.mxu0 0.0
        %1911 = vmatpush.msra.mxu0 %v1888
        %1912 = vmatpush.msra.mxu0 %v1886
        %1913 = vmatmul.f32.gmra.mxu0 %v1892
        %v1914 = vpop.f32.mrf.mxu0
        %v1915 = vadd.f32 0.0, %v1914
        %1916 = vmatmul.f32.gmra.mxu0 %v1895
        %v1917 = vpop.f32.mrf.mxu0
        %v1918 = vadd.f32 0.0, %v1917
        %1919 = vdwg.mxu0
        %1920 = vrot.lane.b32.xlu0 %v1724, 112
        %v1921 = vpop.permute.xlu0 %1920
        %1922 = vrot.lane.b32.xlu0 %v1725, 112
        %v1923 = vpop.permute.xlu0 %1922
        %1924 = vrot.lane.b32.xlu0 %v1719, 80
        %v1925 = vpop.permute.xlu0 %1924
        %1926 = vrot.lane.b32.xlu0 %v1722, 80
        %v1927 = vpop.permute.xlu0 %1926
        %v1928 = vsel %vm1732, %v1921, 0
        %v1930 = vsel %vm1732, %v1923, 0
        %v1932 = vsel %vm1732, %v1925, 0
        %v1934 = vsel %vm1732, %v1927, 0
        %1936 = vmatpush.xpose.msra.mxu0 0.0
        %1937 = vmatpush.xpose.msra.mxu0 0.0
        %1938 = vmatpush.xpose.msra.mxu0 0.0
        %1939 = vmatpush.xpose.msra.mxu0 0.0
        %1940 = vmatpush.xpose.msra.mxu0 0.0
        %1941 = vmatpush.xpose.msra.mxu0 0.0
        %1942 = vmatpush.xpose.msra.mxu0 0.0
        %1943 = vmatpush.xpose.msra.mxu0 0.0
        %1944 = vmatpush.xpose.msra.mxu0 0.0
        %1945 = vmatpush.xpose.msra.mxu0 0.0
        %1946 = vmatpush.xpose.msra.mxu0 0.0
        %1947 = vmatpush.xpose.msra.mxu0 0.0
        %1948 = vmatpush.xpose.msra.mxu0 0.0
        %1949 = vmatpush.xpose.msra.mxu0 0.0
        %1950 = vmatpush.xpose.msra.mxu0 %v1934
        %1951 = vmatpush.xpose.msra.mxu0 %v1932
        %1952 = vmatmul.f32.gmra.mxu0 %v1928
        %v1953 = vpop.f32.mrf.mxu0
        %v1954 = vadd.f32 0.0, %v1953
        %1955 = vmatmul.f32.gmra.mxu0 %v1930
        %v1956 = vpop.f32.mrf.mxu0
        %v1957 = vadd.f32 0.0, %v1956
        %1958 = vdwg.mxu0
        %v1959 = vsel %vm1766, %v1954, -inf
        %1960 = vmax.xlane.f32.xlu0 %v1959
        %v1961 = vpop.xlane.xlu0 %1960
        %v1962 = vsel %vm1766, %v1957, -inf
        %1963 = vmax.xlane.f32.xlu0 %v1962
        %v1964 = vpop.xlane.xlu0 %1963
        %v1965 = vsub.f32 %v1954, %v1961
        %v1966 = vsub.f32 %v1957, %v1964
        %v1967 = vmul.f32 %v1965, 1.442695
        %v1968 = vpow.pop %v1967
        %v1969 = vmul.f32 %v1966, 1.442695
        %v1970 = vpow.pop %v1969
        %v1971 = vsel %vm1766, %v1968, 0.0
        %1972 = vadd.xlane.f32.xlu0 %v1971
        %v1973 = vpop.xlane.xlu0 %1972
        %v1974 = vsel %vm1766, %v1970, 0.0
        %1975 = vadd.xlane.f32.xlu0 %v1974
        %v1976 = vpop.xlane.xlu0 %1975
        %v1977 = vrcp.pop %v1973
        %v1978 = vrcp.pop %v1976
        %v1979 = vmul.f32 %v1968, %v1977
        %v1980 = vmul.f32 %v1970, %v1978
        %1981 = vrot.lane.b32.xlu0 %v1719, 48
        %v1982 = vpop.permute.xlu0 %1981
        %1983 = vrot.lane.b32.xlu0 %v1722, 48
        %v1984 = vpop.permute.xlu0 %1983
        %v1988 = vsel %vm1766, %v1979, 0
        %v1991 = vsel %vm1766, %v1980, 0
        %1993 = vmatpush.msra.mxu0 0.0
        %1994 = vmatpush.msra.mxu0 0.0
        %1995 = vmatpush.msra.mxu0 0.0
        %1996 = vmatpush.msra.mxu0 0.0
        %1997 = vmatpush.msra.mxu0 0.0
        %1998 = vmatpush.msra.mxu0 0.0
        %1999 = vmatpush.msra.mxu0 0.0
        %2000 = vmatpush.msra.mxu0 0.0
        %2001 = vmatpush.msra.mxu0 0.0
        %2002 = vmatpush.msra.mxu0 0.0
        %2003 = vmatpush.msra.mxu0 0.0
        %2004 = vmatpush.msra.mxu0 0.0
        %2005 = vmatpush.msra.mxu0 0.0
        %2006 = vmatpush.msra.mxu0 0.0
        %2007 = vmatpush.msra.mxu0 %v1984
        %2008 = vmatpush.msra.mxu0 %v1982
        %2009 = vmatmul.f32.gmra.mxu0 %v1988
        %v2010 = vpop.f32.mrf.mxu0
        %v2011 = vadd.f32 0.0, %v2010
        %2012 = vmatmul.f32.gmra.mxu0 %v1991
        %v2013 = vpop.f32.mrf.mxu0
        %v2014 = vadd.f32 0.0, %v2013
        %2015 = vdwg.mxu0
        %2016 = vrot.lane.b32.xlu0 %v1724, 104
        %v2017 = vpop.permute.xlu0 %2016
        %2018 = vrot.lane.b32.xlu0 %v1725, 104
        %v2019 = vpop.permute.xlu0 %2018
        %2020 = vrot.lane.b32.xlu0 %v1719, 72
        %v2021 = vpop.permute.xlu0 %2020
        %2022 = vrot.lane.b32.xlu0 %v1722, 72
        %v2023 = vpop.permute.xlu0 %2022
        %v2024 = vsel %vm1732, %v2017, 0
        %v2026 = vsel %vm1732, %v2019, 0
        %v2028 = vsel %vm1732, %v2021, 0
        %v2030 = vsel %vm1732, %v2023, 0
        %2032 = vmatpush.xpose.msra.mxu0 0.0
        %2033 = vmatpush.xpose.msra.mxu0 0.0
        %2034 = vmatpush.xpose.msra.mxu0 0.0
        %2035 = vmatpush.xpose.msra.mxu0 0.0
        %2036 = vmatpush.xpose.msra.mxu0 0.0
        %2037 = vmatpush.xpose.msra.mxu0 0.0
        %2038 = vmatpush.xpose.msra.mxu0 0.0
        %2039 = vmatpush.xpose.msra.mxu0 0.0
        %2040 = vmatpush.xpose.msra.mxu0 0.0
        %2041 = vmatpush.xpose.msra.mxu0 0.0
        %2042 = vmatpush.xpose.msra.mxu0 0.0
        %2043 = vmatpush.xpose.msra.mxu0 0.0
        %2044 = vmatpush.xpose.msra.mxu0 0.0
        %2045 = vmatpush.xpose.msra.mxu0 0.0
        %2046 = vmatpush.xpose.msra.mxu0 %v2030
        %2047 = vmatpush.xpose.msra.mxu0 %v2028
        %2048 = vmatmul.f32.gmra.mxu0 %v2024
        %v2049 = vpop.f32.mrf.mxu0
        %v2050 = vadd.f32 0.0, %v2049
        %2051 = vmatmul.f32.gmra.mxu0 %v2026
        %v2052 = vpop.f32.mrf.mxu0
        %v2053 = vadd.f32 0.0, %v2052
        %2054 = vdwg.mxu0
        %v2055 = vsel %vm1766, %v2050, -inf
        %2056 = vmax.xlane.f32.xlu0 %v2055
        %v2057 = vpop.xlane.xlu0 %2056
        %v2058 = vsel %vm1766, %v2053, -inf
        %2059 = vmax.xlane.f32.xlu0 %v2058
        %v2060 = vpop.xlane.xlu0 %2059
        %v2061 = vsub.f32 %v2050, %v2057
        %v2062 = vsub.f32 %v2053, %v2060
        %v2063 = vmul.f32 %v2061, 1.442695
        %v2064 = vpow.pop %v2063
        %v2065 = vmul.f32 %v2062, 1.442695
        %v2066 = vpow.pop %v2065
        %v2067 = vsel %vm1766, %v2064, 0.0
        %2068 = vadd.xlane.f32.xlu0 %v2067
        %v2069 = vpop.xlane.xlu0 %2068
        %v2070 = vsel %vm1766, %v2066, 0.0
        %2071 = vadd.xlane.f32.xlu0 %v2070
        %v2072 = vpop.xlane.xlu0 %2071
        %v2073 = vrcp.pop %v2069
        %v2074 = vrcp.pop %v2072
        %v2075 = vmul.f32 %v2064, %v2073
        %v2076 = vmul.f32 %v2066, %v2074
        %2077 = vrot.lane.b32.xlu0 %v1719, 40
        %v2078 = vpop.permute.xlu0 %2077
        %2079 = vrot.lane.b32.xlu0 %v1722, 40
        %v2080 = vpop.permute.xlu0 %2079
        %v2084 = vsel %vm1766, %v2075, 0
        %v2087 = vsel %vm1766, %v2076, 0
        %2089 = vmatpush.msra.mxu0 0.0
        %2090 = vmatpush.msra.mxu0 0.0
        %2091 = vmatpush.msra.mxu0 0.0
        %2092 = vmatpush.msra.mxu0 0.0
        %2093 = vmatpush.msra.mxu0 0.0
        %2094 = vmatpush.msra.mxu0 0.0
        %2095 = vmatpush.msra.mxu0 0.0
        %2096 = vmatpush.msra.mxu0 0.0
        %2097 = vmatpush.msra.mxu0 0.0
        %2098 = vmatpush.msra.mxu0 0.0
        %2099 = vmatpush.msra.mxu0 0.0
        %2100 = vmatpush.msra.mxu0 0.0
        %2101 = vmatpush.msra.mxu0 0.0
        %2102 = vmatpush.msra.mxu0 0.0
        %2103 = vmatpush.msra.mxu0 %v2080
        %2104 = vmatpush.msra.mxu0 %v2078
        %2105 = vmatmul.f32.gmra.mxu0 %v2084
        %v2106 = vpop.f32.mrf.mxu0
        %v2107 = vadd.f32 0.0, %v2106
        %2108 = vmatmul.f32.gmra.mxu0 %v2087
        %v2109 = vpop.f32.mrf.mxu0
        %v2110 = vadd.f32 0.0, %v2109
        %2111 = vdwg.mxu0
        %2114 = vrot.lane.b32.xlu0 %v1915, 8
        %v2115 = vpop.permute.xlu0 %2114
        %2116 = vrot.lane.b32.xlu0 %v1918, 8
        %v2117 = vpop.permute.xlu0 %2116
        %2122 = vrot.lane.b32.xlu0 %v2011, 16
        %v2123 = vpop.permute.xlu0 %2122
        %2124 = vrot.lane.b32.xlu0 %v2014, 16
        %v2125 = vpop.permute.xlu0 %2124
        %2130 = vrot.lane.b32.xlu0 %v2107, 24
        %v2131 = vpop.permute.xlu0 %2130
        %2132 = vrot.lane.b32.xlu0 %v2110, 24
        %v2133 = vpop.permute.xlu0 %2132
        %v2136 = vsel %vm1732, %v1819, %v2115
        %v2137 = vsel %vm1732, %v1822, %v2117
        %v2138 = vsel %vm1766, %v2136, %v2123
        %v2139 = vsel %vm1766, %v2137, %v2125
        %vm2140 = vcmask 195584
        %v2141 = vsel %vm2140, %v2138, %v2131
        %v2142 = vsel %vm2140, %v2139, %v2133
        %v2143 = vld [vmem:[#allocation14] sm:$0xff]
        %v2144 = vld [vmem:[#allocation14 + $0x8] sm:$0xff]
        %v2145 = vld [vmem:[#allocation14 + $0x10] sm:$0xff]
        %v2146 = vld [vmem:[#allocation14 + $0x18] sm:$0xff]
        %v2147 = vld [vmem:[%s14] sm:$0x1]
        %v2149 = vperm.slane %v2147, 0
        %v2152 = vsel %vm1266, %v2141, 0
        %v2155 = vsel %vm1266, %v2142, 0
        %2157 = vmatpush.msra.mxu0 0.0
        %2158 = vmatpush.msra.mxu0 0.0
        %2159 = vmatpush.msra.mxu0 0.0
        %2160 = vmatpush.msra.mxu0 0.0
        %2161 = vmatpush.msra.mxu0 0.0
        %2162 = vmatpush.msra.mxu0 0.0
        %2163 = vmatpush.msra.mxu0 0.0
        %2164 = vmatpush.msra.mxu0 0.0
        %2165 = vmatpush.msra.mxu0 0.0
        %2166 = vmatpush.msra.mxu0 0.0
        %2167 = vmatpush.msra.mxu0 0.0
        %2168 = vmatpush.msra.mxu0 0.0
        %2169 = vmatpush.msra.mxu0 %v2146
        %2170 = vmatpush.msra.mxu0 %v2145
        %2171 = vmatpush.msra.mxu0 %v2144
        %2172 = vmatpush.msra.mxu0 %v2143
        %2173 = vmatmul.f32.gmra.mxu0 %v2152
        %v2174 = vpop.f32.mrf.mxu0
        %v2175 = vadd.f32 %v2149, %v2174
        %2176 = vmatmul.f32.gmra.mxu0 %v2155
        %v2177 = vpop.f32.mrf.mxu0
        %v2178 = vadd.f32 %v2149, %v2177
        %2179 = vdwg.mxu0
        %v2180 = vadd.f32 %v1685, %v2175
        %v2181 = vadd.f32 %v1686, %v2178
        %v2182 = vld [vmem:[%s15] sm:$0x1]
        %v2183 = vld [vmem:[#allocation16] sm:$0x1]
        %v2184 = vsel %vm1266, %v2180, 0.0
        %2185 = vadd.xlane.f32.xlu0 %v2184
        %v2186 = vpop.xlane.xlu0 %2185
        %v2187 = vsel %vm1266, %v2181, 0.0
        %2188 = vadd.xlane.f32.xlu0 %v2187
        %v2189 = vpop.xlane.xlu0 %2188
        %v2190 = vmul.f32 %v2186, %v1545
        %v2191 = vmul.f32 %v2189, %v1545
        %v2192 = vsub.f32 %v2180, %v2190
        %v2193 = vsub.f32 %v2181, %v2191
        %v2194 = vmul.f32 %v2192, %v2192
        %v2195 = vmul.f32 %v2193, %v2193
        %v2196 = vsel %vm1266, %v2194, 0.0
        %2197 = vadd.xlane.f32.xlu0 %v2196
        %v2198 = vpop.xlane.xlu0 %2197
        %v2199 = vsel %vm1266, %v2195, 0.0
        %2200 = vadd.xlane.f32.xlu0 %v2199
        %v2201 = vpop.xlane.xlu0 %2200
        %v2202 = vmul.f32 %v2198, %v1545
        %v2203 = vmul.f32 %v2201, %v1545
        %v2204 = vadd.f32 %v2202, 1e-05
        %v2205 = vadd.f32 %v2203, 1e-05
        %v2206 = vrsqrt.pop %v2204
        %v2207 = vmul.f32 %v2206, %v2204
        %v2208 = vmul.f32 %v2207, %v2206
        %v2209 = vmul.f32 0.5, %v2208
        %v2210 = vsub.f32 1.5, %v2209
        %v2211 = vmul.f32 %v2206, %v2210
        %vm2212 = vweird.f32 %v2204
        %vm2213 = vweird.f32 %v2206
        %vm2214 = vmor %vm2212, %vm2213
        %v2215 = vsel %vm2214, %v2206, %v2211
        %v2216 = vrsqrt.pop %v2205
        %v2217 = vmul.f32 %v2216, %v2205
        %v2218 = vmul.f32 %v2217, %v2216
        %v2219 = vmul.f32 0.5, %v2218
        %v2220 = vsub.f32 1.5, %v2219
        %v2221 = vmul.f32 %v2216, %v2220
        %vm2222 = vweird.f32 %v2205
        %vm2223 = vweird.f32 %v2216
        %vm2224 = vmor %vm2222, %vm2223
        %v2225 = vsel %vm2224, %v2216, %v2221
        %v2226 = vmul.f32 %v2192, %v2215
        %v2227 = vmul.f32 %v2193, %v2225
        %v2229 = vperm.slane %v2182, 0
        %v2231 = vmul.f32 %v2226, %v2229
        %v2232 = vmul.f32 %v2227, %v2229
        %v2234 = vperm.slane %v2183, 0
        %v2236 = vadd.f32 %v2231, %v2234
        %v2237 = vadd.f32 %v2232, %v2234
        %v2238 = vld [vmem:[#allocation17] sm:$0xff]
        %v2239 = vld [vmem:[#allocation17 + $0x8] sm:$0xff]
        %v2240 = vld [vmem:[#allocation17 + $0x10] sm:$0xff]
        %v2241 = vld [vmem:[#allocation17 + $0x18] sm:$0xff]
        %v2242 = vld [vmem:[#allocation19] sm:$0x1]
        %v2244 = vperm.slane %v2242, 0
        %v2247 = vsel %vm1266, %v2236, 0
        %v2250 = vsel %vm1266, %v2237, 0
        %2252 = vmatpush.msra.mxu0 0.0
        %2253 = vmatpush.msra.mxu0 0.0
        %2254 = vmatpush.msra.mxu0 0.0
        %2255 = vmatpush.msra.mxu0 0.0
        %2256 = vmatpush.msra.mxu0 0.0
        %2257 = vmatpush.msra.mxu0 0.0
        %2258 = vmatpush.msra.mxu0 0.0
        %2259 = vmatpush.msra.mxu0 0.0
        %2260 = vmatpush.msra.mxu0 0.0
        %2261 = vmatpush.msra.mxu0 0.0
        %2262 = vmatpush.msra.mxu0 0.0
        %2263 = vmatpush.msra.mxu0 0.0
        %2264 = vmatpush.msra.mxu0 %v2241
        %2265 = vmatpush.msra.mxu0 %v2240
        %2266 = vmatpush.msra.mxu0 %v2239
        %2267 = vmatpush.msra.mxu0 %v2238
        %2268 = vmatmul.f32.gmra.mxu0 %v2247
        %v2269 = vpop.f32.mrf.mxu0
        %v2270 = vadd.f32 %v2244, %v2269
        %2271 = vmatmul.f32.gmra.mxu0 %v2250
        %v2272 = vpop.f32.mrf.mxu0
        %v2273 = vadd.f32 %v2244, %v2272
        %2274 = vdwg.mxu0
        %v2275 = vmul.f32 %v2270, %v2270
        %v2276 = vmul.f32 %v2273, %v2273
        %v2277 = vmul.f32 %v2270, %v2275
        %v2278 = vmul.f32 %v2273, %v2276
        %v2279 = vmul.f32 %v2277, 0.044715
        %v2280 = vmul.f32 %v2278, 0.044715
        %v2281 = vadd.f32 %v2270, %v2279
        %v2282 = vadd.f32 %v2273, %v2280
        %v2283 = vmul.f32 %v2281, 0.7978846
        %v2284 = vmul.f32 %v2282, 0.7978846
        %v2285 = vtanh.pop %v2283
        %v2286 = vtanh.pop %v2284
        %v2287 = vadd.f32 %v2285, 1.0
        %v2288 = vadd.f32 %v2286, 1.0
        %v2289 = vmul.f32 %v2287, 0.5
        %v2290 = vmul.f32 %v2288, 0.5
        %v2291 = vmul.f32 %v2270, %v2289
        %v2292 = vmul.f32 %v2273, %v2290
        %v2293 = vld [vmem:[%s19] sm:$0xff]
        %v2294 = vld [vmem:[%s19 + $0x8] sm:$0xff]
        %v2295 = vld [vmem:[%s19 + $0x10] sm:$0xff]
        %v2296 = vld [vmem:[%s19 + $0x18] sm:$0xff]
        %v2297 = vld [vmem:[%s19 + $0x20] sm:$0xff]
        %v2298 = vld [vmem:[%s19 + $0x28] sm:$0xff]
        %v2299 = vld [vmem:[%s19 + $0x30] sm:$0xff]
        %v2300 = vld [vmem:[%s19 + $0x38] sm:$0xff]
        %v2301 = vld [vmem:[#allocation20] sm:$0x1]
        %v2303 = vperm.slane %v2301, 0
        %vm2305 = vcmask 523264
        %v2307 = vsel %vm2305, %v2291, 0
        %v2310 = vsel %vm2305, %v2292, 0
        %2312 = vmatpush.msra.mxu0 0.0
        %2313 = vmatpush.msra.mxu0 0.0
        %2314 = vmatpush.msra.mxu0 0.0
        %2315 = vmatpush.msra.mxu0 0.0
        %2316 = vmatpush.msra.mxu0 0.0
        %2317 = vmatpush.msra.mxu0 0.0
        %2318 = vmatpush.msra.mxu0 0.0
        %2319 = vmatpush.msra.mxu0 0.0
        %2320 = vmatpush.msra.mxu0 %v2300
        %2321 = vmatpush.msra.mxu0 %v2299
        %2322 = vmatpush.msra.mxu0 %v2298
        %2323 = vmatpush.msra.mxu0 %v2297
        %2324 = vmatpush.msra.mxu0 %v2296
        %2325 = vmatpush.msra.mxu0 %v2295
        %2326 = vmatpush.msra.mxu0 %v2294
        %2327 = vmatpush.msra.mxu0 %v2293
        %2328 = vmatmul.f32.gmra.mxu0 %v2307
        %v2329 = vpop.f32.mrf.mxu0
        %v2330 = vadd.f32 %v2303, %v2329
        %2331 = vmatmul.f32.gmra.mxu0 %v2310
        %v2332 = vpop.f32.mrf.mxu0
        %v2333 = vadd.f32 %v2303, %v2332
        %2334 = vdwg.mxu0
        %v2335 = vadd.f32 %v2236, %v2330
        %v2336 = vadd.f32 %v2237, %v2333
        %v2337 = vld [vmem:[%s21] sm:$0x1]
        %v2338 = vld [vmem:[#allocation22] sm:$0x1]
        %v2339 = vsel %vm1266, %v2335, 0.0
        %2340 = vadd.xlane.f32.xlu0 %v2339
        %v2341 = vpop.xlane.xlu0 %2340
        %v2342 = vsel %vm1266, %v2336, 0.0
        %2343 = vadd.xlane.f32.xlu0 %v2342
        %v2344 = vpop.xlane.xlu0 %2343
        %v2345 = vmul.f32 %v2341, %v1545
        %v2346 = vmul.f32 %v2344, %v1545
        %v2347 = vsub.f32 %v2335, %v2345
        %v2348 = vsub.f32 %v2336, %v2346
        %v2349 = vmul.f32 %v2347, %v2347
        %v2350 = vmul.f32 %v2348, %v2348
        %v2351 = vsel %vm1266, %v2349, 0.0
        %2352 = vadd.xlane.f32.xlu0 %v2351
        %v2353 = vpop.xlane.xlu0 %2352
        %v2354 = vsel %vm1266, %v2350, 0.0
        %2355 = vadd.xlane.f32.xlu0 %v2354
        %v2356 = vpop.xlane.xlu0 %2355
        %v2357 = vmul.f32 %v2353, %v1545
        %v2358 = vmul.f32 %v2356, %v1545
        %v2359 = vadd.f32 %v2357, 1e-05
        %v2360 = vadd.f32 %v2358, 1e-05
        %v2361 = vrsqrt.pop %v2359
        %v2362 = vmul.f32 %v2361, %v2359
        %v2363 = vmul.f32 %v2362, %v2361
        %v2364 = vmul.f32 0.5, %v2363
        %v2365 = vsub.f32 1.5, %v2364
        %v2366 = vmul.f32 %v2361, %v2365
        %vm2367 = vweird.f32 %v2359
        %vm2368 = vweird.f32 %v2361
        %vm2369 = vmor %vm2367, %vm2368
        %v2370 = vsel %vm2369, %v2361, %v2366
        %v2371 = vrsqrt.pop %v2360
        %v2372 = vmul.f32 %v2371, %v2360
        %v2373 = vmul.f32 %v2372, %v2371
        %v2374 = vmul.f32 0.5, %v2373
        %v2375 = vsub.f32 1.5, %v2374
        %v2376 = vmul.f32 %v2371, %v2375
        %vm2377 = vweird.f32 %v2360
        %vm2378 = vweird.f32 %v2371
        %vm2379 = vmor %vm2377, %vm2378
        %v2380 = vsel %vm2379, %v2371, %v2376
        %v2381 = vmul.f32 %v2347, %v2370
        %v2382 = vmul.f32 %v2348, %v2380
        %v2384 = vperm.slane %v2337, 0
        %v2386 = vmul.f32 %v2381, %v2384
        %v2387 = vmul.f32 %v2382, %v2384
        %v2389 = vperm.slane %v2338, 0
        %v2391 = vadd.f32 %v2386, %v2389
        %v2392 = vadd.f32 %v2387, %v2389
        %s2393 = scalar_lea.vmem %s11, 32
        %v2394 = vld [vmem:[%s2393] sm:$0xff]
        %v2395 = vld [vmem:[%s2393 + $0x8] sm:$0xff]
        %v2396 = vld [vmem:[%s2393 + $0x10] sm:$0xff]
        %v2397 = vld [vmem:[%s2393 + $0x18] sm:$0xff]
        %s2398 = scalar_lea.vmem %s12, 1
        %v2399 = vld [vmem:[%s2398] sm:$0x1]
        %v2401 = vperm.slane %v2399, 0
        %v2404 = vsel %vm1266, %v2391, 0
        %v2407 = vsel %vm1266, %v2392, 0
        %2409 = vmatpush.msra.mxu0 0.0
        %2410 = vmatpush.msra.mxu0 0.0
        %2411 = vmatpush.msra.mxu0 0.0
        %2412 = vmatpush.msra.mxu0 0.0
        %2413 = vmatpush.msra.mxu0 0.0
        %2414 = vmatpush.msra.mxu0 0.0
        %2415 = vmatpush.msra.mxu0 0.0
        %2416 = vmatpush.msra.mxu0 0.0
        %2417 = vmatpush.msra.mxu0 0.0
        %2418 = vmatpush.msra.mxu0 0.0
        %2419 = vmatpush.msra.mxu0 0.0
        %2420 = vmatpush.msra.mxu0 0.0
        %2421 = vmatpush.msra.mxu0 %v2397
        %2422 = vmatpush.msra.mxu0 %v2396
        %2423 = vmatpush.msra.mxu0 %v2395
        %2424 = vmatpush.msra.mxu0 %v2394
        %2425 = vmatmul.f32.gmra.mxu0 %v2404
        %v2426 = vpop.f32.mrf.mxu0
        %v2427 = vadd.f32 %v2401, %v2426
        %2428 = vmatmul.f32.gmra.mxu0 %v2407
        %v2429 = vpop.f32.mrf.mxu0
        %v2430 = vadd.f32 %v2401, %v2429
        %2431 = vdwg.mxu0
        %v2432 = vmul.f32 %v2427, 0.35355338
        %v2433 = vmul.f32 %v2430, 0.35355338
        %2436 = vrot.lane.b32.xlu0 %v2427, 96
        %v2437 = vpop.permute.xlu0 %2436
        %2438 = vrot.lane.b32.xlu0 %v2430, 96
        %v2439 = vpop.permute.xlu0 %2438
        %v2441 = vsel %vm1732, %v2432, 0
        %v2444 = vsel %vm1732, %v2433, 0
        %v2446 = vsel %vm1732, %v2437, 0
        %v2448 = vsel %vm1732, %v2439, 0
        %2450 = vmatpush.xpose.msra.mxu0 0.0
        %2451 = vmatpush.xpose.msra.mxu0 0.0
        %2452 = vmatpush.xpose.msra.mxu0 0.0
        %2453 = vmatpush.xpose.msra.mxu0 0.0
        %2454 = vmatpush.xpose.msra.mxu0 0.0
        %2455 = vmatpush.xpose.msra.mxu0 0.0
        %2456 = vmatpush.xpose.msra.mxu0 0.0
        %2457 = vmatpush.xpose.msra.mxu0 0.0
        %2458 = vmatpush.xpose.msra.mxu0 0.0
        %2459 = vmatpush.xpose.msra.mxu0 0.0
        %2460 = vmatpush.xpose.msra.mxu0 0.0
        %2461 = vmatpush.xpose.msra.mxu0 0.0
        %2462 = vmatpush.xpose.msra.mxu0 0.0
        %2463 = vmatpush.xpose.msra.mxu0 0.0
        %2464 = vmatpush.xpose.msra.mxu0 %v2448
        %2465 = vmatpush.xpose.msra.mxu0 %v2446
        %2466 = vmatmul.f32.gmra.mxu0 %v2441
        %v2467 = vpop.f32.mrf.mxu0
        %v2468 = vadd.f32 0.0, %v2467
        %2469 = vmatmul.f32.gmra.mxu0 %v2444
        %v2470 = vpop.f32.mrf.mxu0
        %v2471 = vadd.f32 0.0, %v2470
        %2472 = vdwg.mxu0
        %v2473 = vsel %vm1766, %v2468, -inf
        %2474 = vmax.xlane.f32.xlu0 %v2473
        %v2475 = vpop.xlane.xlu0 %2474
        %v2476 = vsel %vm1766, %v2471, -inf
        %2477 = vmax.xlane.f32.xlu0 %v2476
        %v2478 = vpop.xlane.xlu0 %2477
        %v2479 = vsub.f32 %v2468, %v2475
        %v2480 = vsub.f32 %v2471, %v2478
        %v2481 = vmul.f32 %v2479, 1.442695
        %v2482 = vpow.pop %v2481
        %v2483 = vmul.f32 %v2480, 1.442695
        %v2484 = vpow.pop %v2483
        %v2485 = vsel %vm1766, %v2482, 0.0
        %2486 = vadd.xlane.f32.xlu0 %v2485
        %v2487 = vpop.xlane.xlu0 %2486
        %v2488 = vsel %vm1766, %v2484, 0.0
        %2489 = vadd.xlane.f32.xlu0 %v2488
        %v2490 = vpop.xlane.xlu0 %2489
        %v2491 = vrcp.pop %v2487
        %v2492 = vrcp.pop %v2490
        %v2493 = vmul.f32 %v2482, %v2491
        %v2494 = vmul.f32 %v2484, %v2492
        %2495 = vrot.lane.b32.xlu0 %v2427, 64
        %v2496 = vpop.permute.xlu0 %2495
        %2497 = vrot.lane.b32.xlu0 %v2430, 64
        %v2498 = vpop.permute.xlu0 %2497
        %v2502 = vsel %vm1766, %v2493, 0
        %v2505 = vsel %vm1766, %v2494, 0
        %2507 = vmatpush.msra.mxu0 0.0
        %2508 = vmatpush.msra.mxu0 0.0
        %2509 = vmatpush.msra.mxu0 0.0
        %2510 = vmatpush.msra.mxu0 0.0
        %2511 = vmatpush.msra.mxu0 0.0
        %2512 = vmatpush.msra.mxu0 0.0
        %2513 = vmatpush.msra.mxu0 0.0
        %2514 = vmatpush.msra.mxu0 0.0
        %2515 = vmatpush.msra.mxu0 0.0
        %2516 = vmatpush.msra.mxu0 0.0
        %2517 = vmatpush.msra.mxu0 0.0
        %2518 = vmatpush.msra.mxu0 0.0
        %2519 = vmatpush.msra.mxu0 0.0
        %2520 = vmatpush.msra.mxu0 0.0
        %2521 = vmatpush.msra.mxu0 %v2498
        %2522 = vmatpush.msra.mxu0 %v2496
        %2523 = vmatmul.f32.gmra.mxu0 %v2502
        %v2524 = vpop.f32.mrf.mxu0
        %v2525 = vadd.f32 0.0, %v2524
        %2526 = vmatmul.f32.gmra.mxu0 %v2505
        %v2527 = vpop.f32.mrf.mxu0
        %v2528 = vadd.f32 0.0, %v2527
        %2529 = vdwg.mxu0
        %2530 = vrot.lane.b32.xlu0 %v2432, 120
        %v2531 = vpop.permute.xlu0 %2530
        %2532 = vrot.lane.b32.xlu0 %v2433, 120
        %v2533 = vpop.permute.xlu0 %2532
        %2534 = vrot.lane.b32.xlu0 %v2427, 88
        %v2535 = vpop.permute.xlu0 %2534
        %2536 = vrot.lane.b32.xlu0 %v2430, 88
        %v2537 = vpop.permute.xlu0 %2536
        %v2538 = vsel %vm1732, %v2531, 0
        %v2540 = vsel %vm1732, %v2533, 0
        %v2542 = vsel %vm1732, %v2535, 0
        %v2544 = vsel %vm1732, %v2537, 0
        %2546 = vmatpush.xpose.msra.mxu0 0.0
        %2547 = vmatpush.xpose.msra.mxu0 0.0
        %2548 = vmatpush.xpose.msra.mxu0 0.0
        %2549 = vmatpush.xpose.msra.mxu0 0.0
        %2550 = vmatpush.xpose.msra.mxu0 0.0
        %2551 = vmatpush.xpose.msra.mxu0 0.0
        %2552 = vmatpush.xpose.msra.mxu0 0.0
        %2553 = vmatpush.xpose.msra.mxu0 0.0
        %2554 = vmatpush.xpose.msra.mxu0 0.0
        %2555 = vmatpush.xpose.msra.mxu0 0.0
        %2556 = vmatpush.xpose.msra.mxu0 0.0
        %2557 = vmatpush.xpose.msra.mxu0 0.0
        %2558 = vmatpush.xpose.msra.mxu0 0.0
        %2559 = vmatpush.xpose.msra.mxu0 0.0
        %2560 = vmatpush.xpose.msra.mxu0 %v2544
        %2561 = vmatpush.xpose.msra.mxu0 %v2542
        %2562 = vmatmul.f32.gmra.mxu0 %v2538
        %v2563 = vpop.f32.mrf.mxu0
        %v2564 = vadd.f32 0.0, %v2563
        %2565 = vmatmul.f32.gmra.mxu0 %v2540
        %v2566 = vpop.f32.mrf.mxu0
        %v2567 = vadd.f32 0.0, %v2566
        %2568 = vdwg.mxu0
        %v2569 = vsel %vm1766, %v2564, -inf
        %2570 = vmax.xlane.f32.xlu0 %v2569
        %v2571 = vpop.xlane.xlu0 %2570
        %v2572 = vsel %vm1766, %v2567, -inf
        %2573 = vmax.xlane.f32.xlu0 %v2572
        %v2574 = vpop.xlane.xlu0 %2573
        %v2575 = vsub.f32 %v2564, %v2571
        %v2576 = vsub.f32 %v2567, %v2574
        %v2577 = vmul.f32 %v2575, 1.442695
        %v2578 = vpow.pop %v2577
        %v2579 = vmul.f32 %v2576, 1.442695
        %v2580 = vpow.pop %v2579
        %v2581 = vsel %vm1766, %v2578, 0.0
        %2582 = vadd.xlane.f32.xlu0 %v2581
        %v2583 = vpop.xlane.xlu0 %2582
        %v2584 = vsel %vm1766, %v2580, 0.0
        %2585 = vadd.xlane.f32.xlu0 %v2584
        %v2586 = vpop.xlane.xlu0 %2585
        %v2587 = vrcp.pop %v2583
        %v2588 = vrcp.pop %v2586
        %v2589 = vmul.f32 %v2578, %v2587
        %v2590 = vmul.f32 %v2580, %v2588
        %2591 = vrot.lane.b32.xlu0 %v2427, 56
        %v2592 = vpop.permute.xlu0 %2591
        %2593 = vrot.lane.b32.xlu0 %v2430, 56
        %v2594 = vpop.permute.xlu0 %2593
        %v2598 = vsel %vm1766, %v2589, 0
        %v2601 = vsel %vm1766, %v2590, 0
        %2603 = vmatpush.msra.mxu0 0.0
        %2604 = vmatpush.msra.mxu0 0.0
        %2605 = vmatpush.msra.mxu0 0.0
        %2606 = vmatpush.msra.mxu0 0.0
        %2607 = vmatpush.msra.mxu0 0.0
        %2608 = vmatpush.msra.mxu0 0.0
        %2609 = vmatpush.msra.mxu0 0.0
        %2610 = vmatpush.msra.mxu0 0.0
        %2611 = vmatpush.msra.mxu0 0.0
        %2612 = vmatpush.msra.mxu0 0.0
        %2613 = vmatpush.msra.mxu0 0.0
        %2614 = vmatpush.msra.mxu0 0.0
        %2615 = vmatpush.msra.mxu0 0.0
        %2616 = vmatpush.msra.mxu0 0.0
        %2617 = vmatpush.msra.mxu0 %v2594
        %2618 = vmatpush.msra.mxu0 %v2592
        %2619 = vmatmul.f32.gmra.mxu0 %v2598
        %v2620 = vpop.f32.mrf.mxu0
        %v2621 = vadd.f32 0.0, %v2620
        %2622 = vmatmul.f32.gmra.mxu0 %v2601
        %v2623 = vpop.f32.mrf.mxu0
        %v2624 = vadd.f32 0.0, %v2623
        %2625 = vdwg.mxu0
        %2626 = vrot.lane.b32.xlu0 %v2432, 112
        %v2627 = vpop.permute.xlu0 %2626
        %2628 = vrot.lane.b32.xlu0 %v2433, 112
        %v2629 = vpop.permute.xlu0 %2628
        %2630 = vrot.lane.b32.xlu0 %v2427, 80
        %v2631 = vpop.permute.xlu0 %2630
        %2632 = vrot.lane.b32.xlu0 %v2430, 80
        %v2633 = vpop.permute.xlu0 %2632
        %v2634 = vsel %vm1732, %v2627, 0
        %v2636 = vsel %vm1732, %v2629, 0
        %v2638 = vsel %vm1732, %v2631, 0
        %v2640 = vsel %vm1732, %v2633, 0
        %2642 = vmatpush.xpose.msra.mxu0 0.0
        %2643 = vmatpush.xpose.msra.mxu0 0.0
        %2644 = vmatpush.xpose.msra.mxu0 0.0
        %2645 = vmatpush.xpose.msra.mxu0 0.0
        %2646 = vmatpush.xpose.msra.mxu0 0.0
        %2647 = vmatpush.xpose.msra.mxu0 0.0
        %2648 = vmatpush.xpose.msra.mxu0 0.0
        %2649 = vmatpush.xpose.msra.mxu0 0.0
        %2650 = vmatpush.xpose.msra.mxu0 0.0
        %2651 = vmatpush.xpose.msra.mxu0 0.0
        %2652 = vmatpush.xpose.msra.mxu0 0.0
        %2653 = vmatpush.xpose.msra.mxu0 0.0
        %2654 = vmatpush.xpose.msra.mxu0 0.0
        %2655 = vmatpush.xpose.msra.mxu0 0.0
        %2656 = vmatpush.xpose.msra.mxu0 %v2640
        %2657 = vmatpush.xpose.msra.mxu0 %v2638
        %2658 = vmatmul.f32.gmra.mxu0 %v2634
        %v2659 = vpop.f32.mrf.mxu0
        %v2660 = vadd.f32 0.0, %v2659
        %2661 = vmatmul.f32.gmra.mxu0 %v2636
        %v2662 = vpop.f32.mrf.mxu0
        %v2663 = vadd.f32 0.0, %v2662
        %2664 = vdwg.mxu0
        %v2665 = vsel %vm1766, %v2660, -inf
        %2666 = vmax.xlane.f32.xlu0 %v2665
        %v2667 = vpop.xlane.xlu0 %2666
        %v2668 = vsel %vm1766, %v2663, -inf
        %2669 = vmax.xlane.f32.xlu0 %v2668
        %v2670 = vpop.xlane.xlu0 %2669
        %v2671 = vsub.f32 %v2660, %v2667
        %v2672 = vsub.f32 %v2663, %v2670
        %v2673 = vmul.f32 %v2671, 1.442695
        %v2674 = vpow.pop %v2673
        %v2675 = vmul.f32 %v2672, 1.442695
        %v2676 = vpow.pop %v2675
        %v2677 = vsel %vm1766, %v2674, 0.0
        %2678 = vadd.xlane.f32.xlu0 %v2677
        %v2679 = vpop.xlane.xlu0 %2678
        %v2680 = vsel %vm1766, %v2676, 0.0
        %2681 = vadd.xlane.f32.xlu0 %v2680
        %v2682 = vpop.xlane.xlu0 %2681
        %v2683 = vrcp.pop %v2679
        %v2684 = vrcp.pop %v2682
        %v2685 = vmul.f32 %v2674, %v2683
        %v2686 = vmul.f32 %v2676, %v2684
        %2687 = vrot.lane.b32.xlu0 %v2427, 48
        %v2688 = vpop.permute.xlu0 %2687
        %2689 = vrot.lane.b32.xlu0 %v2430, 48
        %v2690 = vpop.permute.xlu0 %2689
        %v2694 = vsel %vm1766, %v2685, 0
        %v2697 = vsel %vm1766, %v2686, 0
        %2699 = vmatpush.msra.mxu0 0.0
        %2700 = vmatpush.msra.mxu0 0.0
        %2701 = vmatpush.msra.mxu0 0.0
        %2702 = vmatpush.msra.mxu0 0.0
        %2703 = vmatpush.msra.mxu0 0.0
        %2704 = vmatpush.msra.mxu0 0.0
        %2705 = vmatpush.msra.mxu0 0.0
        %2706 = vmatpush.msra.mxu0 0.0
        %2707 = vmatpush.msra.mxu0 0.0
        %2708 = vmatpush.msra.mxu0 0.0
        %2709 = vmatpush.msra.mxu0 0.0
        %2710 = vmatpush.msra.mxu0 0.0
        %2711 = vmatpush.msra.mxu0 0.0
        %2712 = vmatpush.msra.mxu0 0.0
        %2713 = vmatpush.msra.mxu0 %v2690
        %2714 = vmatpush.msra.mxu0 %v2688
        %2715 = vmatmul.f32.gmra.mxu0 %v2694
        %v2716 = vpop.f32.mrf.mxu0
        %v2717 = vadd.f32 0.0, %v2716
        %2718 = vmatmul.f32.gmra.mxu0 %v2697
        %v2719 = vpop.f32.mrf.mxu0
        %v2720 = vadd.f32 0.0, %v2719
        %2721 = vdwg.mxu0
        %2722 = vrot.lane.b32.xlu0 %v2432, 104
        %v2723 = vpop.permute.xlu0 %2722
        %2724 = vrot.lane.b32.xlu0 %v2433, 104
        %v2725 = vpop.permute.xlu0 %2724
        %2726 = vrot.lane.b32.xlu0 %v2427, 72
        %v2727 = vpop.permute.xlu0 %2726
        %2728 = vrot.lane.b32.xlu0 %v2430, 72
        %v2729 = vpop.permute.xlu0 %2728
        %v2730 = vsel %vm1732, %v2723, 0
        %v2732 = vsel %vm1732, %v2725, 0
        %v2734 = vsel %vm1732, %v2727, 0
        %v2736 = vsel %vm1732, %v2729, 0
        %2738 = vmatpush.xpose.msra.mxu0 0.0
        %2739 = vmatpush.xpose.msra.mxu0 0.0
        %2740 = vmatpush.xpose.msra.mxu0 0.0
        %2741 = vmatpush.xpose.msra.mxu0 0.0
        %2742 = vmatpush.xpose.msra.mxu0 0.0
        %2743 = vmatpush.xpose.msra.mxu0 0.0
        %2744 = vmatpush.xpose.msra.mxu0 0.0
        %2745 = vmatpush.xpose.msra.mxu0 0.0
        %2746 = vmatpush.xpose.msra.mxu0 0.0
        %2747 = vmatpush.xpose.msra.mxu0 0.0
        %2748 = vmatpush.xpose.msra.mxu0 0.0
        %2749 = vmatpush.xpose.msra.mxu0 0.0
        %2750 = vmatpush.xpose.msra.mxu0 0.0
        %2751 = vmatpush.xpose.msra.mxu0 0.0
        %2752 = vmatpush.xpose.msra.mxu0 %v2736
        %2753 = vmatpush.xpose.msra.mxu0 %v2734
        %2754 = vmatmul.f32.gmra.mxu0 %v2730
        %v2755 = vpop.f32.mrf.mxu0
        %v2756 = vadd.f32 0.0, %v2755
        %2757 = vmatmul.f32.gmra.mxu0 %v2732
        %v2758 = vpop.f32.mrf.mxu0
        %v2759 = vadd.f32 0.0, %v2758
        %2760 = vdwg.mxu0
        %v2761 = vsel %vm1766, %v2756, -inf
        %2762 = vmax.xlane.f32.xlu0 %v2761
        %v2763 = vpop.xlane.xlu0 %2762
        %v2764 = vsel %vm1766, %v2759, -inf
        %2765 = vmax.xlane.f32.xlu0 %v2764
        %v2766 = vpop.xlane.xlu0 %2765
        %v2767 = vsub.f32 %v2756, %v2763
        %v2768 = vsub.f32 %v2759, %v2766
        %v2769 = vmul.f32 %v2767, 1.442695
        %v2770 = vpow.pop %v2769
        %v2771 = vmul.f32 %v2768, 1.442695
        %v2772 = vpow.pop %v2771
        %v2773 = vsel %vm1766, %v2770, 0.0
        %2774 = vadd.xlane.f32.xlu0 %v2773
        %v2775 = vpop.xlane.xlu0 %2774
        %v2776 = vsel %vm1766, %v2772, 0.0
        %2777 = vadd.xlane.f32.xlu0 %v2776
        %v2778 = vpop.xlane.xlu0 %2777
        %v2779 = vrcp.pop %v2775
        %v2780 = vrcp.pop %v2778
        %v2781 = vmul.f32 %v2770, %v2779
        %v2782 = vmul.f32 %v2772, %v2780
        %2783 = vrot.lane.b32.xlu0 %v2427, 40
        %v2784 = vpop.permute.xlu0 %2783
        %2785 = vrot.lane.b32.xlu0 %v2430, 40
        %v2786 = vpop.permute.xlu0 %2785
        %v2790 = vsel %vm1766, %v2781, 0
        %v2793 = vsel %vm1766, %v2782, 0
        %2795 = vmatpush.msra.mxu0 0.0
        %2796 = vmatpush.msra.mxu0 0.0
        %2797 = vmatpush.msra.mxu0 0.0
        %2798 = vmatpush.msra.mxu0 0.0
        %2799 = vmatpush.msra.mxu0 0.0
        %2800 = vmatpush.msra.mxu0 0.0
        %2801 = vmatpush.msra.mxu0 0.0
        %2802 = vmatpush.msra.mxu0 0.0
        %2803 = vmatpush.msra.mxu0 0.0
        %2804 = vmatpush.msra.mxu0 0.0
        %2805 = vmatpush.msra.mxu0 0.0
        %2806 = vmatpush.msra.mxu0 0.0
        %2807 = vmatpush.msra.mxu0 0.0
        %2808 = vmatpush.msra.mxu0 0.0
        %2809 = vmatpush.msra.mxu0 %v2786
        %2810 = vmatpush.msra.mxu0 %v2784
        %2811 = vmatmul.f32.gmra.mxu0 %v2790
        %v2812 = vpop.f32.mrf.mxu0
        %v2813 = vadd.f32 0.0, %v2812
        %2814 = vmatmul.f32.gmra.mxu0 %v2793
        %v2815 = vpop.f32.mrf.mxu0
        %v2816 = vadd.f32 0.0, %v2815
        %2817 = vdwg.mxu0
        %2820 = vrot.lane.b32.xlu0 %v2621, 8
        %v2821 = vpop.permute.xlu0 %2820
        %2822 = vrot.lane.b32.xlu0 %v2624, 8
        %v2823 = vpop.permute.xlu0 %2822
        %2828 = vrot.lane.b32.xlu0 %v2717, 16
        %v2829 = vpop.permute.xlu0 %2828
        %2830 = vrot.lane.b32.xlu0 %v2720, 16
        %v2831 = vpop.permute.xlu0 %2830
        %2836 = vrot.lane.b32.xlu0 %v2813, 24
        %v2837 = vpop.permute.xlu0 %2836
        %2838 = vrot.lane.b32.xlu0 %v2816, 24
        %v2839 = vpop.permute.xlu0 %2838
        %v2842 = vsel %vm1732, %v2525, %v2821
        %v2843 = vsel %vm1732, %v2528, %v2823
        %v2844 = vsel %vm1766, %v2842, %v2829
        %v2845 = vsel %vm1766, %v2843, %v2831
        %v2846 = vsel %vm2140, %v2844, %v2837
        %v2847 = vsel %vm2140, %v2845, %v2839
        %s2848 = scalar_lea.vmem [#allocation14], 32
        %v2849 = vld [vmem:[%s2848] sm:$0xff]
        %v2850 = vld [vmem:[%s2848 + $0x8] sm:$0xff]
        %v2851 = vld [vmem:[%s2848 + $0x10] sm:$0xff]
        %v2852 = vld [vmem:[%s2848 + $0x18] sm:$0xff]
        %s2853 = scalar_lea.vmem %s14, 1
        %v2854 = vld [vmem:[%s2853] sm:$0x1]
        %v2856 = vperm.slane %v2854, 0
        %v2859 = vsel %vm1266, %v2846, 0
        %v2862 = vsel %vm1266, %v2847, 0
        %2864 = vmatpush.msra.mxu0 0.0
        %2865 = vmatpush.msra.mxu0 0.0
        %2866 = vmatpush.msra.mxu0 0.0
        %2867 = vmatpush.msra.mxu0 0.0
        %2868 = vmatpush.msra.mxu0 0.0
        %2869 = vmatpush.msra.mxu0 0.0
        %2870 = vmatpush.msra.mxu0 0.0
        %2871 = vmatpush.msra.mxu0 0.0
        %2872 = vmatpush.msra.mxu0 0.0
        %2873 = vmatpush.msra.mxu0 0.0
        %2874 = vmatpush.msra.mxu0 0.0
        %2875 = vmatpush.msra.mxu0 0.0
        %2876 = vmatpush.msra.mxu0 %v2852
        %2877 = vmatpush.msra.mxu0 %v2851
        %2878 = vmatpush.msra.mxu0 %v2850
        %2879 = vmatpush.msra.mxu0 %v2849
        %2880 = vmatmul.f32.gmra.mxu0 %v2859
        %v2881 = vpop.f32.mrf.mxu0
        %v2882 = vadd.f32 %v2856, %v2881
        %2883 = vmatmul.f32.gmra.mxu0 %v2862
        %v2884 = vpop.f32.mrf.mxu0
        %v2885 = vadd.f32 %v2856, %v2884
        %2886 = vdwg.mxu0
        %v2887 = vadd.f32 %v2391, %v2882
        %v2888 = vadd.f32 %v2392, %v2885
        %s2889 = scalar_lea.vmem %s15, 1
        %v2890 = vld [vmem:[%s2889] sm:$0x1]
        %s2891 = scalar_lea.vmem [#allocation16], 1
        %v2892 = vld [vmem:[%s2891] sm:$0x1]
        %v2893 = vsel %vm1266, %v2887, 0.0
        %2894 = vadd.xlane.f32.xlu0 %v2893
        %v2895 = vpop.xlane.xlu0 %2894
        %v2896 = vsel %vm1266, %v2888, 0.0
        %2897 = vadd.xlane.f32.xlu0 %v2896
        %v2898 = vpop.xlane.xlu0 %2897
        %v2899 = vmul.f32 %v2895, %v1545
        %v2900 = vmul.f32 %v2898, %v1545
        %v2901 = vsub.f32 %v2887, %v2899
        %v2902 = vsub.f32 %v2888, %v2900
        %v2903 = vmul.f32 %v2901, %v2901
        %v2904 = vmul.f32 %v2902, %v2902
        %v2905 = vsel %vm1266, %v2903, 0.0
        %2906 = vadd.xlane.f32.xlu0 %v2905
        %v2907 = vpop.xlane.xlu0 %2906
        %v2908 = vsel %vm1266, %v2904, 0.0
        %2909 = vadd.xlane.f32.xlu0 %v2908
        %v2910 = vpop.xlane.xlu0 %2909
        %v2911 = vmul.f32 %v2907, %v1545
        %v2912 = vmul.f32 %v2910, %v1545
        %v2913 = vadd.f32 %v2911, 1e-05
        %v2914 = vadd.f32 %v2912, 1e-05
        %v2915 = vrsqrt.pop %v2913
        %v2916 = vmul.f32 %v2915, %v2913
        %v2917 = vmul.f32 %v2916, %v2915
        %v2918 = vmul.f32 0.5, %v2917
        %v2919 = vsub.f32 1.5, %v2918
        %v2920 = vmul.f32 %v2915, %v2919
        %vm2921 = vweird.f32 %v2913
        %vm2922 = vweird.f32 %v2915
        %vm2923 = vmor %vm2921, %vm2922
        %v2924 = vsel %vm2923, %v2915, %v2920
        %v2925 = vrsqrt.pop %v2914
        %v2926 = vmul.f32 %v2925, %v2914
        %v2927 = vmul.f32 %v2926, %v2925
        %v2928 = vmul.f32 0.5, %v2927
        %v2929 = vsub.f32 1.5, %v2928
        %v2930 = vmul.f32 %v2925, %v2929
        %vm2931 = vweird.f32 %v2914
        %vm2932 = vweird.f32 %v2925
        %vm2933 = vmor %vm2931, %vm2932
        %v2934 = vsel %vm2933, %v2925, %v2930
        %v2935 = vmul.f32 %v2901, %v2924
        %v2936 = vmul.f32 %v2902, %v2934
        %v2938 = vperm.slane %v2890, 0
        %v2940 = vmul.f32 %v2935, %v2938
        %v2941 = vmul.f32 %v2936, %v2938
        %v2943 = vperm.slane %v2892, 0
        %v2945 = vadd.f32 %v2940, %v2943
        %v2946 = vadd.f32 %v2941, %v2943
        %s2947 = scalar_lea.vmem [#allocation17], 32
        %v2948 = vld [vmem:[%s2947] sm:$0xff]
        %v2949 = vld [vmem:[%s2947 + $0x8] sm:$0xff]
        %v2950 = vld [vmem:[%s2947 + $0x10] sm:$0xff]
        %v2951 = vld [vmem:[%s2947 + $0x18] sm:$0xff]
        %s2952 = scalar_lea.vmem [#allocation19], 1
        %v2953 = vld [vmem:[%s2952] sm:$0x1]
        %v2955 = vperm.slane %v2953, 0
        %v2958 = vsel %vm1266, %v2945, 0
        %v2961 = vsel %vm1266, %v2946, 0
        %2963 = vmatpush.msra.mxu0 0.0
        %2964 = vmatpush.msra.mxu0 0.0
        %2965 = vmatpush.msra.mxu0 0.0
        %2966 = vmatpush.msra.mxu0 0.0
        %2967 = vmatpush.msra.mxu0 0.0
        %2968 = vmatpush.msra.mxu0 0.0
        %2969 = vmatpush.msra.mxu0 0.0
        %2970 = vmatpush.msra.mxu0 0.0
        %2971 = vmatpush.msra.mxu0 0.0
        %2972 = vmatpush.msra.mxu0 0.0
        %2973 = vmatpush.msra.mxu0 0.0
        %2974 = vmatpush.msra.mxu0 0.0
        %2975 = vmatpush.msra.mxu0 %v2951
        %2976 = vmatpush.msra.mxu0 %v2950
        %2977 = vmatpush.msra.mxu0 %v2949
        %2978 = vmatpush.msra.mxu0 %v2948
        %2979 = vmatmul.f32.gmra.mxu0 %v2958
        %v2980 = vpop.f32.mrf.mxu0
        %v2981 = vadd.f32 %v2955, %v2980
        %2982 = vmatmul.f32.gmra.mxu0 %v2961
        %v2983 = vpop.f32.mrf.mxu0
        %v2984 = vadd.f32 %v2955, %v2983
        %2985 = vdwg.mxu0
        %v2986 = vmul.f32 %v2981, %v2981
        %v2987 = vmul.f32 %v2984, %v2984
        %v2988 = vmul.f32 %v2981, %v2986
        %v2989 = vmul.f32 %v2984, %v2987
        %v2990 = vmul.f32 %v2988, 0.044715
        %v2991 = vmul.f32 %v2989, 0.044715
        %v2992 = vadd.f32 %v2981, %v2990
        %v2993 = vadd.f32 %v2984, %v2991
        %v2994 = vmul.f32 %v2992, 0.7978846
        %v2995 = vmul.f32 %v2993, 0.7978846
        %v2996 = vtanh.pop %v2994
        %v2997 = vtanh.pop %v2995
        %v2998 = vadd.f32 %v2996, 1.0
        %v2999 = vadd.f32 %v2997, 1.0
        %v3000 = vmul.f32 %v2998, 0.5
        %v3001 = vmul.f32 %v2999, 0.5
        %v3002 = vmul.f32 %v2981, %v3000
        %v3003 = vmul.f32 %v2984, %v3001
        %s3004 = scalar_lea.vmem %s19, 64
        %v3005 = vld [vmem:[%s3004] sm:$0xff]
        %v3006 = vld [vmem:[%s3004 + $0x8] sm:$0xff]
        %v3007 = vld [vmem:[%s3004 + $0x10] sm:$0xff]
        %v3008 = vld [vmem:[%s3004 + $0x18] sm:$0xff]
        %v3009 = vld [vmem:[%s3004 + $0x20] sm:$0xff]
        %v3010 = vld [vmem:[%s3004 + $0x28] sm:$0xff]
        %v3011 = vld [vmem:[%s3004 + $0x30] sm:$0xff]
        %v3012 = vld [vmem:[%s3004 + $0x38] sm:$0xff]
        %s3013 = scalar_lea.vmem [#allocation20], 1
        %v3014 = vld [vmem:[%s3013] sm:$0x1]
        %v3016 = vperm.slane %v3014, 0
        %v3019 = vsel %vm2305, %v3002, 0
        %v3022 = vsel %vm2305, %v3003, 0
        %3024 = vmatpush.msra.mxu0 0.0
        %3025 = vmatpush.msra.mxu0 0.0
        %3026 = vmatpush.msra.mxu0 0.0
        %3027 = vmatpush.msra.mxu0 0.0
        %3028 = vmatpush.msra.mxu0 0.0
        %3029 = vmatpush.msra.mxu0 0.0
        %3030 = vmatpush.msra.mxu0 0.0
        %3031 = vmatpush.msra.mxu0 0.0
        %3032 = vmatpush.msra.mxu0 %v3012
        %3033 = vmatpush.msra.mxu0 %v3011
        %3034 = vmatpush.msra.mxu0 %v3010
        %3035 = vmatpush.msra.mxu0 %v3009
        %3036 = vmatpush.msra.mxu0 %v3008
        %3037 = vmatpush.msra.mxu0 %v3007
        %3038 = vmatpush.msra.mxu0 %v3006
        %3039 = vmatpush.msra.mxu0 %v3005
        %3040 = vmatmul.f32.gmra.mxu0 %v3019
        %v3041 = vpop.f32.mrf.mxu0
        %v3042 = vadd.f32 %v3016, %v3041
        %3043 = vmatmul.f32.gmra.mxu0 %v3022
        %v3044 = vpop.f32.mrf.mxu0
        %v3045 = vadd.f32 %v3016, %v3044
        %3046 = vdwg.mxu0
        %v3047 = vadd.f32 %v2945, %v3042
        %v3048 = vadd.f32 %v2946, %v3045
        %s3049 = scalar_lea.vmem %s21, 1
        %v3050 = vld [vmem:[%s3049] sm:$0x1]
        %s3051 = scalar_lea.vmem [#allocation22], 1
        %v3052 = vld [vmem:[%s3051] sm:$0x1]
        %v3053 = vsel %vm1266, %v3047, 0.0
        %3054 = vadd.xlane.f32.xlu0 %v3053
        %v3055 = vpop.xlane.xlu0 %3054
        %v3056 = vsel %vm1266, %v3048, 0.0
        %3057 = vadd.xlane.f32.xlu0 %v3056
        %v3058 = vpop.xlane.xlu0 %3057
        %v3059 = vmul.f32 %v3055, %v1545
        %v3060 = vmul.f32 %v3058, %v1545
        %v3061 = vsub.f32 %v3047, %v3059
        %v3062 = vsub.f32 %v3048, %v3060
        %v3063 = vmul.f32 %v3061, %v3061
        %v3064 = vmul.f32 %v3062, %v3062
        %v3065 = vsel %vm1266, %v3063, 0.0
        %3066 = vadd.xlane.f32.xlu0 %v3065
        %v3067 = vpop.xlane.xlu0 %3066
        %v3068 = vsel %vm1266, %v3064, 0.0
        %3069 = vadd.xlane.f32.xlu0 %v3068
        %v3070 = vpop.xlane.xlu0 %3069
        %v3071 = vmul.f32 %v3067, %v1545
        %v3072 = vmul.f32 %v3070, %v1545
        %v3073 = vadd.f32 %v3071, 1e-05
        %v3074 = vadd.f32 %v3072, 1e-05
        %v3075 = vrsqrt.pop %v3073
        %v3076 = vmul.f32 %v3075, %v3073
        %v3077 = vmul.f32 %v3076, %v3075
        %v3078 = vmul.f32 0.5, %v3077
        %v3079 = vsub.f32 1.5, %v3078
        %v3080 = vmul.f32 %v3075, %v3079
        %vm3081 = vweird.f32 %v3073
        %vm3082 = vweird.f32 %v3075
        %vm3083 = vmor %vm3081, %vm3082
        %v3084 = vsel %vm3083, %v3075, %v3080
        %v3085 = vrsqrt.pop %v3074
        %v3086 = vmul.f32 %v3085, %v3074
        %v3087 = vmul.f32 %v3086, %v3085
        %v3088 = vmul.f32 0.5, %v3087
        %v3089 = vsub.f32 1.5, %v3088
        %v3090 = vmul.f32 %v3085, %v3089
        %vm3091 = vweird.f32 %v3074
        %vm3092 = vweird.f32 %v3085
        %vm3093 = vmor %vm3091, %vm3092
        %v3094 = vsel %vm3093, %v3085, %v3090
        %v3095 = vmul.f32 %v3061, %v3084
        %v3096 = vmul.f32 %v3062, %v3094
        %v3098 = vperm.slane %v3050, 0
        %v3100 = vmul.f32 %v3095, %v3098
        %v3101 = vmul.f32 %v3096, %v3098
        %v3103 = vperm.slane %v3052, 0
        %v3105 = vadd.f32 %v3100, %v3103
        %v3106 = vadd.f32 %v3101, %v3103
        %v3107 = vsel %vm1266, %v3105, 0.0
        %v3108 = vsel %vm1266, %v3106, 0.0
        %v3109 = vadd.f32 %v3107, %v3108
        %v3110 = vrot.slane %v3109, 4
        %v3111 = vadd.f32 %v3109, %v3110
        %v3112 = vrot.slane %v3111, 2
        %v3113 = vadd.f32 %v3111, %v3112
        %v3114 = vrot.slane %v3113, 1
        %v3115 = vadd.f32 %v3113, %v3114
        %v3116 = vrcp.pop 16.0
        %v3117 = vmul.f32 16.0, %v3116
        %v3118 = vsub.f32 1.0, %v3117
        %v3119 = vmul.f32 %v3116, %v3118
        %v3120 = vadd.f32 %v3116, %v3119
        %vm3121 = vweird.f32 %v3116
        %v3122 = vsel %vm3121, %v3116, %v3120
        %v3123 = vmul.f32 %v3115, %v3122
        %3124 = vst.msk [vmem:[%s903] sm:$0x1] %vm1270, %v3123
        %s3125 = sand.u32 %s540, 1
        %s3126 = scalar_lea.sflag [#allocation4], %s3125
        %s3127 = sand.u32 %s540, 1
        %s3128 = scalar_lea.vmem [#allocation23], %s3127
        // Predicated region
        $region165: #{tpu_custom_call.1} parent=111 // pred_check
          %p3129 = pneg %p550
        $region166: #{tpu_custom_call.1} parent=111 // pred_check_branch
          %3131 = sbr.rel (%p3129) target = $region168
        $region167: #{tpu_custom_call.1} parent=111 // pred_region
          %3133 = vsyncadd %s3126, 0
          %s3134 = scalar_lea.hbm %s23, %s44
          %s3136 = sshll.u32 %s3128, 4
          %s3137 = int_to_ptr.vmem [resolvable:$true] %s3136
          %s3138 = sshll.u32 %s3134, 4
          %s3139 = int_to_ptr.hbm [resolvable:$true] %s3138
          %3141 = dma.vmem_to_hbm [thread:$0]  %s3137, 16, %s3139, %s3126
        $region168: #{tpu_custom_call.1} parent=111 // pred_fallthru
          _
      $region112: #{tpu_custom_call.1} parent=5 // pred_fallthru
        _
      %p3142 = scmp.le.s32.totalorder 2, %s39
      // Predicated region
      $region169: #{tpu_custom_call.1} parent=5 // pred_check
        %p3143 = pneg %p3142
      $region170: #{tpu_custom_call.1} parent=5 // pred_check_branch
        %3145 = sbr.rel (%p3143) target = $region172
      $region171: #{tpu_custom_call.1} parent=5 // pred_region
        %s3146 = ssub.s32 %s39, 2
        // Predicated region
        $region173: #{tpu_custom_call.1} parent=171 // pred_check
          %p3147 = pneg %p556
        $region174: #{tpu_custom_call.1} parent=171 // pred_check_branch
          %3149 = sbr.rel (%p3147) target = $region176
        $region175: #{tpu_custom_call.1} parent=171 // pred_region
          %s3150 = sand.u32 %s541, 1
          %s3151 = scalar_lea.sflag [#allocation4], %s3150
          %s3152 = sand.u32 %s541, 1
          %s3153 = scalar_lea.vmem [#allocation23], %s3152
          %3155 = dma.done %s3151, 16
        $region176: #{tpu_custom_call.1} parent=171 // pred_fallthru
          _
      $region172: #{tpu_custom_call.1} parent=5 // pred_fallthru
        _
    $region6: #{tpu_custom_call.1} parent=1 // loop_footer
      %s43 = sadd.s32 1, %s39
    $region7: #{tpu_custom_call.1} parent=1 // loop_footer_branch
      %38 = sbr.rel target = $region3
    $region8: #{tpu_custom_call.1} parent=1 // loop_exit
      _
    %3156 = vsyncpa [#allocation3], 1
    %s3157 = scalar_lea.sflag [#allocation3], 1
    %3158 = vsyncpa %s3157, 1
    %3159 = vsyncpa [#allocation6], 1
    %3160 = vsyncpa [#allocation9], 1
    %3161 = vsyncpa [#allocation12], 1
    %3162 = vsyncpa [#allocation15], 1
    %3163 = vsyncpa [#allocation18], 1
    %3164 = vsyncpa [#allocation21], 1
    %3165 = vsyncpa [#allocation4], 1
    %s3166 = scalar_lea.sflag [#allocation4], 1
    %3167 = vsyncpa %s3166, 1

</llo_original>
